<compile_context>
chip_gen: v5e
topology: v5e:2x2
jax: 0.10.0
libtpu: 0.0.40
codegen_flags: <defaults>
</compile_context>

<pallas_src>
import functools

import jax
import jax.numpy as jnp
from jax import lax
from jax.experimental import pallas as pl
from jax.experimental.pallas import tpu as pltpu

_LANES = 128


def _round8(n):
    return ((n + 7) // 8) * 8


def _layer_dims(n_features, embedding_dim):
    """(name, input_size, hidden_size) for the 4 stacked LSTM layers."""
    F, E = n_features, embedding_dim
    return (("enc0", F, E), ("enc1", E, E), ("dec0", E, F), ("dec1", F, F))


def _slab_layout(n_features, embedding_dim):
    """Static (row_offset, rows, cols) for every tensor in the packed weight slab."""
    F = n_features
    entries = []
    for name, in_size, H in _layer_dims(n_features, embedding_dim):
        entries += [(name + "_wih", in_size, 4 * H),
                    (name + "_whh", H, 4 * H),
                    (name + "_b", 1, 4 * H)]
    entries += [("out_w", F, F), ("out_b", 1, F)]
    layout, row = {}, 0
    for name, rows, cols in entries:
        assert cols <= _LANES, "packed tensor wider than one lane tile"
        layout[name] = (row, rows, cols)
        row += _round8(rows)          # keep every tensor 8-sublane aligned in the slab
    return layout, row


# -----------------------------------------------------------------------------
# Fused kernel: input rearrange + 4 LSTM layers + output Linear + output rearrange.
# -----------------------------------------------------------------------------
def _fused_lstm_ae_kernel(x_ref, w_ref, o_ref,
                          xin_ref, h_enc0, h_enc1, h_dec0, h_dec1,
                          *, B, Bp, T, F, E, layout):
    def wslice(name):
        off, rows, cols = layout[name]
        return w_ref[off:off + rows, :cols]

    def run_layer(in_buf, out_buf, prefix, H):
        """in_buf: (T*Bp, in) VMEM slab (time-major). Writes hidden seq into out_buf."""
        wih = wslice(prefix + "_wih")        # (in, 4H), g-block pre-scaled by 2
        whh = wslice(prefix + "_whh")        # (H, 4H),  g-block pre-scaled by 2
        b = wslice(prefix + "_b")            # (1, 4H),  g-block pre-scaled by 2

        # Hoisted input projection: one matmul for all T time steps.
        gx = jnp.dot(in_buf[...], wih, preferred_element_type=jnp.float32) + b  # (T*Bp, 4H)

        h = jnp.zeros((Bp, H), jnp.float32)
        c = jnp.zeros((Bp, H), jnp.float32)
        # Statically unrolled serial recurrence; all slice offsets are compile-time constants
        # and Bp-aligned to the sublane tile.
        for t in range(T):
            z = gx[t * Bp:(t + 1) * Bp, :] + jnp.dot(
                h, whh, preferred_element_type=jnp.float32)          # (Bp, 4H)
            # ONE sigmoid over the whole gate tile; tanh gate recovered arithmetically
            # (its pre-activation was doubled when packing the weights).
            s = jax.nn.sigmoid(z)
            i_g = s[:, 0 * H:1 * H]
            f_g = s[:, 1 * H:2 * H]
            g_g = 2.0 * s[:, 2 * H:3 * H] - 1.0                      # == tanh(z_g_original)
            o_g = s[:, 3 * H:4 * H]
            c = f_g * c + i_g * g_g
            h = o_g * jnp.tanh(c)
            out_buf[t * Bp:(t + 1) * Bp, :] = h                       # aligned scratch store

    # --- preamble: (B, T, F) batch-first -> time-major (T*Bp, F) slab, padded rows zeroed ---
    xin_ref[...] = jnp.zeros((T * Bp, F), jnp.float32)
    xv = x_ref[...]                                                   # (B, T, F)
    for t in range(T):
        xin_ref[t * Bp:t * Bp + B, :] = xv[:, t, :]

    # --- encoder (2 layers, hidden = embedding_dim) ---
    run_layer(xin_ref, h_enc0, "enc0", E)
    run_layer(h_enc0, h_enc1, "enc1", E)
    # --- decoder (2 layers, hidden = n_features) ---
    run_layer(h_enc1, h_dec0, "dec0", F)
    run_layer(h_dec0, h_dec1, "dec1", F)

    # --- output Linear over all (time, batch) rows at once, then rearrange to (B, T, F) ---
    wout = wslice("out_w")                                            # (F, F)
    bout = wslice("out_b")                                            # (1, F)
    y = jnp.dot(h_dec1[...], wout, preferred_element_type=jnp.float32) + bout  # (T*Bp, F)
    for t in range(T):
        o_ref[:, t:t + 1, :] = y[t * Bp:t * Bp + B, :].reshape(B, 1, F)


# -----------------------------------------------------------------------------
# Parameter construction (PyTorch-shaped, stored pre-transposed) + slab packing.
# -----------------------------------------------------------------------------
def init_params(key, n_features, embedding_dim):
    params = {}
    keys = jax.random.split(key, 5)
    for k, (name, in_size, H) in zip(keys[:4], _layer_dims(n_features, embedding_dim)):
        k1, k2, k3, k4 = jax.random.split(k, 4)
        s = 1.0 / jnp.sqrt(H)
        # PyTorch: weight_ih (4H, in), weight_hh (4H, H), bias_ih (4H,), bias_hh (4H,)
        w_ih = jax.random.uniform(k1, (4 * H, in_size), jnp.float32, -s, s)
        w_hh = jax.random.uniform(k2, (4 * H, H), jnp.float32, -s, s)
        b_ih = jax.random.uniform(k3, (4 * H,), jnp.float32, -s, s)
        b_hh = jax.random.uniform(k4, (4 * H,), jnp.float32, -s, s)
        params[name + "_wih"] = w_ih.T                    # (in, 4H)
        params[name + "_whh"] = w_hh.T                    # (H, 4H)
        params[name + "_b"] = (b_ih + b_hh)[None, :]      # (1, 4H)
    kw, kb = jax.random.split(keys[4])
    F = n_features
    s = 1.0 / jnp.sqrt(F)
    params["out_w"] = jax.random.uniform(kw, (F, F), jnp.float32, -s, s).T   # (F_in, F_out)
    params["out_b"] = jax.random.uniform(kb, (F,), jnp.float32, -s, s)[None, :]
    return params


def pack_params(params, n_features, embedding_dim):
    """Pack all tensors into one (rows, 128) f32 slab; pre-scale the tanh gate block by 2."""
    layout, total_rows = _slab_layout(n_features, embedding_dim)
    slab = jnp.zeros((total_rows, _LANES), jnp.float32)
    for name, _in_size, H in _layer_dims(n_features, embedding_dim):
        # tanh(z) = 2*sigmoid(2z) - 1  =>  double the g-gate pre-activation via the weights.
        scale = jnp.ones((4 * H,), jnp.float32).at[2 * H:3 * H].set(2.0)
        for suffix in ("_wih", "_whh", "_b"):
            arr = params[name + suffix] * scale
            off, rows, cols = layout[name + suffix]
            slab = slab.at[off:off + rows, :cols].set(arr)
    for name in ("out_w", "out_b"):
        arr = params[name]
        off, rows, cols = layout[name]
        slab = slab.at[off:off + rows, :cols].set(arr)
    return slab


# -----------------------------------------------------------------------------
# Forward pass: one fused pallas_call, no surrounding layout HLOs.
# -----------------------------------------------------------------------------
@functools.partial(jax.jit, static_argnames=("embedding_dim",))
def lstm_autoencoder_forward(w_slab, x_btf, *, embedding_dim):
    """x_btf: (B, T, n_features) batch-first, like the PyTorch module. Returns (B, T, n_features)."""
    B, T, F = x_btf.shape
    E = embedding_dim
    Bp = _round8(B)                                   # pad batch to the f32 sublane count
    layout, total_rows = _slab_layout(F, E)

    kernel = functools.partial(_fused_lstm_ae_kernel,
                               B=B, Bp=Bp, T=T, F=F, E=E, layout=layout)
    return pl.pallas_call(
        kernel,
        out_shape=jax.ShapeDtypeStruct((B, T, F), jnp.float32),
        grid=(),
        in_specs=[pl.BlockSpec((B, T, F), lambda: (0, 0, 0)),
                  pl.BlockSpec((total_rows, _LANES), lambda: (0, 0))],
        out_specs=pl.BlockSpec((B, T, F), lambda: (0, 0, 0)),
        scratch_shapes=[
            pltpu.VMEM((T * Bp, F), jnp.float32),     # time-major input slab
            pltpu.VMEM((T * Bp, E), jnp.float32),     # enc0 hidden sequence
            pltpu.VMEM((T * Bp, E), jnp.float32),     # enc1 hidden sequence
            pltpu.VMEM((T * Bp, F), jnp.float32),     # dec0 hidden sequence
            pltpu.VMEM((T * Bp, F), jnp.float32),     # dec1 hidden sequence
        ],
        # No vmem_limit override: working set is < 200 KiB on every generation (incl. v7x).
    )(x_btf.astype(jnp.float32), w_slab)


# -----------------------------------------------------------------------------
# Pure-JAX reference (uses the ORIGINAL, unscaled params + true tanh) for correctness.
# -----------------------------------------------------------------------------
def _lstm_layer_ref(x_tbf, w_ih_t, w_hh_t, b):
    H = w_hh_t.shape[0]
    Bsz = x_tbf.shape[1]

    def step(carry, x_t):
        h, c = carry
        g = x_t @ w_ih_t + h @ w_hh_t + b
        i = jax.nn.sigmoid(g[:, 0 * H:1 * H])
        f = jax.nn.sigmoid(g[:, 1 * H:2 * H])
        gg = jnp.tanh(g[:, 2 * H:3 * H])
        o = jax.nn.sigmoid(g[:, 3 * H:4 * H])
        c = f * c + i * gg
        h = o * jnp.tanh(c)
        return (h, c), h

    init = (jnp.zeros((Bsz, H), jnp.float32), jnp.zeros((Bsz, H), jnp.float32))
    _, ys = lax.scan(step, init, x_tbf)
    return ys


def _forward_ref(params, x_btf):
    x = jnp.transpose(x_btf, (1, 0, 2)).astype(jnp.float32)
    for name in ("enc0", "enc1", "dec0", "dec1"):
        x = _lstm_layer_ref(x, params[name + "_wih"], params[name + "_whh"], params[name + "_b"])
    y = x @ params["out_w"] + params["out_b"]
    return jnp.transpose(y, (1, 0, 2))


if __name__ == "__main__":
    # Small, module-consistent shapes: batch=2, seq_len=8, n_features=8, embedding_dim=32.
    B, T, F, E = 2, 8, 8, 32

    key = jax.random.PRNGKey(0)
    k_params, k_x = jax.random.split(key)
    params = init_params(k_params, F, E)
    w_slab = pack_params(params, F, E)                 # one-time packing, outside jit
    x = jax.random.normal(k_x, (B, T, F), jnp.float32)

    y = lstm_autoencoder_forward(w_slab, x, embedding_dim=E)
    y = jax.block_until_ready(y)

    y_ref = _forward_ref(params, x)
    assert y.shape == (B, T, F), y.shape
    max_err = float(jnp.max(jnp.abs(y - y_ref)))
    assert jnp.allclose(y, y_ref, rtol=1e-4, atol=1e-4), max_err

    print("KERNEL_OK")
</pallas_src>

<mosaic_0001>
module attributes {stable_mosaic.version = 11 : i64} {
  func.func @_fused_lstm_ae_kernel(%arg0: memref<2x8x8xf32, #tpu.memory_space<vmem>>, %arg1: memref<208x128xf32, #tpu.memory_space<vmem>>, %arg2: memref<2x8x8xf32, #tpu.memory_space<vmem>>, %arg3: memref<64x8xf32, #tpu.memory_space<vmem>>, %arg4: memref<64x32xf32, #tpu.memory_space<vmem>>, %arg5: memref<64x32xf32, #tpu.memory_space<vmem>>, %arg6: memref<64x8xf32, #tpu.memory_space<vmem>>, %arg7: memref<64x8xf32, #tpu.memory_space<vmem>>) attributes {dimension_semantics = [], scalar_prefetch = 0 : i64, scratch_operands = 5 : i64, tpu.core_type = #tpu.core_type<tc>} {
    %cst = arith.constant 0.000000e+00 : f32
    %0 = vector.broadcast %cst : f32 to vector<64x8xf32>
    %c0 = arith.constant 0 : index
    %c0_0 = arith.constant 0 : index
    %1 = vector.load %arg3[%c0, %c0_0] : memref<64x8xf32, #tpu.memory_space<vmem>>, vector<64x8xf32>
    tpu.vector_store %arg3[%c0, %c0_0], %0 {strides = array<i32>} : memref<64x8xf32, #tpu.memory_space<vmem>>, vector<64x8xf32>,
    %c0_1 = arith.constant 0 : index
    %c0_2 = arith.constant 0 : index
    %c0_3 = arith.constant 0 : index
    %2 = vector.load %arg0[%c0_1, %c0_2, %c0_3] : memref<2x8x8xf32, #tpu.memory_space<vmem>>, vector<2x8x8xf32>
    %3 = vector.extract_strided_slice %2 {offsets = [0, 0, 0], sizes = [2, 1, 8], strides = [1, 1, 1]} : vector<2x8x8xf32> to vector<2x1x8xf32>
    %4 = vector.shape_cast %3 : vector<2x1x8xf32> to vector<2x8xf32>
    %c0_4 = arith.constant 0 : index
    %c0_5 = arith.constant 0 : index
    %5 = vector.load %arg3[%c0_4, %c0_5] : memref<64x8xf32, #tpu.memory_space<vmem>>, vector<2x8xf32>
    tpu.vector_store %arg3[%c0_4, %c0_5], %4 {strides = array<i32>} : memref<64x8xf32, #tpu.memory_space<vmem>>, vector<2x8xf32>,
    %6 = vector.extract_strided_slice %2 {offsets = [0, 1, 0], sizes = [2, 1, 8], strides = [1, 1, 1]} : vector<2x8x8xf32> to vector<2x1x8xf32>
    %7 = vector.shape_cast %6 : vector<2x1x8xf32> to vector<2x8xf32>
    %c8 = arith.constant 8 : index
    %c0_6 = arith.constant 0 : index
    %8 = vector.load %arg3[%c8, %c0_6] : memref<64x8xf32, #tpu.memory_space<vmem>>, vector<2x8xf32>
    tpu.vector_store %arg3[%c8, %c0_6], %7 {strides = array<i32>} : memref<64x8xf32, #tpu.memory_space<vmem>>, vector<2x8xf32>,
    %9 = vector.extract_strided_slice %2 {offsets = [0, 2, 0], sizes = [2, 1, 8], strides = [1, 1, 1]} : vector<2x8x8xf32> to vector<2x1x8xf32>
    %10 = vector.shape_cast %9 : vector<2x1x8xf32> to vector<2x8xf32>
    %c16 = arith.constant 16 : index
    %c0_7 = arith.constant 0 : index
    %11 = vector.load %arg3[%c16, %c0_7] : memref<64x8xf32, #tpu.memory_space<vmem>>, vector<2x8xf32>
    tpu.vector_store %arg3[%c16, %c0_7], %10 {strides = array<i32>} : memref<64x8xf32, #tpu.memory_space<vmem>>, vector<2x8xf32>,
    %12 = vector.extract_strided_slice %2 {offsets = [0, 3, 0], sizes = [2, 1, 8], strides = [1, 1, 1]} : vector<2x8x8xf32> to vector<2x1x8xf32>
    %13 = vector.shape_cast %12 : vector<2x1x8xf32> to vector<2x8xf32>
    %c24 = arith.constant 24 : index
    %c0_8 = arith.constant 0 : index
    %14 = vector.load %arg3[%c24, %c0_8] : memref<64x8xf32, #tpu.memory_space<vmem>>, vector<2x8xf32>
    tpu.vector_store %arg3[%c24, %c0_8], %13 {strides = array<i32>} : memref<64x8xf32, #tpu.memory_space<vmem>>, vector<2x8xf32>,
    %15 = vector.extract_strided_slice %2 {offsets = [0, 4, 0], sizes = [2, 1, 8], strides = [1, 1, 1]} : vector<2x8x8xf32> to vector<2x1x8xf32>
    %16 = vector.shape_cast %15 : vector<2x1x8xf32> to vector<2x8xf32>
    %c32 = arith.constant 32 : index
    %c0_9 = arith.constant 0 : index
    %17 = vector.load %arg3[%c32, %c0_9] : memref<64x8xf32, #tpu.memory_space<vmem>>, vector<2x8xf32>
    tpu.vector_store %arg3[%c32, %c0_9], %16 {strides = array<i32>} : memref<64x8xf32, #tpu.memory_space<vmem>>, vector<2x8xf32>,
    %18 = vector.extract_strided_slice %2 {offsets = [0, 5, 0], sizes = [2, 1, 8], strides = [1, 1, 1]} : vector<2x8x8xf32> to vector<2x1x8xf32>
    %19 = vector.shape_cast %18 : vector<2x1x8xf32> to vector<2x8xf32>
    %c40 = arith.constant 40 : index
    %c0_10 = arith.constant 0 : index
    %20 = vector.load %arg3[%c40, %c0_10] : memref<64x8xf32, #tpu.memory_space<vmem>>, vector<2x8xf32>
    tpu.vector_store %arg3[%c40, %c0_10], %19 {strides = array<i32>} : memref<64x8xf32, #tpu.memory_space<vmem>>, vector<2x8xf32>,
    %21 = vector.extract_strided_slice %2 {offsets = [0, 6, 0], sizes = [2, 1, 8], strides = [1, 1, 1]} : vector<2x8x8xf32> to vector<2x1x8xf32>
    %22 = vector.shape_cast %21 : vector<2x1x8xf32> to vector<2x8xf32>
    %c48 = arith.constant 48 : index
    %c0_11 = arith.constant 0 : index
    %23 = vector.load %arg3[%c48, %c0_11] : memref<64x8xf32, #tpu.memory_space<vmem>>, vector<2x8xf32>
    tpu.vector_store %arg3[%c48, %c0_11], %22 {strides = array<i32>} : memref<64x8xf32, #tpu.memory_space<vmem>>, vector<2x8xf32>,
    %24 = vector.extract_strided_slice %2 {offsets = [0, 7, 0], sizes = [2, 1, 8], strides = [1, 1, 1]} : vector<2x8x8xf32> to vector<2x1x8xf32>
    %25 = vector.shape_cast %24 : vector<2x1x8xf32> to vector<2x8xf32>
    %c56 = arith.constant 56 : index
    %c0_12 = arith.constant 0 : index
    %26 = vector.load %arg3[%c56, %c0_12] : memref<64x8xf32, #tpu.memory_space<vmem>>, vector<2x8xf32>
    tpu.vector_store %arg3[%c56, %c0_12], %25 {strides = array<i32>} : memref<64x8xf32, #tpu.memory_space<vmem>>, vector<2x8xf32>,
    %c0_13 = arith.constant 0 : index
    %c0_14 = arith.constant 0 : index
    %27 = vector.load %arg1[%c0_13, %c0_14] : memref<208x128xf32, #tpu.memory_space<vmem>>, vector<8x128xf32>
    %c8_15 = arith.constant 8 : index
    %c0_16 = arith.constant 0 : index
    %28 = vector.load %arg1[%c8_15, %c0_16] : memref<208x128xf32, #tpu.memory_space<vmem>>, vector<32x128xf32>
    %c40_17 = arith.constant 40 : index
    %c0_18 = arith.constant 0 : index
    %29 = vector.load %arg1[%c40_17, %c0_18] : memref<208x128xf32, #tpu.memory_space<vmem>>, vector<1x128xf32>
    %c0_19 = arith.constant 0 : index
    %c0_20 = arith.constant 0 : index
    %30 = vector.load %arg3[%c0_19, %c0_20] : memref<64x8xf32, #tpu.memory_space<vmem>>, vector<64x8xf32>
    %cst_21 = arith.constant dense<0.000000e+00> : vector<64x128xf32>
    %31 = tpu.matmul %30, %27, %cst_21 {dimension_numbers = #tpu.dot_dimension_numbers<[1], [0], [0], [1], [0, 0, 1, 1], [], []>} : vector<64x8xf32>, vector<8x128xf32>, vector<64x128xf32> -> vector<64x128xf32>
    %32 = vector.broadcast %29 : vector<1x128xf32> to vector<64x128xf32>
    %33 = arith.addf %31, %32 : vector<64x128xf32>
    %cst_22 = arith.constant 0.000000e+00 : f32
    %34 = vector.broadcast %cst_22 : f32 to vector<8x32xf32>
    %cst_23 = arith.constant 0.000000e+00 : f32
    %35 = vector.broadcast %cst_23 : f32 to vector<8x32xf32>
    %36 = vector.extract_strided_slice %33 {offsets = [0, 0], sizes = [8, 128], strides = [1, 1]} : vector<64x128xf32> to vector<8x128xf32>
    %cst_24 = arith.constant dense<0.000000e+00> : vector<8x128xf32>
    %37 = tpu.matmul %34, %28, %cst_24 {dimension_numbers = #tpu.dot_dimension_numbers<[1], [0], [0], [1], [0, 0, 1, 1], [], []>} : vector<8x32xf32>, vector<32x128xf32>, vector<8x128xf32> -> vector<8x128xf32>
    %38 = arith.addf %36, %37 : vector<8x128xf32>
    %39 = arith.negf %38 : vector<8x128xf32>
    %40 = math.exp %39 : vector<8x128xf32>
    %cst_25 = arith.constant 1.000000e+00 : f32
    %41 = vector.broadcast %cst_25 : f32 to vector<8x128xf32>
    %42 = arith.addf %41, %40 : vector<8x128xf32>
    %43 = arith.divf %41, %42 : vector<8x128xf32>
    %44 = vector.extract_strided_slice %43 {offsets = [0, 0], sizes = [8, 32], strides = [1, 1]} : vector<8x128xf32> to vector<8x32xf32>
    %45 = vector.extract_strided_slice %43 {offsets = [0, 32], sizes = [8, 32], strides = [1, 1]} : vector<8x128xf32> to vector<8x32xf32>
    %46 = vector.extract_strided_slice %43 {offsets = [0, 64], sizes = [8, 32], strides = [1, 1]} : vector<8x128xf32> to vector<8x32xf32>
    %cst_26 = arith.constant 2.000000e+00 : f32
    %47 = vector.broadcast %cst_26 : f32 to vector<8x32xf32>
    %48 = arith.mulf %47, %46 : vector<8x32xf32>
    %cst_27 = arith.constant 1.000000e+00 : f32
    %49 = vector.broadcast %cst_27 : f32 to vector<8x32xf32>
    %50 = arith.subf %48, %49 : vector<8x32xf32>
    %51 = vector.extract_strided_slice %43 {offsets = [0, 96], sizes = [8, 32], strides = [1, 1]} : vector<8x128xf32> to vector<8x32xf32>
    %52 = arith.mulf %45, %35 : vector<8x32xf32>
    %53 = arith.mulf %44, %50 : vector<8x32xf32>
    %54 = arith.addf %52, %53 : vector<8x32xf32>
    %55 = math.tanh %54 : vector<8x32xf32>
    %56 = arith.mulf %51, %55 : vector<8x32xf32>
    %c0_28 = arith.constant 0 : index
    %c0_29 = arith.constant 0 : index
    %57 = vector.load %arg4[%c0_28, %c0_29] : memref<64x32xf32, #tpu.memory_space<vmem>>, vector<8x32xf32>
    tpu.vector_store %arg4[%c0_28, %c0_29], %56 {strides = array<i32>} : memref<64x32xf32, #tpu.memory_space<vmem>>, vector<8x32xf32>,
    %58 = vector.extract_strided_slice %33 {offsets = [8, 0], sizes = [8, 128], strides = [1, 1]} : vector<64x128xf32> to vector<8x128xf32>
    %cst_30 = arith.constant dense<0.000000e+00> : vector<8x128xf32>
    %59 = tpu.matmul %56, %28, %cst_30 {dimension_numbers = #tpu.dot_dimension_numbers<[1], [0], [0], [1], [0, 0, 1, 1], [], []>} : vector<8x32xf32>, vector<32x128xf32>, vector<8x128xf32> -> vector<8x128xf32>
    %60 = arith.addf %58, %59 : vector<8x128xf32>
    %61 = arith.negf %60 : vector<8x128xf32>
    %62 = math.exp %61 : vector<8x128xf32>
    %cst_31 = arith.constant 1.000000e+00 : f32
    %63 = vector.broadcast %cst_31 : f32 to vector<8x128xf32>
    %64 = arith.addf %63, %62 : vector<8x128xf32>
    %65 = arith.divf %63, %64 : vector<8x128xf32>
    %66 = vector.extract_strided_slice %65 {offsets = [0, 0], sizes = [8, 32], strides = [1, 1]} : vector<8x128xf32> to vector<8x32xf32>
    %67 = vector.extract_strided_slice %65 {offsets = [0, 32], sizes = [8, 32], strides = [1, 1]} : vector<8x128xf32> to vector<8x32xf32>
    %68 = vector.extract_strided_slice %65 {offsets = [0, 64], sizes = [8, 32], strides = [1, 1]} : vector<8x128xf32> to vector<8x32xf32>
    %cst_32 = arith.constant 2.000000e+00 : f32
    %69 = vector.broadcast %cst_32 : f32 to vector<8x32xf32>
    %70 = arith.mulf %69, %68 : vector<8x32xf32>
    %cst_33 = arith.constant 1.000000e+00 : f32
    %71 = vector.broadcast %cst_33 : f32 to vector<8x32xf32>
    %72 = arith.subf %70, %71 : vector<8x32xf32>
    %73 = vector.extract_strided_slice %65 {offsets = [0, 96], sizes = [8, 32], strides = [1, 1]} : vector<8x128xf32> to vector<8x32xf32>
    %74 = arith.mulf %67, %54 : vector<8x32xf32>
    %75 = arith.mulf %66, %72 : vector<8x32xf32>
    %76 = arith.addf %74, %75 : vector<8x32xf32>
    %77 = math.tanh %76 : vector<8x32xf32>
    %78 = arith.mulf %73, %77 : vector<8x32xf32>
    %c8_34 = arith.constant 8 : index
    %c0_35 = arith.constant 0 : index
    %79 = vector.load %arg4[%c8_34, %c0_35] : memref<64x32xf32, #tpu.memory_space<vmem>>, vector<8x32xf32>
    tpu.vector_store %arg4[%c8_34, %c0_35], %78 {strides = array<i32>} : memref<64x32xf32, #tpu.memory_space<vmem>>, vector<8x32xf32>,
    %80 = vector.extract_strided_slice %33 {offsets = [16, 0], sizes = [8, 128], strides = [1, 1]} : vector<64x128xf32> to vector<8x128xf32>
    %cst_36 = arith.constant dense<0.000000e+00> : vector<8x128xf32>
    %81 = tpu.matmul %78, %28, %cst_36 {dimension_numbers = #tpu.dot_dimension_numbers<[1], [0], [0], [1], [0, 0, 1, 1], [], []>} : vector<8x32xf32>, vector<32x128xf32>, vector<8x128xf32> -> vector<8x128xf32>
    %82 = arith.addf %80, %81 : vector<8x128xf32>
    %83 = arith.negf %82 : vector<8x128xf32>
    %84 = math.exp %83 : vector<8x128xf32>
    %cst_37 = arith.constant 1.000000e+00 : f32
    %85 = vector.broadcast %cst_37 : f32 to vector<8x128xf32>
    %86 = arith.addf %85, %84 : vector<8x128xf32>
    %87 = arith.divf %85, %86 : vector<8x128xf32>
    %88 = vector.extract_strided_slice %87 {offsets = [0, 0], sizes = [8, 32], strides = [1, 1]} : vector<8x128xf32> to vector<8x32xf32>
    %89 = vector.extract_strided_slice %87 {offsets = [0, 32], sizes = [8, 32], strides = [1, 1]} : vector<8x128xf32> to vector<8x32xf32>
    %90 = vector.extract_strided_slice %87 {offsets = [0, 64], sizes = [8, 32], strides = [1, 1]} : vector<8x128xf32> to vector<8x32xf32>
    %cst_38 = arith.constant 2.000000e+00 : f32
    %91 = vector.broadcast %cst_38 : f32 to vector<8x32xf32>
    %92 = arith.mulf %91, %90 : vector<8x32xf32>
    %cst_39 = arith.constant 1.000000e+00 : f32
    %93 = vector.broadcast %cst_39 : f32 to vector<8x32xf32>
    %94 = arith.subf %92, %93 : vector<8x32xf32>
    %95 = vector.extract_strided_slice %87 {offsets = [0, 96], sizes = [8, 32], strides = [1, 1]} : vector<8x128xf32> to vector<8x32xf32>
    %96 = arith.mulf %89, %76 : vector<8x32xf32>
    %97 = arith.mulf %88, %94 : vector<8x32xf32>
    %98 = arith.addf %96, %97 : vector<8x32xf32>
    %99 = math.tanh %98 : vector<8x32xf32>
    %100 = arith.mulf %95, %99 : vector<8x32xf32>
    %c16_40 = arith.constant 16 : index
    %c0_41 = arith.constant 0 : index
    %101 = vector.load %arg4[%c16_40, %c0_41] : memref<64x32xf32, #tpu.memory_space<vmem>>, vector<8x32xf32>
    tpu.vector_store %arg4[%c16_40, %c0_41], %100 {strides = array<i32>} : memref<64x32xf32, #tpu.memory_space<vmem>>, vector<8x32xf32>,
    %102 = vector.extract_strided_slice %33 {offsets = [24, 0], sizes = [8, 128], strides = [1, 1]} : vector<64x128xf32> to vector<8x128xf32>
    %cst_42 = arith.constant dense<0.000000e+00> : vector<8x128xf32>
    %103 = tpu.matmul %100, %28, %cst_42 {dimension_numbers = #tpu.dot_dimension_numbers<[1], [0], [0], [1], [0, 0, 1, 1], [], []>} : vector<8x32xf32>, vector<32x128xf32>, vector<8x128xf32> -> vector<8x128xf32>
    %104 = arith.addf %102, %103 : vector<8x128xf32>
    %105 = arith.negf %104 : vector<8x128xf32>
    %106 = math.exp %105 : vector<8x128xf32>
    %cst_43 = arith.constant 1.000000e+00 : f32
    %107 = vector.broadcast %cst_43 : f32 to vector<8x128xf32>
    %108 = arith.addf %107, %106 : vector<8x128xf32>
    %109 = arith.divf %107, %108 : vector<8x128xf32>
    %110 = vector.extract_strided_slice %109 {offsets = [0, 0], sizes = [8, 32], strides = [1, 1]} : vector<8x128xf32> to vector<8x32xf32>
    %111 = vector.extract_strided_slice %109 {offsets = [0, 32], sizes = [8, 32], strides = [1, 1]} : vector<8x128xf32> to vector<8x32xf32>
    %112 = vector.extract_strided_slice %109 {offsets = [0, 64], sizes = [8, 32], strides = [1, 1]} : vector<8x128xf32> to vector<8x32xf32>
    %cst_44 = arith.constant 2.000000e+00 : f32
    %113 = vector.broadcast %cst_44 : f32 to vector<8x32xf32>
    %114 = arith.mulf %113, %112 : vector<8x32xf32>
    %cst_45 = arith.constant 1.000000e+00 : f32
    %115 = vector.broadcast %cst_45 : f32 to vector<8x32xf32>
    %116 = arith.subf %114, %115 : vector<8x32xf32>
    %117 = vector.extract_strided_slice %109 {offsets = [0, 96], sizes = [8, 32], strides = [1, 1]} : vector<8x128xf32> to vector<8x32xf32>
    %118 = arith.mulf %111, %98 : vector<8x32xf32>
    %119 = arith.mulf %110, %116 : vector<8x32xf32>
    %120 = arith.addf %118, %119 : vector<8x32xf32>
    %121 = math.tanh %120 : vector<8x32xf32>
    %122 = arith.mulf %117, %121 : vector<8x32xf32>
    %c24_46 = arith.constant 24 : index
    %c0_47 = arith.constant 0 : index
    %123 = vector.load %arg4[%c24_46, %c0_47] : memref<64x32xf32, #tpu.memory_space<vmem>>, vector<8x32xf32>
    tpu.vector_store %arg4[%c24_46, %c0_47], %122 {strides = array<i32>} : memref<64x32xf32, #tpu.memory_space<vmem>>, vector<8x32xf32>,
    %124 = vector.extract_strided_slice %33 {offsets = [32, 0], sizes = [8, 128], strides = [1, 1]} : vector<64x128xf32> to vector<8x128xf32>
    %cst_48 = arith.constant dense<0.000000e+00> : vector<8x128xf32>
    %125 = tpu.matmul %122, %28, %cst_48 {dimension_numbers = #tpu.dot_dimension_numbers<[1], [0], [0], [1], [0, 0, 1, 1], [], []>} : vector<8x32xf32>, vector<32x128xf32>, vector<8x128xf32> -> vector<8x128xf32>
    %126 = arith.addf %124, %125 : vector<8x128xf32>
    %127 = arith.negf %126 : vector<8x128xf32>
    %128 = math.exp %127 : vector<8x128xf32>
    %cst_49 = arith.constant 1.000000e+00 : f32
    %129 = vector.broadcast %cst_49 : f32 to vector<8x128xf32>
    %130 = arith.addf %129, %128 : vector<8x128xf32>
    %131 = arith.divf %129, %130 : vector<8x128xf32>
    %132 = vector.extract_strided_slice %131 {offsets = [0, 0], sizes = [8, 32], strides = [1, 1]} : vector<8x128xf32> to vector<8x32xf32>
    %133 = vector.extract_strided_slice %131 {offsets = [0, 32], sizes = [8, 32], strides = [1, 1]} : vector<8x128xf32> to vector<8x32xf32>
    %134 = vector.extract_strided_slice %131 {offsets = [0, 64], sizes = [8, 32], strides = [1, 1]} : vector<8x128xf32> to vector<8x32xf32>
    %cst_50 = arith.constant 2.000000e+00 : f32
    %135 = vector.broadcast %cst_50 : f32 to vector<8x32xf32>
    %136 = arith.mulf %135, %134 : vector<8x32xf32>
    %cst_51 = arith.constant 1.000000e+00 : f32
    %137 = vector.broadcast %cst_51 : f32 to vector<8x32xf32>
    %138 = arith.subf %136, %137 : vector<8x32xf32>
    %139 = vector.extract_strided_slice %131 {offsets = [0, 96], sizes = [8, 32], strides = [1, 1]} : vector<8x128xf32> to vector<8x32xf32>
    %140 = arith.mulf %133, %120 : vector<8x32xf32>
    %141 = arith.mulf %132, %138 : vector<8x32xf32>
    %142 = arith.addf %140, %141 : vector<8x32xf32>
    %143 = math.tanh %142 : vector<8x32xf32>
    %144 = arith.mulf %139, %143 : vector<8x32xf32>
    %c32_52 = arith.constant 32 : index
    %c0_53 = arith.constant 0 : index
    %145 = vector.load %arg4[%c32_52, %c0_53] : memref<64x32xf32, #tpu.memory_space<vmem>>, vector<8x32xf32>
    tpu.vector_store %arg4[%c32_52, %c0_53], %144 {strides = array<i32>} : memref<64x32xf32, #tpu.memory_space<vmem>>, vector<8x32xf32>,
    %146 = vector.extract_strided_slice %33 {offsets = [40, 0], sizes = [8, 128], strides = [1, 1]} : vector<64x128xf32> to vector<8x128xf32>
    %cst_54 = arith.constant dense<0.000000e+00> : vector<8x128xf32>
    %147 = tpu.matmul %144, %28, %cst_54 {dimension_numbers = #tpu.dot_dimension_numbers<[1], [0], [0], [1], [0, 0, 1, 1], [], []>} : vector<8x32xf32>, vector<32x128xf32>, vector<8x128xf32> -> vector<8x128xf32>
    %148 = arith.addf %146, %147 : vector<8x128xf32>
    %149 = arith.negf %148 : vector<8x128xf32>
    %150 = math.exp %149 : vector<8x128xf32>
    %cst_55 = arith.constant 1.000000e+00 : f32
    %151 = vector.broadcast %cst_55 : f32 to vector<8x128xf32>
    %152 = arith.addf %151, %150 : vector<8x128xf32>
    %153 = arith.divf %151, %152 : vector<8x128xf32>
    %154 = vector.extract_strided_slice %153 {offsets = [0, 0], sizes = [8, 32], strides = [1, 1]} : vector<8x128xf32> to vector<8x32xf32>
    %155 = vector.extract_strided_slice %153 {offsets = [0, 32], sizes = [8, 32], strides = [1, 1]} : vector<8x128xf32> to vector<8x32xf32>
    %156 = vector.extract_strided_slice %153 {offsets = [0, 64], sizes = [8, 32], strides = [1, 1]} : vector<8x128xf32> to vector<8x32xf32>
    %cst_56 = arith.constant 2.000000e+00 : f32
    %157 = vector.broadcast %cst_56 : f32 to vector<8x32xf32>
    %158 = arith.mulf %157, %156 : vector<8x32xf32>
    %cst_57 = arith.constant 1.000000e+00 : f32
    %159 = vector.broadcast %cst_57 : f32 to vector<8x32xf32>
    %160 = arith.subf %158, %159 : vector<8x32xf32>
    %161 = vector.extract_strided_slice %153 {offsets = [0, 96], sizes = [8, 32], strides = [1, 1]} : vector<8x128xf32> to vector<8x32xf32>
    %162 = arith.mulf %155, %142 : vector<8x32xf32>
    %163 = arith.mulf %154, %160 : vector<8x32xf32>
    %164 = arith.addf %162, %163 : vector<8x32xf32>
    %165 = math.tanh %164 : vector<8x32xf32>
    %166 = arith.mulf %161, %165 : vector<8x32xf32>
    %c40_58 = arith.constant 40 : index
    %c0_59 = arith.constant 0 : index
    %167 = vector.load %arg4[%c40_58, %c0_59] : memref<64x32xf32, #tpu.memory_space<vmem>>, vector<8x32xf32>
    tpu.vector_store %arg4[%c40_58, %c0_59], %166 {strides = array<i32>} : memref<64x32xf32, #tpu.memory_space<vmem>>, vector<8x32xf32>,
    %168 = vector.extract_strided_slice %33 {offsets = [48, 0], sizes = [8, 128], strides = [1, 1]} : vector<64x128xf32> to vector<8x128xf32>
    %cst_60 = arith.constant dense<0.000000e+00> : vector<8x128xf32>
    %169 = tpu.matmul %166, %28, %cst_60 {dimension_numbers = #tpu.dot_dimension_numbers<[1], [0], [0], [1], [0, 0, 1, 1], [], []>} : vector<8x32xf32>, vector<32x128xf32>, vector<8x128xf32> -> vector<8x128xf32>
    %170 = arith.addf %168, %169 : vector<8x128xf32>
    %171 = arith.negf %170 : vector<8x128xf32>
    %172 = math.exp %171 : vector<8x128xf32>
    %cst_61 = arith.constant 1.000000e+00 : f32
    %173 = vector.broadcast %cst_61 : f32 to vector<8x128xf32>
    %174 = arith.addf %173, %172 : vector<8x128xf32>
    %175 = arith.divf %173, %174 : vector<8x128xf32>
    %176 = vector.extract_strided_slice %175 {offsets = [0, 0], sizes = [8, 32], strides = [1, 1]} : vector<8x128xf32> to vector<8x32xf32>
    %177 = vector.extract_strided_slice %175 {offsets = [0, 32], sizes = [8, 32], strides = [1, 1]} : vector<8x128xf32> to vector<8x32xf32>
    %178 = vector.extract_strided_slice %175 {offsets = [0, 64], sizes = [8, 32], strides = [1, 1]} : vector<8x128xf32> to vector<8x32xf32>
    %cst_62 = arith.constant 2.000000e+00 : f32
    %179 = vector.broadcast %cst_62 : f32 to vector<8x32xf32>
    %180 = arith.mulf %179, %178 : vector<8x32xf32>
    %cst_63 = arith.constant 1.000000e+00 : f32
    %181 = vector.broadcast %cst_63 : f32 to vector<8x32xf32>
    %182 = arith.subf %180, %181 : vector<8x32xf32>
    %183 = vector.extract_strided_slice %175 {offsets = [0, 96], sizes = [8, 32], strides = [1, 1]} : vector<8x128xf32> to vector<8x32xf32>
    %184 = arith.mulf %177, %164 : vector<8x32xf32>
    %185 = arith.mulf %176, %182 : vector<8x32xf32>
    %186 = arith.addf %184, %185 : vector<8x32xf32>
    %187 = math.tanh %186 : vector<8x32xf32>
    %188 = arith.mulf %183, %187 : vector<8x32xf32>
    %c48_64 = arith.constant 48 : index
    %c0_65 = arith.constant 0 : index
    %189 = vector.load %arg4[%c48_64, %c0_65] : memref<64x32xf32, #tpu.memory_space<vmem>>, vector<8x32xf32>
    tpu.vector_store %arg4[%c48_64, %c0_65], %188 {strides = array<i32>} : memref<64x32xf32, #tpu.memory_space<vmem>>, vector<8x32xf32>,
    %190 = vector.extract_strided_slice %33 {offsets = [56, 0], sizes = [8, 128], strides = [1, 1]} : vector<64x128xf32> to vector<8x128xf32>
    %cst_66 = arith.constant dense<0.000000e+00> : vector<8x128xf32>
    %191 = tpu.matmul %188, %28, %cst_66 {dimension_numbers = #tpu.dot_dimension_numbers<[1], [0], [0], [1], [0, 0, 1, 1], [], []>} : vector<8x32xf32>, vector<32x128xf32>, vector<8x128xf32> -> vector<8x128xf32>
    %192 = arith.addf %190, %191 : vector<8x128xf32>
    %193 = arith.negf %192 : vector<8x128xf32>
    %194 = math.exp %193 : vector<8x128xf32>
    %cst_67 = arith.constant 1.000000e+00 : f32
    %195 = vector.broadcast %cst_67 : f32 to vector<8x128xf32>
    %196 = arith.addf %195, %194 : vector<8x128xf32>
    %197 = arith.divf %195, %196 : vector<8x128xf32>
    %198 = vector.extract_strided_slice %197 {offsets = [0, 0], sizes = [8, 32], strides = [1, 1]} : vector<8x128xf32> to vector<8x32xf32>
    %199 = vector.extract_strided_slice %197 {offsets = [0, 32], sizes = [8, 32], strides = [1, 1]} : vector<8x128xf32> to vector<8x32xf32>
    %200 = vector.extract_strided_slice %197 {offsets = [0, 64], sizes = [8, 32], strides = [1, 1]} : vector<8x128xf32> to vector<8x32xf32>
    %cst_68 = arith.constant 2.000000e+00 : f32
    %201 = vector.broadcast %cst_68 : f32 to vector<8x32xf32>
    %202 = arith.mulf %201, %200 : vector<8x32xf32>
    %cst_69 = arith.constant 1.000000e+00 : f32
    %203 = vector.broadcast %cst_69 : f32 to vector<8x32xf32>
    %204 = arith.subf %202, %203 : vector<8x32xf32>
    %205 = vector.extract_strided_slice %197 {offsets = [0, 96], sizes = [8, 32], strides = [1, 1]} : vector<8x128xf32> to vector<8x32xf32>
    %206 = arith.mulf %199, %186 : vector<8x32xf32>
    %207 = arith.mulf %198, %204 : vector<8x32xf32>
    %208 = arith.addf %206, %207 : vector<8x32xf32>
    %209 = math.tanh %208 : vector<8x32xf32>
    %210 = arith.mulf %205, %209 : vector<8x32xf32>
    %c56_70 = arith.constant 56 : index
    %c0_71 = arith.constant 0 : index
    %211 = vector.load %arg4[%c56_70, %c0_71] : memref<64x32xf32, #tpu.memory_space<vmem>>, vector<8x32xf32>
    tpu.vector_store %arg4[%c56_70, %c0_71], %210 {strides = array<i32>} : memref<64x32xf32, #tpu.memory_space<vmem>>, vector<8x32xf32>,
    %c48_72 = arith.constant 48 : index
    %c0_73 = arith.constant 0 : index
    %212 = vector.load %arg1[%c48_72, %c0_73] : memref<208x128xf32, #tpu.memory_space<vmem>>, vector<32x128xf32>
    %c80 = arith.constant 80 : index
    %c0_74 = arith.constant 0 : index
    %213 = vector.load %arg1[%c80, %c0_74] : memref<208x128xf32, #tpu.memory_space<vmem>>, vector<32x128xf32>
    %c112 = arith.constant 112 : index
    %c0_75 = arith.constant 0 : index
    %214 = vector.load %arg1[%c112, %c0_75] : memref<208x128xf32, #tpu.memory_space<vmem>>, vector<1x128xf32>
    %c0_76 = arith.constant 0 : index
    %c0_77 = arith.constant 0 : index
    %215 = vector.load %arg4[%c0_76, %c0_77] : memref<64x32xf32, #tpu.memory_space<vmem>>, vector<64x32xf32>
    %cst_78 = arith.constant dense<0.000000e+00> : vector<64x128xf32>
    %216 = tpu.matmul %215, %212, %cst_78 {dimension_numbers = #tpu.dot_dimension_numbers<[1], [0], [0], [1], [0, 0, 1, 1], [], []>} : vector<64x32xf32>, vector<32x128xf32>, vector<64x128xf32> -> vector<64x128xf32>
    %217 = vector.broadcast %214 : vector<1x128xf32> to vector<64x128xf32>
    %218 = arith.addf %216, %217 : vector<64x128xf32>
    %cst_79 = arith.constant 0.000000e+00 : f32
    %219 = vector.broadcast %cst_79 : f32 to vector<8x32xf32>
    %cst_80 = arith.constant 0.000000e+00 : f32
    %220 = vector.broadcast %cst_80 : f32 to vector<8x32xf32>
    %221 = vector.extract_strided_slice %218 {offsets = [0, 0], sizes = [8, 128], strides = [1, 1]} : vector<64x128xf32> to vector<8x128xf32>
    %cst_81 = arith.constant dense<0.000000e+00> : vector<8x128xf32>
    %222 = tpu.matmul %219, %213, %cst_81 {dimension_numbers = #tpu.dot_dimension_numbers<[1], [0], [0], [1], [0, 0, 1, 1], [], []>} : vector<8x32xf32>, vector<32x128xf32>, vector<8x128xf32> -> vector<8x128xf32>
    %223 = arith.addf %221, %222 : vector<8x128xf32>
    %224 = arith.negf %223 : vector<8x128xf32>
    %225 = math.exp %224 : vector<8x128xf32>
    %cst_82 = arith.constant 1.000000e+00 : f32
    %226 = vector.broadcast %cst_82 : f32 to vector<8x128xf32>
    %227 = arith.addf %226, %225 : vector<8x128xf32>
    %228 = arith.divf %226, %227 : vector<8x128xf32>
    %229 = vector.extract_strided_slice %228 {offsets = [0, 0], sizes = [8, 32], strides = [1, 1]} : vector<8x128xf32> to vector<8x32xf32>
    %230 = vector.extract_strided_slice %228 {offsets = [0, 32], sizes = [8, 32], strides = [1, 1]} : vector<8x128xf32> to vector<8x32xf32>
    %231 = vector.extract_strided_slice %228 {offsets = [0, 64], sizes = [8, 32], strides = [1, 1]} : vector<8x128xf32> to vector<8x32xf32>
    %cst_83 = arith.constant 2.000000e+00 : f32
    %232 = vector.broadcast %cst_83 : f32 to vector<8x32xf32>
    %233 = arith.mulf %232, %231 : vector<8x32xf32>
    %cst_84 = arith.constant 1.000000e+00 : f32
    %234 = vector.broadcast %cst_84 : f32 to vector<8x32xf32>
    %235 = arith.subf %233, %234 : vector<8x32xf32>
    %236 = vector.extract_strided_slice %228 {offsets = [0, 96], sizes = [8, 32], strides = [1, 1]} : vector<8x128xf32> to vector<8x32xf32>
    %237 = arith.mulf %230, %220 : vector<8x32xf32>
    %238 = arith.mulf %229, %235 : vector<8x32xf32>
    %239 = arith.addf %237, %238 : vector<8x32xf32>
    %240 = math.tanh %239 : vector<8x32xf32>
    %241 = arith.mulf %236, %240 : vector<8x32xf32>
    %c0_85 = arith.constant 0 : index
    %c0_86 = arith.constant 0 : index
    %242 = vector.load %arg5[%c0_85, %c0_86] : memref<64x32xf32, #tpu.memory_space<vmem>>, vector<8x32xf32>
    tpu.vector_store %arg5[%c0_85, %c0_86], %241 {strides = array<i32>} : memref<64x32xf32, #tpu.memory_space<vmem>>, vector<8x32xf32>,
    %243 = vector.extract_strided_slice %218 {offsets = [8, 0], sizes = [8, 128], strides = [1, 1]} : vector<64x128xf32> to vector<8x128xf32>
    %cst_87 = arith.constant dense<0.000000e+00> : vector<8x128xf32>
    %244 = tpu.matmul %241, %213, %cst_87 {dimension_numbers = #tpu.dot_dimension_numbers<[1], [0], [0], [1], [0, 0, 1, 1], [], []>} : vector<8x32xf32>, vector<32x128xf32>, vector<8x128xf32> -> vector<8x128xf32>
    %245 = arith.addf %243, %244 : vector<8x128xf32>
    %246 = arith.negf %245 : vector<8x128xf32>
    %247 = math.exp %246 : vector<8x128xf32>
    %cst_88 = arith.constant 1.000000e+00 : f32
    %248 = vector.broadcast %cst_88 : f32 to vector<8x128xf32>
    %249 = arith.addf %248, %247 : vector<8x128xf32>
    %250 = arith.divf %248, %249 : vector<8x128xf32>
    %251 = vector.extract_strided_slice %250 {offsets = [0, 0], sizes = [8, 32], strides = [1, 1]} : vector<8x128xf32> to vector<8x32xf32>
    %252 = vector.extract_strided_slice %250 {offsets = [0, 32], sizes = [8, 32], strides = [1, 1]} : vector<8x128xf32> to vector<8x32xf32>
    %253 = vector.extract_strided_slice %250 {offsets = [0, 64], sizes = [8, 32], strides = [1, 1]} : vector<8x128xf32> to vector<8x32xf32>
    %cst_89 = arith.constant 2.000000e+00 : f32
    %254 = vector.broadcast %cst_89 : f32 to vector<8x32xf32>
    %255 = arith.mulf %254, %253 : vector<8x32xf32>
    %cst_90 = arith.constant 1.000000e+00 : f32
    %256 = vector.broadcast %cst_90 : f32 to vector<8x32xf32>
    %257 = arith.subf %255, %256 : vector<8x32xf32>
    %258 = vector.extract_strided_slice %250 {offsets = [0, 96], sizes = [8, 32], strides = [1, 1]} : vector<8x128xf32> to vector<8x32xf32>
    %259 = arith.mulf %252, %239 : vector<8x32xf32>
    %260 = arith.mulf %251, %257 : vector<8x32xf32>
    %261 = arith.addf %259, %260 : vector<8x32xf32>
    %262 = math.tanh %261 : vector<8x32xf32>
    %263 = arith.mulf %258, %262 : vector<8x32xf32>
    %c8_91 = arith.constant 8 : index
    %c0_92 = arith.constant 0 : index
    %264 = vector.load %arg5[%c8_91, %c0_92] : memref<64x32xf32, #tpu.memory_space<vmem>>, vector<8x32xf32>
    tpu.vector_store %arg5[%c8_91, %c0_92], %263 {strides = array<i32>} : memref<64x32xf32, #tpu.memory_space<vmem>>, vector<8x32xf32>,
    %265 = vector.extract_strided_slice %218 {offsets = [16, 0], sizes = [8, 128], strides = [1, 1]} : vector<64x128xf32> to vector<8x128xf32>
    %cst_93 = arith.constant dense<0.000000e+00> : vector<8x128xf32>
    %266 = tpu.matmul %263, %213, %cst_93 {dimension_numbers = #tpu.dot_dimension_numbers<[1], [0], [0], [1], [0, 0, 1, 1], [], []>} : vector<8x32xf32>, vector<32x128xf32>, vector<8x128xf32> -> vector<8x128xf32>
    %267 = arith.addf %265, %266 : vector<8x128xf32>
    %268 = arith.negf %267 : vector<8x128xf32>
    %269 = math.exp %268 : vector<8x128xf32>
    %cst_94 = arith.constant 1.000000e+00 : f32
    %270 = vector.broadcast %cst_94 : f32 to vector<8x128xf32>
    %271 = arith.addf %270, %269 : vector<8x128xf32>
    %272 = arith.divf %270, %271 : vector<8x128xf32>
    %273 = vector.extract_strided_slice %272 {offsets = [0, 0], sizes = [8, 32], strides = [1, 1]} : vector<8x128xf32> to vector<8x32xf32>
    %274 = vector.extract_strided_slice %272 {offsets = [0, 32], sizes = [8, 32], strides = [1, 1]} : vector<8x128xf32> to vector<8x32xf32>
    %275 = vector.extract_strided_slice %272 {offsets = [0, 64], sizes = [8, 32], strides = [1, 1]} : vector<8x128xf32> to vector<8x32xf32>
    %cst_95 = arith.constant 2.000000e+00 : f32
    %276 = vector.broadcast %cst_95 : f32 to vector<8x32xf32>
    %277 = arith.mulf %276, %275 : vector<8x32xf32>
    %cst_96 = arith.constant 1.000000e+00 : f32
    %278 = vector.broadcast %cst_96 : f32 to vector<8x32xf32>
    %279 = arith.subf %277, %278 : vector<8x32xf32>
    %280 = vector.extract_strided_slice %272 {offsets = [0, 96], sizes = [8, 32], strides = [1, 1]} : vector<8x128xf32> to vector<8x32xf32>
    %281 = arith.mulf %274, %261 : vector<8x32xf32>
    %282 = arith.mulf %273, %279 : vector<8x32xf32>
    %283 = arith.addf %281, %282 : vector<8x32xf32>
    %284 = math.tanh %283 : vector<8x32xf32>
    %285 = arith.mulf %280, %284 : vector<8x32xf32>
    %c16_97 = arith.constant 16 : index
    %c0_98 = arith.constant 0 : index
    %286 = vector.load %arg5[%c16_97, %c0_98] : memref<64x32xf32, #tpu.memory_space<vmem>>, vector<8x32xf32>
    tpu.vector_store %arg5[%c16_97, %c0_98], %285 {strides = array<i32>} : memref<64x32xf32, #tpu.memory_space<vmem>>, vector<8x32xf32>,
    %287 = vector.extract_strided_slice %218 {offsets = [24, 0], sizes = [8, 128], strides = [1, 1]} : vector<64x128xf32> to vector<8x128xf32>
    %cst_99 = arith.constant dense<0.000000e+00> : vector<8x128xf32>
    %288 = tpu.matmul %285, %213, %cst_99 {dimension_numbers = #tpu.dot_dimension_numbers<[1], [0], [0], [1], [0, 0, 1, 1], [], []>} : vector<8x32xf32>, vector<32x128xf32>, vector<8x128xf32> -> vector<8x128xf32>
    %289 = arith.addf %287, %288 : vector<8x128xf32>
    %290 = arith.negf %289 : vector<8x128xf32>
    %291 = math.exp %290 : vector<8x128xf32>
    %cst_100 = arith.constant 1.000000e+00 : f32
    %292 = vector.broadcast %cst_100 : f32 to vector<8x128xf32>
    %293 = arith.addf %292, %291 : vector<8x128xf32>
    %294 = arith.divf %292, %293 : vector<8x128xf32>
    %295 = vector.extract_strided_slice %294 {offsets = [0, 0], sizes = [8, 32], strides = [1, 1]} : vector<8x128xf32> to vector<8x32xf32>
    %296 = vector.extract_strided_slice %294 {offsets = [0, 32], sizes = [8, 32], strides = [1, 1]} : vector<8x128xf32> to vector<8x32xf32>
    %297 = vector.extract_strided_slice %294 {offsets = [0, 64], sizes = [8, 32], strides = [1, 1]} : vector<8x128xf32> to vector<8x32xf32>
    %cst_101 = arith.constant 2.000000e+00 : f32
    %298 = vector.broadcast %cst_101 : f32 to vector<8x32xf32>
    %299 = arith.mulf %298, %297 : vector<8x32xf32>
    %cst_102 = arith.constant 1.000000e+00 : f32
    %300 = vector.broadcast %cst_102 : f32 to vector<8x32xf32>
    %301 = arith.subf %299, %300 : vector<8x32xf32>
    %302 = vector.extract_strided_slice %294 {offsets = [0, 96], sizes = [8, 32], strides = [1, 1]} : vector<8x128xf32> to vector<8x32xf32>
    %303 = arith.mulf %296, %283 : vector<8x32xf32>
    %304 = arith.mulf %295, %301 : vector<8x32xf32>
    %305 = arith.addf %303, %304 : vector<8x32xf32>
    %306 = math.tanh %305 : vector<8x32xf32>
    %307 = arith.mulf %302, %306 : vector<8x32xf32>
    %c24_103 = arith.constant 24 : index
    %c0_104 = arith.constant 0 : index
    %308 = vector.load %arg5[%c24_103, %c0_104] : memref<64x32xf32, #tpu.memory_space<vmem>>, vector<8x32xf32>
    tpu.vector_store %arg5[%c24_103, %c0_104], %307 {strides = array<i32>} : memref<64x32xf32, #tpu.memory_space<vmem>>, vector<8x32xf32>,
    %309 = vector.extract_strided_slice %218 {offsets = [32, 0], sizes = [8, 128], strides = [1, 1]} : vector<64x128xf32> to vector<8x128xf32>
    %cst_105 = arith.constant dense<0.000000e+00> : vector<8x128xf32>
    %310 = tpu.matmul %307, %213, %cst_105 {dimension_numbers = #tpu.dot_dimension_numbers<[1], [0], [0], [1], [0, 0, 1, 1], [], []>} : vector<8x32xf32>, vector<32x128xf32>, vector<8x128xf32> -> vector<8x128xf32>
    %311 = arith.addf %309, %310 : vector<8x128xf32>
    %312 = arith.negf %311 : vector<8x128xf32>
    %313 = math.exp %312 : vector<8x128xf32>
    %cst_106 = arith.constant 1.000000e+00 : f32
    %314 = vector.broadcast %cst_106 : f32 to vector<8x128xf32>
    %315 = arith.addf %314, %313 : vector<8x128xf32>
    %316 = arith.divf %314, %315 : vector<8x128xf32>
    %317 = vector.extract_strided_slice %316 {offsets = [0, 0], sizes = [8, 32], strides = [1, 1]} : vector<8x128xf32> to vector<8x32xf32>
    %318 = vector.extract_strided_slice %316 {offsets = [0, 32], sizes = [8, 32], strides = [1, 1]} : vector<8x128xf32> to vector<8x32xf32>
    %319 = vector.extract_strided_slice %316 {offsets = [0, 64], sizes = [8, 32], strides = [1, 1]} : vector<8x128xf32> to vector<8x32xf32>
    %cst_107 = arith.constant 2.000000e+00 : f32
    %320 = vector.broadcast %cst_107 : f32 to vector<8x32xf32>
    %321 = arith.mulf %320, %319 : vector<8x32xf32>
    %cst_108 = arith.constant 1.000000e+00 : f32
    %322 = vector.broadcast %cst_108 : f32 to vector<8x32xf32>
    %323 = arith.subf %321, %322 : vector<8x32xf32>
    %324 = vector.extract_strided_slice %316 {offsets = [0, 96], sizes = [8, 32], strides = [1, 1]} : vector<8x128xf32> to vector<8x32xf32>
    %325 = arith.mulf %318, %305 : vector<8x32xf32>
    %326 = arith.mulf %317, %323 : vector<8x32xf32>
    %327 = arith.addf %325, %326 : vector<8x32xf32>
    %328 = math.tanh %327 : vector<8x32xf32>
    %329 = arith.mulf %324, %328 : vector<8x32xf32>
    %c32_109 = arith.constant 32 : index
    %c0_110 = arith.constant 0 : index
    %330 = vector.load %arg5[%c32_109, %c0_110] : memref<64x32xf32, #tpu.memory_space<vmem>>, vector<8x32xf32>
    tpu.vector_store %arg5[%c32_109, %c0_110], %329 {strides = array<i32>} : memref<64x32xf32, #tpu.memory_space<vmem>>, vector<8x32xf32>,
    %331 = vector.extract_strided_slice %218 {offsets = [40, 0], sizes = [8, 128], strides = [1, 1]} : vector<64x128xf32> to vector<8x128xf32>
    %cst_111 = arith.constant dense<0.000000e+00> : vector<8x128xf32>
    %332 = tpu.matmul %329, %213, %cst_111 {dimension_numbers = #tpu.dot_dimension_numbers<[1], [0], [0], [1], [0, 0, 1, 1], [], []>} : vector<8x32xf32>, vector<32x128xf32>, vector<8x128xf32> -> vector<8x128xf32>
    %333 = arith.addf %331, %332 : vector<8x128xf32>
    %334 = arith.negf %333 : vector<8x128xf32>
    %335 = math.exp %334 : vector<8x128xf32>
    %cst_112 = arith.constant 1.000000e+00 : f32
    %336 = vector.broadcast %cst_112 : f32 to vector<8x128xf32>
    %337 = arith.addf %336, %335 : vector<8x128xf32>
    %338 = arith.divf %336, %337 : vector<8x128xf32>
    %339 = vector.extract_strided_slice %338 {offsets = [0, 0], sizes = [8, 32], strides = [1, 1]} : vector<8x128xf32> to vector<8x32xf32>
    %340 = vector.extract_strided_slice %338 {offsets = [0, 32], sizes = [8, 32], strides = [1, 1]} : vector<8x128xf32> to vector<8x32xf32>
    %341 = vector.extract_strided_slice %338 {offsets = [0, 64], sizes = [8, 32], strides = [1, 1]} : vector<8x128xf32> to vector<8x32xf32>
    %cst_113 = arith.constant 2.000000e+00 : f32
    %342 = vector.broadcast %cst_113 : f32 to vector<8x32xf32>
    %343 = arith.mulf %342, %341 : vector<8x32xf32>
    %cst_114 = arith.constant 1.000000e+00 : f32
    %344 = vector.broadcast %cst_114 : f32 to vector<8x32xf32>
    %345 = arith.subf %343, %344 : vector<8x32xf32>
    %346 = vector.extract_strided_slice %338 {offsets = [0, 96], sizes = [8, 32], strides = [1, 1]} : vector<8x128xf32> to vector<8x32xf32>
    %347 = arith.mulf %340, %327 : vector<8x32xf32>
    %348 = arith.mulf %339, %345 : vector<8x32xf32>
    %349 = arith.addf %347, %348 : vector<8x32xf32>
    %350 = math.tanh %349 : vector<8x32xf32>
    %351 = arith.mulf %346, %350 : vector<8x32xf32>
    %c40_115 = arith.constant 40 : index
    %c0_116 = arith.constant 0 : index
    %352 = vector.load %arg5[%c40_115, %c0_116] : memref<64x32xf32, #tpu.memory_space<vmem>>, vector<8x32xf32>
    tpu.vector_store %arg5[%c40_115, %c0_116], %351 {strides = array<i32>} : memref<64x32xf32, #tpu.memory_space<vmem>>, vector<8x32xf32>,
    %353 = vector.extract_strided_slice %218 {offsets = [48, 0], sizes = [8, 128], strides = [1, 1]} : vector<64x128xf32> to vector<8x128xf32>
    %cst_117 = arith.constant dense<0.000000e+00> : vector<8x128xf32>
    %354 = tpu.matmul %351, %213, %cst_117 {dimension_numbers = #tpu.dot_dimension_numbers<[1], [0], [0], [1], [0, 0, 1, 1], [], []>} : vector<8x32xf32>, vector<32x128xf32>, vector<8x128xf32> -> vector<8x128xf32>
    %355 = arith.addf %353, %354 : vector<8x128xf32>
    %356 = arith.negf %355 : vector<8x128xf32>
    %357 = math.exp %356 : vector<8x128xf32>
    %cst_118 = arith.constant 1.000000e+00 : f32
    %358 = vector.broadcast %cst_118 : f32 to vector<8x128xf32>
    %359 = arith.addf %358, %357 : vector<8x128xf32>
    %360 = arith.divf %358, %359 : vector<8x128xf32>
    %361 = vector.extract_strided_slice %360 {offsets = [0, 0], sizes = [8, 32], strides = [1, 1]} : vector<8x128xf32> to vector<8x32xf32>
    %362 = vector.extract_strided_slice %360 {offsets = [0, 32], sizes = [8, 32], strides = [1, 1]} : vector<8x128xf32> to vector<8x32xf32>
    %363 = vector.extract_strided_slice %360 {offsets = [0, 64], sizes = [8, 32], strides = [1, 1]} : vector<8x128xf32> to vector<8x32xf32>
    %cst_119 = arith.constant 2.000000e+00 : f32
    %364 = vector.broadcast %cst_119 : f32 to vector<8x32xf32>
    %365 = arith.mulf %364, %363 : vector<8x32xf32>
    %cst_120 = arith.constant 1.000000e+00 : f32
    %366 = vector.broadcast %cst_120 : f32 to vector<8x32xf32>
    %367 = arith.subf %365, %366 : vector<8x32xf32>
    %368 = vector.extract_strided_slice %360 {offsets = [0, 96], sizes = [8, 32], strides = [1, 1]} : vector<8x128xf32> to vector<8x32xf32>
    %369 = arith.mulf %362, %349 : vector<8x32xf32>
    %370 = arith.mulf %361, %367 : vector<8x32xf32>
    %371 = arith.addf %369, %370 : vector<8x32xf32>
    %372 = math.tanh %371 : vector<8x32xf32>
    %373 = arith.mulf %368, %372 : vector<8x32xf32>
    %c48_121 = arith.constant 48 : index
    %c0_122 = arith.constant 0 : index
    %374 = vector.load %arg5[%c48_121, %c0_122] : memref<64x32xf32, #tpu.memory_space<vmem>>, vector<8x32xf32>
    tpu.vector_store %arg5[%c48_121, %c0_122], %373 {strides = array<i32>} : memref<64x32xf32, #tpu.memory_space<vmem>>, vector<8x32xf32>,
    %375 = vector.extract_strided_slice %218 {offsets = [56, 0], sizes = [8, 128], strides = [1, 1]} : vector<64x128xf32> to vector<8x128xf32>
    %cst_123 = arith.constant dense<0.000000e+00> : vector<8x128xf32>
    %376 = tpu.matmul %373, %213, %cst_123 {dimension_numbers = #tpu.dot_dimension_numbers<[1], [0], [0], [1], [0, 0, 1, 1], [], []>} : vector<8x32xf32>, vector<32x128xf32>, vector<8x128xf32> -> vector<8x128xf32>
    %377 = arith.addf %375, %376 : vector<8x128xf32>
    %378 = arith.negf %377 : vector<8x128xf32>
    %379 = math.exp %378 : vector<8x128xf32>
    %cst_124 = arith.constant 1.000000e+00 : f32
    %380 = vector.broadcast %cst_124 : f32 to vector<8x128xf32>
    %381 = arith.addf %380, %379 : vector<8x128xf32>
    %382 = arith.divf %380, %381 : vector<8x128xf32>
    %383 = vector.extract_strided_slice %382 {offsets = [0, 0], sizes = [8, 32], strides = [1, 1]} : vector<8x128xf32> to vector<8x32xf32>
    %384 = vector.extract_strided_slice %382 {offsets = [0, 32], sizes = [8, 32], strides = [1, 1]} : vector<8x128xf32> to vector<8x32xf32>
    %385 = vector.extract_strided_slice %382 {offsets = [0, 64], sizes = [8, 32], strides = [1, 1]} : vector<8x128xf32> to vector<8x32xf32>
    %cst_125 = arith.constant 2.000000e+00 : f32
    %386 = vector.broadcast %cst_125 : f32 to vector<8x32xf32>
    %387 = arith.mulf %386, %385 : vector<8x32xf32>
    %cst_126 = arith.constant 1.000000e+00 : f32
    %388 = vector.broadcast %cst_126 : f32 to vector<8x32xf32>
    %389 = arith.subf %387, %388 : vector<8x32xf32>
    %390 = vector.extract_strided_slice %382 {offsets = [0, 96], sizes = [8, 32], strides = [1, 1]} : vector<8x128xf32> to vector<8x32xf32>
    %391 = arith.mulf %384, %371 : vector<8x32xf32>
    %392 = arith.mulf %383, %389 : vector<8x32xf32>
    %393 = arith.addf %391, %392 : vector<8x32xf32>
    %394 = math.tanh %393 : vector<8x32xf32>
    %395 = arith.mulf %390, %394 : vector<8x32xf32>
    %c56_127 = arith.constant 56 : index
    %c0_128 = arith.constant 0 : index
    %396 = vector.load %arg5[%c56_127, %c0_128] : memref<64x32xf32, #tpu.memory_space<vmem>>, vector<8x32xf32>
    tpu.vector_store %arg5[%c56_127, %c0_128], %395 {strides = array<i32>} : memref<64x32xf32, #tpu.memory_space<vmem>>, vector<8x32xf32>,
    %c120 = arith.constant 120 : index
    %c0_129 = arith.constant 0 : index
    %397 = vector.load %arg1[%c120, %c0_129] : memref<208x128xf32, #tpu.memory_space<vmem>>, vector<32x32xf32>
    %c152 = arith.constant 152 : index
    %c0_130 = arith.constant 0 : index
    %398 = vector.load %arg1[%c152, %c0_130] : memref<208x128xf32, #tpu.memory_space<vmem>>, vector<8x32xf32>
    %c160 = arith.constant 160 : index
    %c0_131 = arith.constant 0 : index
    %399 = vector.load %arg1[%c160, %c0_131] : memref<208x128xf32, #tpu.memory_space<vmem>>, vector<1x32xf32>
    %c0_132 = arith.constant 0 : index
    %c0_133 = arith.constant 0 : index
    %400 = vector.load %arg5[%c0_132, %c0_133] : memref<64x32xf32, #tpu.memory_space<vmem>>, vector<64x32xf32>
    %cst_134 = arith.constant dense<0.000000e+00> : vector<64x32xf32>
    %401 = tpu.matmul %400, %397, %cst_134 {dimension_numbers = #tpu.dot_dimension_numbers<[1], [0], [0], [1], [0, 0, 1, 1], [], []>} : vector<64x32xf32>, vector<32x32xf32>, vector<64x32xf32> -> vector<64x32xf32>
    %402 = vector.broadcast %399 : vector<1x32xf32> to vector<64x32xf32>
    %403 = arith.addf %401, %402 : vector<64x32xf32>
    %cst_135 = arith.constant 0.000000e+00 : f32
    %404 = vector.broadcast %cst_135 : f32 to vector<8x8xf32>
    %cst_136 = arith.constant 0.000000e+00 : f32
    %405 = vector.broadcast %cst_136 : f32 to vector<8x8xf32>
    %406 = vector.extract_strided_slice %403 {offsets = [0, 0], sizes = [8, 32], strides = [1, 1]} : vector<64x32xf32> to vector<8x32xf32>
    %cst_137 = arith.constant dense<0.000000e+00> : vector<8x32xf32>
    %407 = tpu.matmul %404, %398, %cst_137 {dimension_numbers = #tpu.dot_dimension_numbers<[1], [0], [0], [1], [0, 0, 1, 1], [], []>} : vector<8x8xf32>, vector<8x32xf32>, vector<8x32xf32> -> vector<8x32xf32>
    %408 = arith.addf %406, %407 : vector<8x32xf32>
    %409 = arith.negf %408 : vector<8x32xf32>
    %410 = math.exp %409 : vector<8x32xf32>
    %cst_138 = arith.constant 1.000000e+00 : f32
    %411 = vector.broadcast %cst_138 : f32 to vector<8x32xf32>
    %412 = arith.addf %411, %410 : vector<8x32xf32>
    %413 = arith.divf %411, %412 : vector<8x32xf32>
    %414 = vector.extract_strided_slice %413 {offsets = [0, 0], sizes = [8, 8], strides = [1, 1]} : vector<8x32xf32> to vector<8x8xf32>
    %415 = vector.extract_strided_slice %413 {offsets = [0, 8], sizes = [8, 8], strides = [1, 1]} : vector<8x32xf32> to vector<8x8xf32>
    %416 = vector.extract_strided_slice %413 {offsets = [0, 16], sizes = [8, 8], strides = [1, 1]} : vector<8x32xf32> to vector<8x8xf32>
    %cst_139 = arith.constant 2.000000e+00 : f32
    %417 = vector.broadcast %cst_139 : f32 to vector<8x8xf32>
    %418 = arith.mulf %417, %416 : vector<8x8xf32>
    %cst_140 = arith.constant 1.000000e+00 : f32
    %419 = vector.broadcast %cst_140 : f32 to vector<8x8xf32>
    %420 = arith.subf %418, %419 : vector<8x8xf32>
    %421 = vector.extract_strided_slice %413 {offsets = [0, 24], sizes = [8, 8], strides = [1, 1]} : vector<8x32xf32> to vector<8x8xf32>
    %422 = arith.mulf %415, %405 : vector<8x8xf32>
    %423 = arith.mulf %414, %420 : vector<8x8xf32>
    %424 = arith.addf %422, %423 : vector<8x8xf32>
    %425 = math.tanh %424 : vector<8x8xf32>
    %426 = arith.mulf %421, %425 : vector<8x8xf32>
    %c0_141 = arith.constant 0 : index
    %c0_142 = arith.constant 0 : index
    %427 = vector.load %arg6[%c0_141, %c0_142] : memref<64x8xf32, #tpu.memory_space<vmem>>, vector<8x8xf32>
    tpu.vector_store %arg6[%c0_141, %c0_142], %426 {strides = array<i32>} : memref<64x8xf32, #tpu.memory_space<vmem>>, vector<8x8xf32>,
    %428 = vector.extract_strided_slice %403 {offsets = [8, 0], sizes = [8, 32], strides = [1, 1]} : vector<64x32xf32> to vector<8x32xf32>
    %cst_143 = arith.constant dense<0.000000e+00> : vector<8x32xf32>
    %429 = tpu.matmul %426, %398, %cst_143 {dimension_numbers = #tpu.dot_dimension_numbers<[1], [0], [0], [1], [0, 0, 1, 1], [], []>} : vector<8x8xf32>, vector<8x32xf32>, vector<8x32xf32> -> vector<8x32xf32>
    %430 = arith.addf %428, %429 : vector<8x32xf32>
    %431 = arith.negf %430 : vector<8x32xf32>
    %432 = math.exp %431 : vector<8x32xf32>
    %cst_144 = arith.constant 1.000000e+00 : f32
    %433 = vector.broadcast %cst_144 : f32 to vector<8x32xf32>
    %434 = arith.addf %433, %432 : vector<8x32xf32>
    %435 = arith.divf %433, %434 : vector<8x32xf32>
    %436 = vector.extract_strided_slice %435 {offsets = [0, 0], sizes = [8, 8], strides = [1, 1]} : vector<8x32xf32> to vector<8x8xf32>
    %437 = vector.extract_strided_slice %435 {offsets = [0, 8], sizes = [8, 8], strides = [1, 1]} : vector<8x32xf32> to vector<8x8xf32>
    %438 = vector.extract_strided_slice %435 {offsets = [0, 16], sizes = [8, 8], strides = [1, 1]} : vector<8x32xf32> to vector<8x8xf32>
    %cst_145 = arith.constant 2.000000e+00 : f32
    %439 = vector.broadcast %cst_145 : f32 to vector<8x8xf32>
    %440 = arith.mulf %439, %438 : vector<8x8xf32>
    %cst_146 = arith.constant 1.000000e+00 : f32
    %441 = vector.broadcast %cst_146 : f32 to vector<8x8xf32>
    %442 = arith.subf %440, %441 : vector<8x8xf32>
    %443 = vector.extract_strided_slice %435 {offsets = [0, 24], sizes = [8, 8], strides = [1, 1]} : vector<8x32xf32> to vector<8x8xf32>
    %444 = arith.mulf %437, %424 : vector<8x8xf32>
    %445 = arith.mulf %436, %442 : vector<8x8xf32>
    %446 = arith.addf %444, %445 : vector<8x8xf32>
    %447 = math.tanh %446 : vector<8x8xf32>
    %448 = arith.mulf %443, %447 : vector<8x8xf32>
    %c8_147 = arith.constant 8 : index
    %c0_148 = arith.constant 0 : index
    %449 = vector.load %arg6[%c8_147, %c0_148] : memref<64x8xf32, #tpu.memory_space<vmem>>, vector<8x8xf32>
    tpu.vector_store %arg6[%c8_147, %c0_148], %448 {strides = array<i32>} : memref<64x8xf32, #tpu.memory_space<vmem>>, vector<8x8xf32>,
    %450 = vector.extract_strided_slice %403 {offsets = [16, 0], sizes = [8, 32], strides = [1, 1]} : vector<64x32xf32> to vector<8x32xf32>
    %cst_149 = arith.constant dense<0.000000e+00> : vector<8x32xf32>
    %451 = tpu.matmul %448, %398, %cst_149 {dimension_numbers = #tpu.dot_dimension_numbers<[1], [0], [0], [1], [0, 0, 1, 1], [], []>} : vector<8x8xf32>, vector<8x32xf32>, vector<8x32xf32> -> vector<8x32xf32>
    %452 = arith.addf %450, %451 : vector<8x32xf32>
    %453 = arith.negf %452 : vector<8x32xf32>
    %454 = math.exp %453 : vector<8x32xf32>
    %cst_150 = arith.constant 1.000000e+00 : f32
    %455 = vector.broadcast %cst_150 : f32 to vector<8x32xf32>
    %456 = arith.addf %455, %454 : vector<8x32xf32>
    %457 = arith.divf %455, %456 : vector<8x32xf32>
    %458 = vector.extract_strided_slice %457 {offsets = [0, 0], sizes = [8, 8], strides = [1, 1]} : vector<8x32xf32> to vector<8x8xf32>
    %459 = vector.extract_strided_slice %457 {offsets = [0, 8], sizes = [8, 8], strides = [1, 1]} : vector<8x32xf32> to vector<8x8xf32>
    %460 = vector.extract_strided_slice %457 {offsets = [0, 16], sizes = [8, 8], strides = [1, 1]} : vector<8x32xf32> to vector<8x8xf32>
    %cst_151 = arith.constant 2.000000e+00 : f32
    %461 = vector.broadcast %cst_151 : f32 to vector<8x8xf32>
    %462 = arith.mulf %461, %460 : vector<8x8xf32>
    %cst_152 = arith.constant 1.000000e+00 : f32
    %463 = vector.broadcast %cst_152 : f32 to vector<8x8xf32>
    %464 = arith.subf %462, %463 : vector<8x8xf32>
    %465 = vector.extract_strided_slice %457 {offsets = [0, 24], sizes = [8, 8], strides = [1, 1]} : vector<8x32xf32> to vector<8x8xf32>
    %466 = arith.mulf %459, %446 : vector<8x8xf32>
    %467 = arith.mulf %458, %464 : vector<8x8xf32>
    %468 = arith.addf %466, %467 : vector<8x8xf32>
    %469 = math.tanh %468 : vector<8x8xf32>
    %470 = arith.mulf %465, %469 : vector<8x8xf32>
    %c16_153 = arith.constant 16 : index
    %c0_154 = arith.constant 0 : index
    %471 = vector.load %arg6[%c16_153, %c0_154] : memref<64x8xf32, #tpu.memory_space<vmem>>, vector<8x8xf32>
    tpu.vector_store %arg6[%c16_153, %c0_154], %470 {strides = array<i32>} : memref<64x8xf32, #tpu.memory_space<vmem>>, vector<8x8xf32>,
    %472 = vector.extract_strided_slice %403 {offsets = [24, 0], sizes = [8, 32], strides = [1, 1]} : vector<64x32xf32> to vector<8x32xf32>
    %cst_155 = arith.constant dense<0.000000e+00> : vector<8x32xf32>
    %473 = tpu.matmul %470, %398, %cst_155 {dimension_numbers = #tpu.dot_dimension_numbers<[1], [0], [0], [1], [0, 0, 1, 1], [], []>} : vector<8x8xf32>, vector<8x32xf32>, vector<8x32xf32> -> vector<8x32xf32>
    %474 = arith.addf %472, %473 : vector<8x32xf32>
    %475 = arith.negf %474 : vector<8x32xf32>
    %476 = math.exp %475 : vector<8x32xf32>
    %cst_156 = arith.constant 1.000000e+00 : f32
    %477 = vector.broadcast %cst_156 : f32 to vector<8x32xf32>
    %478 = arith.addf %477, %476 : vector<8x32xf32>
    %479 = arith.divf %477, %478 : vector<8x32xf32>
    %480 = vector.extract_strided_slice %479 {offsets = [0, 0], sizes = [8, 8], strides = [1, 1]} : vector<8x32xf32> to vector<8x8xf32>
    %481 = vector.extract_strided_slice %479 {offsets = [0, 8], sizes = [8, 8], strides = [1, 1]} : vector<8x32xf32> to vector<8x8xf32>
    %482 = vector.extract_strided_slice %479 {offsets = [0, 16], sizes = [8, 8], strides = [1, 1]} : vector<8x32xf32> to vector<8x8xf32>
    %cst_157 = arith.constant 2.000000e+00 : f32
    %483 = vector.broadcast %cst_157 : f32 to vector<8x8xf32>
    %484 = arith.mulf %483, %482 : vector<8x8xf32>
    %cst_158 = arith.constant 1.000000e+00 : f32
    %485 = vector.broadcast %cst_158 : f32 to vector<8x8xf32>
    %486 = arith.subf %484, %485 : vector<8x8xf32>
    %487 = vector.extract_strided_slice %479 {offsets = [0, 24], sizes = [8, 8], strides = [1, 1]} : vector<8x32xf32> to vector<8x8xf32>
    %488 = arith.mulf %481, %468 : vector<8x8xf32>
    %489 = arith.mulf %480, %486 : vector<8x8xf32>
    %490 = arith.addf %488, %489 : vector<8x8xf32>
    %491 = math.tanh %490 : vector<8x8xf32>
    %492 = arith.mulf %487, %491 : vector<8x8xf32>
    %c24_159 = arith.constant 24 : index
    %c0_160 = arith.constant 0 : index
    %493 = vector.load %arg6[%c24_159, %c0_160] : memref<64x8xf32, #tpu.memory_space<vmem>>, vector<8x8xf32>
    tpu.vector_store %arg6[%c24_159, %c0_160], %492 {strides = array<i32>} : memref<64x8xf32, #tpu.memory_space<vmem>>, vector<8x8xf32>,
    %494 = vector.extract_strided_slice %403 {offsets = [32, 0], sizes = [8, 32], strides = [1, 1]} : vector<64x32xf32> to vector<8x32xf32>
    %cst_161 = arith.constant dense<0.000000e+00> : vector<8x32xf32>
    %495 = tpu.matmul %492, %398, %cst_161 {dimension_numbers = #tpu.dot_dimension_numbers<[1], [0], [0], [1], [0, 0, 1, 1], [], []>} : vector<8x8xf32>, vector<8x32xf32>, vector<8x32xf32> -> vector<8x32xf32>
    %496 = arith.addf %494, %495 : vector<8x32xf32>
    %497 = arith.negf %496 : vector<8x32xf32>
    %498 = math.exp %497 : vector<8x32xf32>
    %cst_162 = arith.constant 1.000000e+00 : f32
    %499 = vector.broadcast %cst_162 : f32 to vector<8x32xf32>
    %500 = arith.addf %499, %498 : vector<8x32xf32>
    %501 = arith.divf %499, %500 : vector<8x32xf32>
    %502 = vector.extract_strided_slice %501 {offsets = [0, 0], sizes = [8, 8], strides = [1, 1]} : vector<8x32xf32> to vector<8x8xf32>
    %503 = vector.extract_strided_slice %501 {offsets = [0, 8], sizes = [8, 8], strides = [1, 1]} : vector<8x32xf32> to vector<8x8xf32>
    %504 = vector.extract_strided_slice %501 {offsets = [0, 16], sizes = [8, 8], strides = [1, 1]} : vector<8x32xf32> to vector<8x8xf32>
    %cst_163 = arith.constant 2.000000e+00 : f32
    %505 = vector.broadcast %cst_163 : f32 to vector<8x8xf32>
    %506 = arith.mulf %505, %504 : vector<8x8xf32>
    %cst_164 = arith.constant 1.000000e+00 : f32
    %507 = vector.broadcast %cst_164 : f32 to vector<8x8xf32>
    %508 = arith.subf %506, %507 : vector<8x8xf32>
    %509 = vector.extract_strided_slice %501 {offsets = [0, 24], sizes = [8, 8], strides = [1, 1]} : vector<8x32xf32> to vector<8x8xf32>
    %510 = arith.mulf %503, %490 : vector<8x8xf32>
    %511 = arith.mulf %502, %508 : vector<8x8xf32>
    %512 = arith.addf %510, %511 : vector<8x8xf32>
    %513 = math.tanh %512 : vector<8x8xf32>
    %514 = arith.mulf %509, %513 : vector<8x8xf32>
    %c32_165 = arith.constant 32 : index
    %c0_166 = arith.constant 0 : index
    %515 = vector.load %arg6[%c32_165, %c0_166] : memref<64x8xf32, #tpu.memory_space<vmem>>, vector<8x8xf32>
    tpu.vector_store %arg6[%c32_165, %c0_166], %514 {strides = array<i32>} : memref<64x8xf32, #tpu.memory_space<vmem>>, vector<8x8xf32>,
    %516 = vector.extract_strided_slice %403 {offsets = [40, 0], sizes = [8, 32], strides = [1, 1]} : vector<64x32xf32> to vector<8x32xf32>
    %cst_167 = arith.constant dense<0.000000e+00> : vector<8x32xf32>
    %517 = tpu.matmul %514, %398, %cst_167 {dimension_numbers = #tpu.dot_dimension_numbers<[1], [0], [0], [1], [0, 0, 1, 1], [], []>} : vector<8x8xf32>, vector<8x32xf32>, vector<8x32xf32> -> vector<8x32xf32>
    %518 = arith.addf %516, %517 : vector<8x32xf32>
    %519 = arith.negf %518 : vector<8x32xf32>
    %520 = math.exp %519 : vector<8x32xf32>
    %cst_168 = arith.constant 1.000000e+00 : f32
    %521 = vector.broadcast %cst_168 : f32 to vector<8x32xf32>
    %522 = arith.addf %521, %520 : vector<8x32xf32>
    %523 = arith.divf %521, %522 : vector<8x32xf32>
    %524 = vector.extract_strided_slice %523 {offsets = [0, 0], sizes = [8, 8], strides = [1, 1]} : vector<8x32xf32> to vector<8x8xf32>
    %525 = vector.extract_strided_slice %523 {offsets = [0, 8], sizes = [8, 8], strides = [1, 1]} : vector<8x32xf32> to vector<8x8xf32>
    %526 = vector.extract_strided_slice %523 {offsets = [0, 16], sizes = [8, 8], strides = [1, 1]} : vector<8x32xf32> to vector<8x8xf32>
    %cst_169 = arith.constant 2.000000e+00 : f32
    %527 = vector.broadcast %cst_169 : f32 to vector<8x8xf32>
    %528 = arith.mulf %527, %526 : vector<8x8xf32>
    %cst_170 = arith.constant 1.000000e+00 : f32
    %529 = vector.broadcast %cst_170 : f32 to vector<8x8xf32>
    %530 = arith.subf %528, %529 : vector<8x8xf32>
    %531 = vector.extract_strided_slice %523 {offsets = [0, 24], sizes = [8, 8], strides = [1, 1]} : vector<8x32xf32> to vector<8x8xf32>
    %532 = arith.mulf %525, %512 : vector<8x8xf32>
    %533 = arith.mulf %524, %530 : vector<8x8xf32>
    %534 = arith.addf %532, %533 : vector<8x8xf32>
    %535 = math.tanh %534 : vector<8x8xf32>
    %536 = arith.mulf %531, %535 : vector<8x8xf32>
    %c40_171 = arith.constant 40 : index
    %c0_172 = arith.constant 0 : index
    %537 = vector.load %arg6[%c40_171, %c0_172] : memref<64x8xf32, #tpu.memory_space<vmem>>, vector<8x8xf32>
    tpu.vector_store %arg6[%c40_171, %c0_172], %536 {strides = array<i32>} : memref<64x8xf32, #tpu.memory_space<vmem>>, vector<8x8xf32>,
    %538 = vector.extract_strided_slice %403 {offsets = [48, 0], sizes = [8, 32], strides = [1, 1]} : vector<64x32xf32> to vector<8x32xf32>
    %cst_173 = arith.constant dense<0.000000e+00> : vector<8x32xf32>
    %539 = tpu.matmul %536, %398, %cst_173 {dimension_numbers = #tpu.dot_dimension_numbers<[1], [0], [0], [1], [0, 0, 1, 1], [], []>} : vector<8x8xf32>, vector<8x32xf32>, vector<8x32xf32> -> vector<8x32xf32>
    %540 = arith.addf %538, %539 : vector<8x32xf32>
    %541 = arith.negf %540 : vector<8x32xf32>
    %542 = math.exp %541 : vector<8x32xf32>
    %cst_174 = arith.constant 1.000000e+00 : f32
    %543 = vector.broadcast %cst_174 : f32 to vector<8x32xf32>
    %544 = arith.addf %543, %542 : vector<8x32xf32>
    %545 = arith.divf %543, %544 : vector<8x32xf32>
    %546 = vector.extract_strided_slice %545 {offsets = [0, 0], sizes = [8, 8], strides = [1, 1]} : vector<8x32xf32> to vector<8x8xf32>
    %547 = vector.extract_strided_slice %545 {offsets = [0, 8], sizes = [8, 8], strides = [1, 1]} : vector<8x32xf32> to vector<8x8xf32>
    %548 = vector.extract_strided_slice %545 {offsets = [0, 16], sizes = [8, 8], strides = [1, 1]} : vector<8x32xf32> to vector<8x8xf32>
    %cst_175 = arith.constant 2.000000e+00 : f32
    %549 = vector.broadcast %cst_175 : f32 to vector<8x8xf32>
    %550 = arith.mulf %549, %548 : vector<8x8xf32>
    %cst_176 = arith.constant 1.000000e+00 : f32
    %551 = vector.broadcast %cst_176 : f32 to vector<8x8xf32>
    %552 = arith.subf %550, %551 : vector<8x8xf32>
    %553 = vector.extract_strided_slice %545 {offsets = [0, 24], sizes = [8, 8], strides = [1, 1]} : vector<8x32xf32> to vector<8x8xf32>
    %554 = arith.mulf %547, %534 : vector<8x8xf32>
    %555 = arith.mulf %546, %552 : vector<8x8xf32>
    %556 = arith.addf %554, %555 : vector<8x8xf32>
    %557 = math.tanh %556 : vector<8x8xf32>
    %558 = arith.mulf %553, %557 : vector<8x8xf32>
    %c48_177 = arith.constant 48 : index
    %c0_178 = arith.constant 0 : index
    %559 = vector.load %arg6[%c48_177, %c0_178] : memref<64x8xf32, #tpu.memory_space<vmem>>, vector<8x8xf32>
    tpu.vector_store %arg6[%c48_177, %c0_178], %558 {strides = array<i32>} : memref<64x8xf32, #tpu.memory_space<vmem>>, vector<8x8xf32>,
    %560 = vector.extract_strided_slice %403 {offsets = [56, 0], sizes = [8, 32], strides = [1, 1]} : vector<64x32xf32> to vector<8x32xf32>
    %cst_179 = arith.constant dense<0.000000e+00> : vector<8x32xf32>
    %561 = tpu.matmul %558, %398, %cst_179 {dimension_numbers = #tpu.dot_dimension_numbers<[1], [0], [0], [1], [0, 0, 1, 1], [], []>} : vector<8x8xf32>, vector<8x32xf32>, vector<8x32xf32> -> vector<8x32xf32>
    %562 = arith.addf %560, %561 : vector<8x32xf32>
    %563 = arith.negf %562 : vector<8x32xf32>
    %564 = math.exp %563 : vector<8x32xf32>
    %cst_180 = arith.constant 1.000000e+00 : f32
    %565 = vector.broadcast %cst_180 : f32 to vector<8x32xf32>
    %566 = arith.addf %565, %564 : vector<8x32xf32>
    %567 = arith.divf %565, %566 : vector<8x32xf32>
    %568 = vector.extract_strided_slice %567 {offsets = [0, 0], sizes = [8, 8], strides = [1, 1]} : vector<8x32xf32> to vector<8x8xf32>
    %569 = vector.extract_strided_slice %567 {offsets = [0, 8], sizes = [8, 8], strides = [1, 1]} : vector<8x32xf32> to vector<8x8xf32>
    %570 = vector.extract_strided_slice %567 {offsets = [0, 16], sizes = [8, 8], strides = [1, 1]} : vector<8x32xf32> to vector<8x8xf32>
    %cst_181 = arith.constant 2.000000e+00 : f32
    %571 = vector.broadcast %cst_181 : f32 to vector<8x8xf32>
    %572 = arith.mulf %571, %570 : vector<8x8xf32>
    %cst_182 = arith.constant 1.000000e+00 : f32
    %573 = vector.broadcast %cst_182 : f32 to vector<8x8xf32>
    %574 = arith.subf %572, %573 : vector<8x8xf32>
    %575 = vector.extract_strided_slice %567 {offsets = [0, 24], sizes = [8, 8], strides = [1, 1]} : vector<8x32xf32> to vector<8x8xf32>
    %576 = arith.mulf %569, %556 : vector<8x8xf32>
    %577 = arith.mulf %568, %574 : vector<8x8xf32>
    %578 = arith.addf %576, %577 : vector<8x8xf32>
    %579 = math.tanh %578 : vector<8x8xf32>
    %580 = arith.mulf %575, %579 : vector<8x8xf32>
    %c56_183 = arith.constant 56 : index
    %c0_184 = arith.constant 0 : index
    %581 = vector.load %arg6[%c56_183, %c0_184] : memref<64x8xf32, #tpu.memory_space<vmem>>, vector<8x8xf32>
    tpu.vector_store %arg6[%c56_183, %c0_184], %580 {strides = array<i32>} : memref<64x8xf32, #tpu.memory_space<vmem>>, vector<8x8xf32>,
    %c168 = arith.constant 168 : index
    %c0_185 = arith.constant 0 : index
    %582 = vector.load %arg1[%c168, %c0_185] : memref<208x128xf32, #tpu.memory_space<vmem>>, vector<8x32xf32>
    %c176 = arith.constant 176 : index
    %c0_186 = arith.constant 0 : index
    %583 = vector.load %arg1[%c176, %c0_186] : memref<208x128xf32, #tpu.memory_space<vmem>>, vector<8x32xf32>
    %c184 = arith.constant 184 : index
    %c0_187 = arith.constant 0 : index
    %584 = vector.load %arg1[%c184, %c0_187] : memref<208x128xf32, #tpu.memory_space<vmem>>, vector<1x32xf32>
    %c0_188 = arith.constant 0 : index
    %c0_189 = arith.constant 0 : index
    %585 = vector.load %arg6[%c0_188, %c0_189] : memref<64x8xf32, #tpu.memory_space<vmem>>, vector<64x8xf32>
    %cst_190 = arith.constant dense<0.000000e+00> : vector<64x32xf32>
    %586 = tpu.matmul %585, %582, %cst_190 {dimension_numbers = #tpu.dot_dimension_numbers<[1], [0], [0], [1], [0, 0, 1, 1], [], []>} : vector<64x8xf32>, vector<8x32xf32>, vector<64x32xf32> -> vector<64x32xf32>
    %587 = vector.broadcast %584 : vector<1x32xf32> to vector<64x32xf32>
    %588 = arith.addf %586, %587 : vector<64x32xf32>
    %cst_191 = arith.constant 0.000000e+00 : f32
    %589 = vector.broadcast %cst_191 : f32 to vector<8x8xf32>
    %cst_192 = arith.constant 0.000000e+00 : f32
    %590 = vector.broadcast %cst_192 : f32 to vector<8x8xf32>
    %591 = vector.extract_strided_slice %588 {offsets = [0, 0], sizes = [8, 32], strides = [1, 1]} : vector<64x32xf32> to vector<8x32xf32>
    %cst_193 = arith.constant dense<0.000000e+00> : vector<8x32xf32>
    %592 = tpu.matmul %589, %583, %cst_193 {dimension_numbers = #tpu.dot_dimension_numbers<[1], [0], [0], [1], [0, 0, 1, 1], [], []>} : vector<8x8xf32>, vector<8x32xf32>, vector<8x32xf32> -> vector<8x32xf32>
    %593 = arith.addf %591, %592 : vector<8x32xf32>
    %594 = arith.negf %593 : vector<8x32xf32>
    %595 = math.exp %594 : vector<8x32xf32>
    %cst_194 = arith.constant 1.000000e+00 : f32
    %596 = vector.broadcast %cst_194 : f32 to vector<8x32xf32>
    %597 = arith.addf %596, %595 : vector<8x32xf32>
    %598 = arith.divf %596, %597 : vector<8x32xf32>
    %599 = vector.extract_strided_slice %598 {offsets = [0, 0], sizes = [8, 8], strides = [1, 1]} : vector<8x32xf32> to vector<8x8xf32>
    %600 = vector.extract_strided_slice %598 {offsets = [0, 8], sizes = [8, 8], strides = [1, 1]} : vector<8x32xf32> to vector<8x8xf32>
    %601 = vector.extract_strided_slice %598 {offsets = [0, 16], sizes = [8, 8], strides = [1, 1]} : vector<8x32xf32> to vector<8x8xf32>
    %cst_195 = arith.constant 2.000000e+00 : f32
    %602 = vector.broadcast %cst_195 : f32 to vector<8x8xf32>
    %603 = arith.mulf %602, %601 : vector<8x8xf32>
    %cst_196 = arith.constant 1.000000e+00 : f32
    %604 = vector.broadcast %cst_196 : f32 to vector<8x8xf32>
    %605 = arith.subf %603, %604 : vector<8x8xf32>
    %606 = vector.extract_strided_slice %598 {offsets = [0, 24], sizes = [8, 8], strides = [1, 1]} : vector<8x32xf32> to vector<8x8xf32>
    %607 = arith.mulf %600, %590 : vector<8x8xf32>
    %608 = arith.mulf %599, %605 : vector<8x8xf32>
    %609 = arith.addf %607, %608 : vector<8x8xf32>
    %610 = math.tanh %609 : vector<8x8xf32>
    %611 = arith.mulf %606, %610 : vector<8x8xf32>
    %c0_197 = arith.constant 0 : index
    %c0_198 = arith.constant 0 : index
    %612 = vector.load %arg7[%c0_197, %c0_198] : memref<64x8xf32, #tpu.memory_space<vmem>>, vector<8x8xf32>
    tpu.vector_store %arg7[%c0_197, %c0_198], %611 {strides = array<i32>} : memref<64x8xf32, #tpu.memory_space<vmem>>, vector<8x8xf32>,
    %613 = vector.extract_strided_slice %588 {offsets = [8, 0], sizes = [8, 32], strides = [1, 1]} : vector<64x32xf32> to vector<8x32xf32>
    %cst_199 = arith.constant dense<0.000000e+00> : vector<8x32xf32>
    %614 = tpu.matmul %611, %583, %cst_199 {dimension_numbers = #tpu.dot_dimension_numbers<[1], [0], [0], [1], [0, 0, 1, 1], [], []>} : vector<8x8xf32>, vector<8x32xf32>, vector<8x32xf32> -> vector<8x32xf32>
    %615 = arith.addf %613, %614 : vector<8x32xf32>
    %616 = arith.negf %615 : vector<8x32xf32>
    %617 = math.exp %616 : vector<8x32xf32>
    %cst_200 = arith.constant 1.000000e+00 : f32
    %618 = vector.broadcast %cst_200 : f32 to vector<8x32xf32>
    %619 = arith.addf %618, %617 : vector<8x32xf32>
    %620 = arith.divf %618, %619 : vector<8x32xf32>
    %621 = vector.extract_strided_slice %620 {offsets = [0, 0], sizes = [8, 8], strides = [1, 1]} : vector<8x32xf32> to vector<8x8xf32>
    %622 = vector.extract_strided_slice %620 {offsets = [0, 8], sizes = [8, 8], strides = [1, 1]} : vector<8x32xf32> to vector<8x8xf32>
    %623 = vector.extract_strided_slice %620 {offsets = [0, 16], sizes = [8, 8], strides = [1, 1]} : vector<8x32xf32> to vector<8x8xf32>
    %cst_201 = arith.constant 2.000000e+00 : f32
    %624 = vector.broadcast %cst_201 : f32 to vector<8x8xf32>
    %625 = arith.mulf %624, %623 : vector<8x8xf32>
    %cst_202 = arith.constant 1.000000e+00 : f32
    %626 = vector.broadcast %cst_202 : f32 to vector<8x8xf32>
    %627 = arith.subf %625, %626 : vector<8x8xf32>
    %628 = vector.extract_strided_slice %620 {offsets = [0, 24], sizes = [8, 8], strides = [1, 1]} : vector<8x32xf32> to vector<8x8xf32>
    %629 = arith.mulf %622, %609 : vector<8x8xf32>
    %630 = arith.mulf %621, %627 : vector<8x8xf32>
    %631 = arith.addf %629, %630 : vector<8x8xf32>
    %632 = math.tanh %631 : vector<8x8xf32>
    %633 = arith.mulf %628, %632 : vector<8x8xf32>
    %c8_203 = arith.constant 8 : index
    %c0_204 = arith.constant 0 : index
    %634 = vector.load %arg7[%c8_203, %c0_204] : memref<64x8xf32, #tpu.memory_space<vmem>>, vector<8x8xf32>
    tpu.vector_store %arg7[%c8_203, %c0_204], %633 {strides = array<i32>} : memref<64x8xf32, #tpu.memory_space<vmem>>, vector<8x8xf32>,
    %635 = vector.extract_strided_slice %588 {offsets = [16, 0], sizes = [8, 32], strides = [1, 1]} : vector<64x32xf32> to vector<8x32xf32>
    %cst_205 = arith.constant dense<0.000000e+00> : vector<8x32xf32>
    %636 = tpu.matmul %633, %583, %cst_205 {dimension_numbers = #tpu.dot_dimension_numbers<[1], [0], [0], [1], [0, 0, 1, 1], [], []>} : vector<8x8xf32>, vector<8x32xf32>, vector<8x32xf32> -> vector<8x32xf32>
    %637 = arith.addf %635, %636 : vector<8x32xf32>
    %638 = arith.negf %637 : vector<8x32xf32>
    %639 = math.exp %638 : vector<8x32xf32>
    %cst_206 = arith.constant 1.000000e+00 : f32
    %640 = vector.broadcast %cst_206 : f32 to vector<8x32xf32>
    %641 = arith.addf %640, %639 : vector<8x32xf32>
    %642 = arith.divf %640, %641 : vector<8x32xf32>
    %643 = vector.extract_strided_slice %642 {offsets = [0, 0], sizes = [8, 8], strides = [1, 1]} : vector<8x32xf32> to vector<8x8xf32>
    %644 = vector.extract_strided_slice %642 {offsets = [0, 8], sizes = [8, 8], strides = [1, 1]} : vector<8x32xf32> to vector<8x8xf32>
    %645 = vector.extract_strided_slice %642 {offsets = [0, 16], sizes = [8, 8], strides = [1, 1]} : vector<8x32xf32> to vector<8x8xf32>
    %cst_207 = arith.constant 2.000000e+00 : f32
    %646 = vector.broadcast %cst_207 : f32 to vector<8x8xf32>
    %647 = arith.mulf %646, %645 : vector<8x8xf32>
    %cst_208 = arith.constant 1.000000e+00 : f32
    %648 = vector.broadcast %cst_208 : f32 to vector<8x8xf32>
    %649 = arith.subf %647, %648 : vector<8x8xf32>
    %650 = vector.extract_strided_slice %642 {offsets = [0, 24], sizes = [8, 8], strides = [1, 1]} : vector<8x32xf32> to vector<8x8xf32>
    %651 = arith.mulf %644, %631 : vector<8x8xf32>
    %652 = arith.mulf %643, %649 : vector<8x8xf32>
    %653 = arith.addf %651, %652 : vector<8x8xf32>
    %654 = math.tanh %653 : vector<8x8xf32>
    %655 = arith.mulf %650, %654 : vector<8x8xf32>
    %c16_209 = arith.constant 16 : index
    %c0_210 = arith.constant 0 : index
    %656 = vector.load %arg7[%c16_209, %c0_210] : memref<64x8xf32, #tpu.memory_space<vmem>>, vector<8x8xf32>
    tpu.vector_store %arg7[%c16_209, %c0_210], %655 {strides = array<i32>} : memref<64x8xf32, #tpu.memory_space<vmem>>, vector<8x8xf32>,
    %657 = vector.extract_strided_slice %588 {offsets = [24, 0], sizes = [8, 32], strides = [1, 1]} : vector<64x32xf32> to vector<8x32xf32>
    %cst_211 = arith.constant dense<0.000000e+00> : vector<8x32xf32>
    %658 = tpu.matmul %655, %583, %cst_211 {dimension_numbers = #tpu.dot_dimension_numbers<[1], [0], [0], [1], [0, 0, 1, 1], [], []>} : vector<8x8xf32>, vector<8x32xf32>, vector<8x32xf32> -> vector<8x32xf32>
    %659 = arith.addf %657, %658 : vector<8x32xf32>
    %660 = arith.negf %659 : vector<8x32xf32>
    %661 = math.exp %660 : vector<8x32xf32>
    %cst_212 = arith.constant 1.000000e+00 : f32
    %662 = vector.broadcast %cst_212 : f32 to vector<8x32xf32>
    %663 = arith.addf %662, %661 : vector<8x32xf32>
    %664 = arith.divf %662, %663 : vector<8x32xf32>
    %665 = vector.extract_strided_slice %664 {offsets = [0, 0], sizes = [8, 8], strides = [1, 1]} : vector<8x32xf32> to vector<8x8xf32>
    %666 = vector.extract_strided_slice %664 {offsets = [0, 8], sizes = [8, 8], strides = [1, 1]} : vector<8x32xf32> to vector<8x8xf32>
    %667 = vector.extract_strided_slice %664 {offsets = [0, 16], sizes = [8, 8], strides = [1, 1]} : vector<8x32xf32> to vector<8x8xf32>
    %cst_213 = arith.constant 2.000000e+00 : f32
    %668 = vector.broadcast %cst_213 : f32 to vector<8x8xf32>
    %669 = arith.mulf %668, %667 : vector<8x8xf32>
    %cst_214 = arith.constant 1.000000e+00 : f32
    %670 = vector.broadcast %cst_214 : f32 to vector<8x8xf32>
    %671 = arith.subf %669, %670 : vector<8x8xf32>
    %672 = vector.extract_strided_slice %664 {offsets = [0, 24], sizes = [8, 8], strides = [1, 1]} : vector<8x32xf32> to vector<8x8xf32>
    %673 = arith.mulf %666, %653 : vector<8x8xf32>
    %674 = arith.mulf %665, %671 : vector<8x8xf32>
    %675 = arith.addf %673, %674 : vector<8x8xf32>
    %676 = math.tanh %675 : vector<8x8xf32>
    %677 = arith.mulf %672, %676 : vector<8x8xf32>
    %c24_215 = arith.constant 24 : index
    %c0_216 = arith.constant 0 : index
    %678 = vector.load %arg7[%c24_215, %c0_216] : memref<64x8xf32, #tpu.memory_space<vmem>>, vector<8x8xf32>
    tpu.vector_store %arg7[%c24_215, %c0_216], %677 {strides = array<i32>} : memref<64x8xf32, #tpu.memory_space<vmem>>, vector<8x8xf32>,
    %679 = vector.extract_strided_slice %588 {offsets = [32, 0], sizes = [8, 32], strides = [1, 1]} : vector<64x32xf32> to vector<8x32xf32>
    %cst_217 = arith.constant dense<0.000000e+00> : vector<8x32xf32>
    %680 = tpu.matmul %677, %583, %cst_217 {dimension_numbers = #tpu.dot_dimension_numbers<[1], [0], [0], [1], [0, 0, 1, 1], [], []>} : vector<8x8xf32>, vector<8x32xf32>, vector<8x32xf32> -> vector<8x32xf32>
    %681 = arith.addf %679, %680 : vector<8x32xf32>
    %682 = arith.negf %681 : vector<8x32xf32>
    %683 = math.exp %682 : vector<8x32xf32>
    %cst_218 = arith.constant 1.000000e+00 : f32
    %684 = vector.broadcast %cst_218 : f32 to vector<8x32xf32>
    %685 = arith.addf %684, %683 : vector<8x32xf32>
    %686 = arith.divf %684, %685 : vector<8x32xf32>
    %687 = vector.extract_strided_slice %686 {offsets = [0, 0], sizes = [8, 8], strides = [1, 1]} : vector<8x32xf32> to vector<8x8xf32>
    %688 = vector.extract_strided_slice %686 {offsets = [0, 8], sizes = [8, 8], strides = [1, 1]} : vector<8x32xf32> to vector<8x8xf32>
    %689 = vector.extract_strided_slice %686 {offsets = [0, 16], sizes = [8, 8], strides = [1, 1]} : vector<8x32xf32> to vector<8x8xf32>
    %cst_219 = arith.constant 2.000000e+00 : f32
    %690 = vector.broadcast %cst_219 : f32 to vector<8x8xf32>
    %691 = arith.mulf %690, %689 : vector<8x8xf32>
    %cst_220 = arith.constant 1.000000e+00 : f32
    %692 = vector.broadcast %cst_220 : f32 to vector<8x8xf32>
    %693 = arith.subf %691, %692 : vector<8x8xf32>
    %694 = vector.extract_strided_slice %686 {offsets = [0, 24], sizes = [8, 8], strides = [1, 1]} : vector<8x32xf32> to vector<8x8xf32>
    %695 = arith.mulf %688, %675 : vector<8x8xf32>
    %696 = arith.mulf %687, %693 : vector<8x8xf32>
    %697 = arith.addf %695, %696 : vector<8x8xf32>
    %698 = math.tanh %697 : vector<8x8xf32>
    %699 = arith.mulf %694, %698 : vector<8x8xf32>
    %c32_221 = arith.constant 32 : index
    %c0_222 = arith.constant 0 : index
    %700 = vector.load %arg7[%c32_221, %c0_222] : memref<64x8xf32, #tpu.memory_space<vmem>>, vector<8x8xf32>
    tpu.vector_store %arg7[%c32_221, %c0_222], %699 {strides = array<i32>} : memref<64x8xf32, #tpu.memory_space<vmem>>, vector<8x8xf32>,
    %701 = vector.extract_strided_slice %588 {offsets = [40, 0], sizes = [8, 32], strides = [1, 1]} : vector<64x32xf32> to vector<8x32xf32>
    %cst_223 = arith.constant dense<0.000000e+00> : vector<8x32xf32>
    %702 = tpu.matmul %699, %583, %cst_223 {dimension_numbers = #tpu.dot_dimension_numbers<[1], [0], [0], [1], [0, 0, 1, 1], [], []>} : vector<8x8xf32>, vector<8x32xf32>, vector<8x32xf32> -> vector<8x32xf32>
    %703 = arith.addf %701, %702 : vector<8x32xf32>
    %704 = arith.negf %703 : vector<8x32xf32>
    %705 = math.exp %704 : vector<8x32xf32>
    %cst_224 = arith.constant 1.000000e+00 : f32
    %706 = vector.broadcast %cst_224 : f32 to vector<8x32xf32>
    %707 = arith.addf %706, %705 : vector<8x32xf32>
    %708 = arith.divf %706, %707 : vector<8x32xf32>
    %709 = vector.extract_strided_slice %708 {offsets = [0, 0], sizes = [8, 8], strides = [1, 1]} : vector<8x32xf32> to vector<8x8xf32>
    %710 = vector.extract_strided_slice %708 {offsets = [0, 8], sizes = [8, 8], strides = [1, 1]} : vector<8x32xf32> to vector<8x8xf32>
    %711 = vector.extract_strided_slice %708 {offsets = [0, 16], sizes = [8, 8], strides = [1, 1]} : vector<8x32xf32> to vector<8x8xf32>
    %cst_225 = arith.constant 2.000000e+00 : f32
    %712 = vector.broadcast %cst_225 : f32 to vector<8x8xf32>
    %713 = arith.mulf %712, %711 : vector<8x8xf32>
    %cst_226 = arith.constant 1.000000e+00 : f32
    %714 = vector.broadcast %cst_226 : f32 to vector<8x8xf32>
    %715 = arith.subf %713, %714 : vector<8x8xf32>
    %716 = vector.extract_strided_slice %708 {offsets = [0, 24], sizes = [8, 8], strides = [1, 1]} : vector<8x32xf32> to vector<8x8xf32>
    %717 = arith.mulf %710, %697 : vector<8x8xf32>
    %718 = arith.mulf %709, %715 : vector<8x8xf32>
    %719 = arith.addf %717, %718 : vector<8x8xf32>
    %720 = math.tanh %719 : vector<8x8xf32>
    %721 = arith.mulf %716, %720 : vector<8x8xf32>
    %c40_227 = arith.constant 40 : index
    %c0_228 = arith.constant 0 : index
    %722 = vector.load %arg7[%c40_227, %c0_228] : memref<64x8xf32, #tpu.memory_space<vmem>>, vector<8x8xf32>
    tpu.vector_store %arg7[%c40_227, %c0_228], %721 {strides = array<i32>} : memref<64x8xf32, #tpu.memory_space<vmem>>, vector<8x8xf32>,
    %723 = vector.extract_strided_slice %588 {offsets = [48, 0], sizes = [8, 32], strides = [1, 1]} : vector<64x32xf32> to vector<8x32xf32>
    %cst_229 = arith.constant dense<0.000000e+00> : vector<8x32xf32>
    %724 = tpu.matmul %721, %583, %cst_229 {dimension_numbers = #tpu.dot_dimension_numbers<[1], [0], [0], [1], [0, 0, 1, 1], [], []>} : vector<8x8xf32>, vector<8x32xf32>, vector<8x32xf32> -> vector<8x32xf32>
    %725 = arith.addf %723, %724 : vector<8x32xf32>
    %726 = arith.negf %725 : vector<8x32xf32>
    %727 = math.exp %726 : vector<8x32xf32>
    %cst_230 = arith.constant 1.000000e+00 : f32
    %728 = vector.broadcast %cst_230 : f32 to vector<8x32xf32>
    %729 = arith.addf %728, %727 : vector<8x32xf32>
    %730 = arith.divf %728, %729 : vector<8x32xf32>
    %731 = vector.extract_strided_slice %730 {offsets = [0, 0], sizes = [8, 8], strides = [1, 1]} : vector<8x32xf32> to vector<8x8xf32>
    %732 = vector.extract_strided_slice %730 {offsets = [0, 8], sizes = [8, 8], strides = [1, 1]} : vector<8x32xf32> to vector<8x8xf32>
    %733 = vector.extract_strided_slice %730 {offsets = [0, 16], sizes = [8, 8], strides = [1, 1]} : vector<8x32xf32> to vector<8x8xf32>
    %cst_231 = arith.constant 2.000000e+00 : f32
    %734 = vector.broadcast %cst_231 : f32 to vector<8x8xf32>
    %735 = arith.mulf %734, %733 : vector<8x8xf32>
    %cst_232 = arith.constant 1.000000e+00 : f32
    %736 = vector.broadcast %cst_232 : f32 to vector<8x8xf32>
    %737 = arith.subf %735, %736 : vector<8x8xf32>
    %738 = vector.extract_strided_slice %730 {offsets = [0, 24], sizes = [8, 8], strides = [1, 1]} : vector<8x32xf32> to vector<8x8xf32>
    %739 = arith.mulf %732, %719 : vector<8x8xf32>
    %740 = arith.mulf %731, %737 : vector<8x8xf32>
    %741 = arith.addf %739, %740 : vector<8x8xf32>
    %742 = math.tanh %741 : vector<8x8xf32>
    %743 = arith.mulf %738, %742 : vector<8x8xf32>
    %c48_233 = arith.constant 48 : index
    %c0_234 = arith.constant 0 : index
    %744 = vector.load %arg7[%c48_233, %c0_234] : memref<64x8xf32, #tpu.memory_space<vmem>>, vector<8x8xf32>
    tpu.vector_store %arg7[%c48_233, %c0_234], %743 {strides = array<i32>} : memref<64x8xf32, #tpu.memory_space<vmem>>, vector<8x8xf32>,
    %745 = vector.extract_strided_slice %588 {offsets = [56, 0], sizes = [8, 32], strides = [1, 1]} : vector<64x32xf32> to vector<8x32xf32>
    %cst_235 = arith.constant dense<0.000000e+00> : vector<8x32xf32>
    %746 = tpu.matmul %743, %583, %cst_235 {dimension_numbers = #tpu.dot_dimension_numbers<[1], [0], [0], [1], [0, 0, 1, 1], [], []>} : vector<8x8xf32>, vector<8x32xf32>, vector<8x32xf32> -> vector<8x32xf32>
    %747 = arith.addf %745, %746 : vector<8x32xf32>
    %748 = arith.negf %747 : vector<8x32xf32>
    %749 = math.exp %748 : vector<8x32xf32>
    %cst_236 = arith.constant 1.000000e+00 : f32
    %750 = vector.broadcast %cst_236 : f32 to vector<8x32xf32>
    %751 = arith.addf %750, %749 : vector<8x32xf32>
    %752 = arith.divf %750, %751 : vector<8x32xf32>
    %753 = vector.extract_strided_slice %752 {offsets = [0, 0], sizes = [8, 8], strides = [1, 1]} : vector<8x32xf32> to vector<8x8xf32>
    %754 = vector.extract_strided_slice %752 {offsets = [0, 8], sizes = [8, 8], strides = [1, 1]} : vector<8x32xf32> to vector<8x8xf32>
    %755 = vector.extract_strided_slice %752 {offsets = [0, 16], sizes = [8, 8], strides = [1, 1]} : vector<8x32xf32> to vector<8x8xf32>
    %cst_237 = arith.constant 2.000000e+00 : f32
    %756 = vector.broadcast %cst_237 : f32 to vector<8x8xf32>
    %757 = arith.mulf %756, %755 : vector<8x8xf32>
    %cst_238 = arith.constant 1.000000e+00 : f32
    %758 = vector.broadcast %cst_238 : f32 to vector<8x8xf32>
    %759 = arith.subf %757, %758 : vector<8x8xf32>
    %760 = vector.extract_strided_slice %752 {offsets = [0, 24], sizes = [8, 8], strides = [1, 1]} : vector<8x32xf32> to vector<8x8xf32>
    %761 = arith.mulf %754, %741 : vector<8x8xf32>
    %762 = arith.mulf %753, %759 : vector<8x8xf32>
    %763 = arith.addf %761, %762 : vector<8x8xf32>
    %764 = math.tanh %763 : vector<8x8xf32>
    %765 = arith.mulf %760, %764 : vector<8x8xf32>
    %c56_239 = arith.constant 56 : index
    %c0_240 = arith.constant 0 : index
    %766 = vector.load %arg7[%c56_239, %c0_240] : memref<64x8xf32, #tpu.memory_space<vmem>>, vector<8x8xf32>
    tpu.vector_store %arg7[%c56_239, %c0_240], %765 {strides = array<i32>} : memref<64x8xf32, #tpu.memory_space<vmem>>, vector<8x8xf32>,
    %c192 = arith.constant 192 : index
    %c0_241 = arith.constant 0 : index
    %767 = vector.load %arg1[%c192, %c0_241] : memref<208x128xf32, #tpu.memory_space<vmem>>, vector<8x8xf32>
    %c200 = arith.constant 200 : index
    %c0_242 = arith.constant 0 : index
    %768 = vector.load %arg1[%c200, %c0_242] : memref<208x128xf32, #tpu.memory_space<vmem>>, vector<1x8xf32>
    %c0_243 = arith.constant 0 : index
    %c0_244 = arith.constant 0 : index
    %769 = vector.load %arg7[%c0_243, %c0_244] : memref<64x8xf32, #tpu.memory_space<vmem>>, vector<64x8xf32>
    %cst_245 = arith.constant dense<0.000000e+00> : vector<64x8xf32>
    %770 = tpu.matmul %769, %767, %cst_245 {dimension_numbers = #tpu.dot_dimension_numbers<[1], [0], [0], [1], [0, 0, 1, 1], [], []>} : vector<64x8xf32>, vector<8x8xf32>, vector<64x8xf32> -> vector<64x8xf32>
    %771 = vector.broadcast %768 : vector<1x8xf32> to vector<64x8xf32>
    %772 = arith.addf %770, %771 : vector<64x8xf32>
    %773 = vector.extract_strided_slice %772 {offsets = [0, 0], sizes = [2, 8], strides = [1, 1]} : vector<64x8xf32> to vector<2x8xf32>
    %774 = vector.shape_cast %773 : vector<2x8xf32> to vector<2x1x8xf32>
    %c0_246 = arith.constant 0 : index
    %c0_247 = arith.constant 0 : index
    %c0_248 = arith.constant 0 : index
    %775 = vector.load %arg2[%c0_246, %c0_247, %c0_248] : memref<2x8x8xf32, #tpu.memory_space<vmem>>, vector<2x1x8xf32>
    tpu.vector_store %arg2[%c0_246, %c0_247, %c0_248], %774 {strides = array<i32>} : memref<2x8x8xf32, #tpu.memory_space<vmem>>, vector<2x1x8xf32>,
    %776 = vector.extract_strided_slice %772 {offsets = [8, 0], sizes = [2, 8], strides = [1, 1]} : vector<64x8xf32> to vector<2x8xf32>
    %777 = vector.shape_cast %776 : vector<2x8xf32> to vector<2x1x8xf32>
    %c0_249 = arith.constant 0 : index
    %c1 = arith.constant 1 : index
    %c0_250 = arith.constant 0 : index
    %778 = vector.load %arg2[%c0_249, %c1, %c0_250] : memref<2x8x8xf32, #tpu.memory_space<vmem>>, vector<2x1x8xf32>
    tpu.vector_store %arg2[%c0_249, %c1, %c0_250], %777 {strides = array<i32>} : memref<2x8x8xf32, #tpu.memory_space<vmem>>, vector<2x1x8xf32>,
    %779 = vector.extract_strided_slice %772 {offsets = [16, 0], sizes = [2, 8], strides = [1, 1]} : vector<64x8xf32> to vector<2x8xf32>
    %780 = vector.shape_cast %779 : vector<2x8xf32> to vector<2x1x8xf32>
    %c0_251 = arith.constant 0 : index
    %c2 = arith.constant 2 : index
    %c0_252 = arith.constant 0 : index
    %781 = vector.load %arg2[%c0_251, %c2, %c0_252] : memref<2x8x8xf32, #tpu.memory_space<vmem>>, vector<2x1x8xf32>
    tpu.vector_store %arg2[%c0_251, %c2, %c0_252], %780 {strides = array<i32>} : memref<2x8x8xf32, #tpu.memory_space<vmem>>, vector<2x1x8xf32>,
    %782 = vector.extract_strided_slice %772 {offsets = [24, 0], sizes = [2, 8], strides = [1, 1]} : vector<64x8xf32> to vector<2x8xf32>
    %783 = vector.shape_cast %782 : vector<2x8xf32> to vector<2x1x8xf32>
    %c0_253 = arith.constant 0 : index
    %c3 = arith.constant 3 : index
    %c0_254 = arith.constant 0 : index
    %784 = vector.load %arg2[%c0_253, %c3, %c0_254] : memref<2x8x8xf32, #tpu.memory_space<vmem>>, vector<2x1x8xf32>
    tpu.vector_store %arg2[%c0_253, %c3, %c0_254], %783 {strides = array<i32>} : memref<2x8x8xf32, #tpu.memory_space<vmem>>, vector<2x1x8xf32>,
    %785 = vector.extract_strided_slice %772 {offsets = [32, 0], sizes = [2, 8], strides = [1, 1]} : vector<64x8xf32> to vector<2x8xf32>
    %786 = vector.shape_cast %785 : vector<2x8xf32> to vector<2x1x8xf32>
    %c0_255 = arith.constant 0 : index
    %c4 = arith.constant 4 : index
    %c0_256 = arith.constant 0 : index
    %787 = vector.load %arg2[%c0_255, %c4, %c0_256] : memref<2x8x8xf32, #tpu.memory_space<vmem>>, vector<2x1x8xf32>
    tpu.vector_store %arg2[%c0_255, %c4, %c0_256], %786 {strides = array<i32>} : memref<2x8x8xf32, #tpu.memory_space<vmem>>, vector<2x1x8xf32>,
    %788 = vector.extract_strided_slice %772 {offsets = [40, 0], sizes = [2, 8], strides = [1, 1]} : vector<64x8xf32> to vector<2x8xf32>
    %789 = vector.shape_cast %788 : vector<2x8xf32> to vector<2x1x8xf32>
    %c0_257 = arith.constant 0 : index
    %c5 = arith.constant 5 : index
    %c0_258 = arith.constant 0 : index
    %790 = vector.load %arg2[%c0_257, %c5, %c0_258] : memref<2x8x8xf32, #tpu.memory_space<vmem>>, vector<2x1x8xf32>
    tpu.vector_store %arg2[%c0_257, %c5, %c0_258], %789 {strides = array<i32>} : memref<2x8x8xf32, #tpu.memory_space<vmem>>, vector<2x1x8xf32>,
    %791 = vector.extract_strided_slice %772 {offsets = [48, 0], sizes = [2, 8], strides = [1, 1]} : vector<64x8xf32> to vector<2x8xf32>
    %792 = vector.shape_cast %791 : vector<2x8xf32> to vector<2x1x8xf32>
    %c0_259 = arith.constant 0 : index
    %c6 = arith.constant 6 : index
    %c0_260 = arith.constant 0 : index
    %793 = vector.load %arg2[%c0_259, %c6, %c0_260] : memref<2x8x8xf32, #tpu.memory_space<vmem>>, vector<2x1x8xf32>
    tpu.vector_store %arg2[%c0_259, %c6, %c0_260], %792 {strides = array<i32>} : memref<2x8x8xf32, #tpu.memory_space<vmem>>, vector<2x1x8xf32>,
    %794 = vector.extract_strided_slice %772 {offsets = [56, 0], sizes = [2, 8], strides = [1, 1]} : vector<64x8xf32> to vector<2x8xf32>
    %795 = vector.shape_cast %794 : vector<2x8xf32> to vector<2x1x8xf32>
    %c0_261 = arith.constant 0 : index
    %c7 = arith.constant 7 : index
    %c0_262 = arith.constant 0 : index
    %796 = vector.load %arg2[%c0_261, %c7, %c0_262] : memref<2x8x8xf32, #tpu.memory_space<vmem>>, vector<2x1x8xf32>
    tpu.vector_store %arg2[%c0_261, %c7, %c0_262], %795 {strides = array<i32>} : memref<2x8x8xf32, #tpu.memory_space<vmem>>, vector<2x1x8xf32>,
    return
  }
}

</mosaic_0001>

<llo_original>
// kernel: lstm_autoencoder_forward.1
$region0: #{lstm_autoencoder_forward.1}
  #allocation0 [shape = 'u32[]', space=smem, size = 0x4, offset = 0x4, fixed_abs, tag = 'smem constant byte address 0x4 - core index']
  #allocation1 [shape = 'u32[72,128]{1,0:T(1,128)}', space=vmem, size = 0x9000, scoped, tag = 'internal scratch']
  #allocation2 [shape = 'f32[64,8]{1,0:T(8,128)}', space=vmem, size = 0x8000, scoped, tag = 'scratch operand']
  #allocation3 [shape = 'f32[64,32]{1,0:T(8,128)}', space=vmem, size = 0x8000, scoped, tag = 'scratch operand']
  #allocation4 [shape = 'f32[64,32]{1,0:T(8,128)}', space=vmem, size = 0x8000, scoped, tag = 'scratch operand']
  #allocation5 [shape = 'f32[64,8]{1,0:T(8,128)}', space=vmem, size = 0x8000, scoped, tag = 'scratch operand']
  #allocation6 [shape = 'f32[64,8]{1,0:T(8,128)}', space=vmem, size = 0x8000, scoped, tag = 'scratch operand']
  %s0 = inlined_call_operand.hbm [shape: f32[2,8,8], index: 0, kind: input, shape index: {}]
  %s1 = inlined_call_operand.hbm [shape: f32[208,128], index: 1, kind: input, shape index: {}]
  %s2 = inlined_call_operand.hbm [shape: f32[2,8,8], index: 2, kind: output, shape index: {}]
  %s3 = sld [smem:[#allocation0]]
  $region26: #{lstm_autoencoder_forward.1} parent=0
    _
  %s5 = ssub.s32 1, %s3
  %s6 = scalar_select 0, %s5, %s3
  $region1: #{lstm_autoencoder_forward.1} parent=0
    #allocation7 [shape = 'u8[8192]{0}', space=vmem, size = 0x2000, scoped, tag = 'input window, operand 0, single buffered']
    #allocation8 [shape = 's32[1]{0}', space=sflag, size = 0x4, scoped, tag = 'scoped memory for lstm_autoencoder_forward.1']
    #allocation9 [shape = 's32[1]{0}', space=sflag, size = 0x4, scoped, tag = 'scoped memory for lstm_autoencoder_forward.1']
    #allocation10 [shape = 'u8[106496]{0}', space=vmem, size = 0x1a000, scoped, tag = 'input window, operand 1, single buffered']
    #allocation11 [shape = 's32[1]{0}', space=sflag, size = 0x4, scoped, tag = 'scoped memory for lstm_autoencoder_forward.1']
    #allocation12 [shape = 'u8[8192]{0}', space=vmem, size = 0x2000, scoped, tag = 'output window, operand 0, single buffered']
    %7 = vsyncpa [#allocation8], 0
    %8 = vsyncpa [#allocation11], 0
    %9 = vsyncpa [#allocation9], 0
    // Predicated region
    $region2: #{lstm_autoencoder_forward.1} parent=1 // pred_check
      _
    $region3: #{lstm_autoencoder_forward.1} parent=1 // pred_check_branch
      %11 = sbr.rel (0) target = $region5
    $region4: #{lstm_autoencoder_forward.1} parent=1 // pred_region
      %13 = vsyncadd [#allocation8], 0
      %s14 = sshll.u32 %s0, 4
      %s15 = int_to_ptr.hbm [resolvable:$true] %s14
      %s16 = sshll.u32 [#allocation7], 4
      %s17 = int_to_ptr.vmem [resolvable:$true] %s16
      %22 = dma.hbm_to_vmem [thread:$0]  %s15, 256, %s17, [#allocation8], 128, 128, 8
    $region5: #{lstm_autoencoder_forward.1} parent=1 // pred_fallthru
      _
    // Predicated region
    $region6: #{lstm_autoencoder_forward.1} parent=1 // pred_check
      _
    $region7: #{lstm_autoencoder_forward.1} parent=1 // pred_check_branch
      %24 = sbr.rel (0) target = $region9
    $region8: #{lstm_autoencoder_forward.1} parent=1 // pred_region
      %26 = vsyncadd [#allocation11], 0
      %s27 = sshll.u32 %s1, 4
      %s28 = int_to_ptr.hbm [resolvable:$true] %s27
      %s29 = sshll.u32 [#allocation10], 4
      %s30 = int_to_ptr.vmem [resolvable:$true] %s29
      %35 = dma.hbm_to_vmem [thread:$0]  %s28, 3328, %s30, [#allocation11], 128, 128, 8
    $region9: #{lstm_autoencoder_forward.1} parent=1 // pred_fallthru
      _
    // Predicated region
    $region10: #{lstm_autoencoder_forward.1} parent=1 // pred_check
      _
    $region11: #{lstm_autoencoder_forward.1} parent=1 // pred_check_branch
      %37 = sbr.rel (0) target = $region13
    $region12: #{lstm_autoencoder_forward.1} parent=1 // pred_region
      %39 = dma.done [#allocation8], 256
    $region13: #{lstm_autoencoder_forward.1} parent=1 // pred_fallthru
      _
    // Predicated region
    $region14: #{lstm_autoencoder_forward.1} parent=1 // pred_check
      _
    $region15: #{lstm_autoencoder_forward.1} parent=1 // pred_check_branch
      %41 = sbr.rel (0) target = $region17
    $region16: #{lstm_autoencoder_forward.1} parent=1 // pred_region
      %43 = dma.done [#allocation11], 3328
    $region17: #{lstm_autoencoder_forward.1} parent=1 // pred_fallthru
      _
    %vm44 = vcmask 64512
    %45 = vst.msk [vmem:[#allocation2] sm:$0xff] %vm44, 0.0
    %46 = vst.msk [vmem:[#allocation2 + $0x8] sm:$0xff] %vm44, 0.0
    %47 = vst.msk [vmem:[#allocation2 + $0x10] sm:$0xff] %vm44, 0.0
    %48 = vst.msk [vmem:[#allocation2 + $0x18] sm:$0xff] %vm44, 0.0
    %49 = vst.msk [vmem:[#allocation2 + $0x20] sm:$0xff] %vm44, 0.0
    %50 = vst.msk [vmem:[#allocation2 + $0x28] sm:$0xff] %vm44, 0.0
    %51 = vst.msk [vmem:[#allocation2 + $0x30] sm:$0xff] %vm44, 0.0
    %52 = vst.msk [vmem:[#allocation2 + $0x38] sm:$0xff] %vm44, 0.0
    %v53 = vld [vmem:[#allocation7] sm:$0xff]
    %v54 = vld [vmem:[#allocation7 + $0x8] sm:$0xff]
    %v57 = vrot.slane %v54, 7
    %vm58 = vcmask 1041409
    %v59 = vsel %vm58, %v57, %v53
    %vm61 = vcmask 58368
    %62 = vst.msk [vmem:[#allocation2] sm:$0x3] %vm61, %v59
    %vm63 = vcmask 1042434
    %v64 = vsel %vm63, %v57, %v53
    %vm66 = vcmask 59393
    %67 = vst.msk [vmem:[#allocation2 + $0x7] sm:$0x6] %vm66, %v64
    %vm68 = vcmask 1043459
    %v69 = vsel %vm68, %v57, %v53
    %vm71 = vcmask 60418
    %72 = vst.msk [vmem:[#allocation2 + $0xe] sm:$0xc] %vm71, %v69
    %vm73 = vcmask 1044484
    %v74 = vsel %vm73, %v57, %v53
    %vm76 = vcmask 61443
    %77 = vst.msk [vmem:[#allocation2 + $0x15] sm:$0x18] %vm76, %v74
    %vm78 = vcmask 1045509
    %v79 = vsel %vm78, %v57, %v53
    %vm81 = vcmask 62468
    %82 = vst.msk [vmem:[#allocation2 + $0x1c] sm:$0x30] %vm81, %v79
    %vm83 = vcmask 1046534
    %v84 = vsel %vm83, %v57, %v53
    %vm86 = vcmask 63493
    %87 = vst.msk [vmem:[#allocation2 + $0x23] sm:$0x60] %vm86, %v84
    %vm88 = vcmask 1047559
    %v89 = vsel %vm88, %v57, %v53
    %vm91 = vcmask 64518
    %92 = vst.msk [vmem:[#allocation2 + $0x2a] sm:$0xc0] %vm91, %v89
    %vm95 = vcmask 64519
    %96 = vst.msk [vmem:[#allocation2 + $0x31] sm:$0x80] %vm95, %v53
    %vm97 = vcmask 57344
    %98 = vst.msk [vmem:[#allocation2 + $0x39] sm:$0x1] %vm97, %v57
    %v99 = vld [vmem:[#allocation10] sm:$0xff]
    %v100 = vld [vmem:[#allocation10 + $0x8] sm:$0xff]
    %v101 = vld [vmem:[#allocation10 + $0x10] sm:$0xff]
    %v102 = vld [vmem:[#allocation10 + $0x18] sm:$0xff]
    %v103 = vld [vmem:[#allocation10 + $0x20] sm:$0xff]
    %v104 = vld [vmem:[#allocation10 + $0x28] sm:$0x1]
    %v105 = vld [vmem:[#allocation2] sm:$0xff]
    %v106 = vld [vmem:[#allocation2 + $0x8] sm:$0xff]
    %v107 = vld [vmem:[#allocation2 + $0x10] sm:$0xff]
    %v108 = vld [vmem:[#allocation2 + $0x18] sm:$0xff]
    %v109 = vld [vmem:[#allocation2 + $0x20] sm:$0xff]
    %v110 = vld [vmem:[#allocation2 + $0x28] sm:$0xff]
    %v111 = vld [vmem:[#allocation2 + $0x30] sm:$0xff]
    %v112 = vld [vmem:[#allocation2 + $0x38] sm:$0xff]
    %v113 = vperm.slane %v104, 0
    %v115 = vsel %vm44, %v105, 0
    %v118 = vsel %vm44, %v106, 0
    %v121 = vsel %vm44, %v107, 0
    %v124 = vsel %vm44, %v108, 0
    %v127 = vsel %vm44, %v109, 0
    %v130 = vsel %vm44, %v110, 0
    %v133 = vsel %vm44, %v111, 0
    %v136 = vsel %vm44, %v112, 0
    %138 = vmatpush.msra.mxu0 0.0
    %139 = vmatpush.msra.mxu0 0.0
    %140 = vmatpush.msra.mxu0 0.0
    %141 = vmatpush.msra.mxu0 0.0
    %142 = vmatpush.msra.mxu0 0.0
    %143 = vmatpush.msra.mxu0 0.0
    %144 = vmatpush.msra.mxu0 0.0
    %145 = vmatpush.msra.mxu0 0.0
    %146 = vmatpush.msra.mxu0 0.0
    %147 = vmatpush.msra.mxu0 0.0
    %148 = vmatpush.msra.mxu0 0.0
    %149 = vmatpush.msra.mxu0 0.0
    %150 = vmatpush.msra.mxu0 0.0
    %151 = vmatpush.msra.mxu0 0.0
    %152 = vmatpush.msra.mxu0 0.0
    %153 = vmatpush.msra.mxu0 %v99
    %154 = vmatmul.f32.gmra.mxu0 %v115
    %v155 = vpop.f32.mrf.mxu0
    %v156 = vadd.f32 %v113, %v155
    %157 = vmatmul.f32.gmra.mxu0 %v118
    %v158 = vpop.f32.mrf.mxu0
    %v159 = vadd.f32 %v113, %v158
    %160 = vmatmul.f32.gmra.mxu0 %v121
    %v161 = vpop.f32.mrf.mxu0
    %v162 = vadd.f32 %v113, %v161
    %163 = vmatmul.f32.gmra.mxu0 %v124
    %v164 = vpop.f32.mrf.mxu0
    %v165 = vadd.f32 %v113, %v164
    %166 = vmatmul.f32.gmra.mxu0 %v127
    %v167 = vpop.f32.mrf.mxu0
    %v168 = vadd.f32 %v113, %v167
    %169 = vmatmul.f32.gmra.mxu0 %v130
    %v170 = vpop.f32.mrf.mxu0
    %v171 = vadd.f32 %v113, %v170
    %172 = vmatmul.f32.gmra.mxu0 %v133
    %v173 = vpop.f32.mrf.mxu0
    %v174 = vadd.f32 %v113, %v173
    %175 = vmatmul.f32.gmra.mxu0 %v136
    %v176 = vpop.f32.mrf.mxu0
    %v177 = vadd.f32 %v113, %v176
    %178 = vdwg.mxu0
    %vm179 = vcmask 261120
    %v181 = vsel %vm179, 0.0, 0
    %183 = vmatpush.msra.mxu0 0.0
    %184 = vmatpush.msra.mxu0 0.0
    %185 = vmatpush.msra.mxu0 0.0
    %186 = vmatpush.msra.mxu0 0.0
    %187 = vmatpush.msra.mxu0 0.0
    %188 = vmatpush.msra.mxu0 0.0
    %189 = vmatpush.msra.mxu0 0.0
    %190 = vmatpush.msra.mxu0 0.0
    %191 = vmatpush.msra.mxu0 0.0
    %192 = vmatpush.msra.mxu0 0.0
    %193 = vmatpush.msra.mxu0 0.0
    %194 = vmatpush.msra.mxu0 0.0
    %195 = vmatpush.msra.mxu0 %v103
    %196 = vmatpush.msra.mxu0 %v102
    %197 = vmatpush.msra.mxu0 %v101
    %198 = vmatpush.msra.mxu0 %v100
    %199 = vmatmul.f32.gmra.mxu0 %v181
    %v200 = vpop.f32.mrf.mxu0
    %v201 = vadd.f32 0.0, %v200
    %202 = vdwg.mxu0
    %v203 = vadd.f32 %v156, %v201
    %v204 = vxor.u32 %v203, 2147483648
    %v205 = vmul.f32 %v204, 1.442695
    %v206 = vpow.pop %v205
    %v207 = vadd.f32 %v206, 1.0
    %v208 = vrcp.pop %v207
    %v209 = vmul.f32 %v207, %v208
    %v210 = vsub.f32 1.0, %v209
    %v211 = vmul.f32 %v208, %v210
    %v212 = vadd.f32 %v208, %v211
    %vm213 = vweird.f32 %v207
    %vm214 = vweird.f32 %v208
    %vm215 = vmor %vm213, %vm214
    %v216 = vsel %vm215, %v208, %v212
    %v217 = vand.u32 2147483647, %v207
    %vm218 = vcmp.eq.f32.partialorder %v217, 8.507059e+37
    %v219 = vand.u32 %v207, 2147483648
    %v220 = vor.u32 1.1754944e-38, %v219
    %v221 = vsel %vm218, %v220, %v216
    %v222 = vmul.f32 1.0, %v221
    %v223 = vmul.f32 %v222, 2.0
    %v224 = vsub.f32 %v223, 1.0
    %v225 = vmul.f32 %v222, 0.0
    %227 = vrot.lane.b32.xlu0 %v224, 64
    %v228 = vpop.permute.xlu0 %227
    %v230 = vmul.f32 %v222, %v228
    %232 = vrot.lane.b32.xlu0 %v230, 32
    %v233 = vpop.permute.xlu0 %232
    %v235 = vadd.f32 %v225, %v233
    %v236 = vtanh.pop %v235
    %238 = vrot.lane.b32.xlu0 %v236, 64
    %v239 = vpop.permute.xlu0 %238
    %v241 = vmul.f32 %v222, %v239
    %243 = vrot.lane.b32.xlu0 %v241, 32
    %v244 = vpop.permute.xlu0 %243
    %246 = vst.msk [vmem:[#allocation3] sm:$0xff] %vm179, %v244
    %v247 = vsel %vm179, %v244, 0
    %249 = vmatpush.msra.mxu0 0.0
    %250 = vmatpush.msra.mxu0 0.0
    %251 = vmatpush.msra.mxu0 0.0
    %252 = vmatpush.msra.mxu0 0.0
    %253 = vmatpush.msra.mxu0 0.0
    %254 = vmatpush.msra.mxu0 0.0
    %255 = vmatpush.msra.mxu0 0.0
    %256 = vmatpush.msra.mxu0 0.0
    %257 = vmatpush.msra.mxu0 0.0
    %258 = vmatpush.msra.mxu0 0.0
    %259 = vmatpush.msra.mxu0 0.0
    %260 = vmatpush.msra.mxu0 0.0
    %261 = vmatpush.msra.mxu0 %v103
    %262 = vmatpush.msra.mxu0 %v102
    %263 = vmatpush.msra.mxu0 %v101
    %264 = vmatpush.msra.mxu0 %v100
    %265 = vmatmul.f32.gmra.mxu0 %v247
    %v266 = vpop.f32.mrf.mxu0
    %v267 = vadd.f32 0.0, %v266
    %268 = vdwg.mxu0
    %v269 = vadd.f32 %v159, %v267
    %v270 = vxor.u32 %v269, 2147483648
    %v271 = vmul.f32 %v270, 1.442695
    %v272 = vpow.pop %v271
    %v273 = vadd.f32 %v272, 1.0
    %v274 = vrcp.pop %v273
    %v275 = vmul.f32 %v273, %v274
    %v276 = vsub.f32 1.0, %v275
    %v277 = vmul.f32 %v274, %v276
    %v278 = vadd.f32 %v274, %v277
    %vm279 = vweird.f32 %v273
    %vm280 = vweird.f32 %v274
    %vm281 = vmor %vm279, %vm280
    %v282 = vsel %vm281, %v274, %v278
    %v283 = vand.u32 2147483647, %v273
    %vm284 = vcmp.eq.f32.partialorder %v283, 8.507059e+37
    %v285 = vand.u32 %v273, 2147483648
    %v286 = vor.u32 1.1754944e-38, %v285
    %v287 = vsel %vm284, %v286, %v282
    %v288 = vmul.f32 1.0, %v287
    %v289 = vmul.f32 %v288, 2.0
    %v290 = vsub.f32 %v289, 1.0
    %v291 = vmul.f32 %v288, %v235
    %293 = vrot.lane.b32.xlu0 %v290, 64
    %v294 = vpop.permute.xlu0 %293
    %v296 = vmul.f32 %v288, %v294
    %298 = vrot.lane.b32.xlu0 %v296, 32
    %v299 = vpop.permute.xlu0 %298
    %v301 = vadd.f32 %v291, %v299
    %v302 = vtanh.pop %v301
    %304 = vrot.lane.b32.xlu0 %v302, 64
    %v305 = vpop.permute.xlu0 %304
    %v307 = vmul.f32 %v288, %v305
    %309 = vrot.lane.b32.xlu0 %v307, 32
    %v310 = vpop.permute.xlu0 %309
    %312 = vst.msk [vmem:[#allocation3 + $0x8] sm:$0xff] %vm179, %v310
    %v313 = vsel %vm179, %v310, 0
    %315 = vmatpush.msra.mxu0 0.0
    %316 = vmatpush.msra.mxu0 0.0
    %317 = vmatpush.msra.mxu0 0.0
    %318 = vmatpush.msra.mxu0 0.0
    %319 = vmatpush.msra.mxu0 0.0
    %320 = vmatpush.msra.mxu0 0.0
    %321 = vmatpush.msra.mxu0 0.0
    %322 = vmatpush.msra.mxu0 0.0
    %323 = vmatpush.msra.mxu0 0.0
    %324 = vmatpush.msra.mxu0 0.0
    %325 = vmatpush.msra.mxu0 0.0
    %326 = vmatpush.msra.mxu0 0.0
    %327 = vmatpush.msra.mxu0 %v103
    %328 = vmatpush.msra.mxu0 %v102
    %329 = vmatpush.msra.mxu0 %v101
    %330 = vmatpush.msra.mxu0 %v100
    %331 = vmatmul.f32.gmra.mxu0 %v313
    %v332 = vpop.f32.mrf.mxu0
    %v333 = vadd.f32 0.0, %v332
    %334 = vdwg.mxu0
    %v335 = vadd.f32 %v162, %v333
    %v336 = vxor.u32 %v335, 2147483648
    %v337 = vmul.f32 %v336, 1.442695
    %v338 = vpow.pop %v337
    %v339 = vadd.f32 %v338, 1.0
    %v340 = vrcp.pop %v339
    %v341 = vmul.f32 %v339, %v340
    %v342 = vsub.f32 1.0, %v341
    %v343 = vmul.f32 %v340, %v342
    %v344 = vadd.f32 %v340, %v343
    %vm345 = vweird.f32 %v339
    %vm346 = vweird.f32 %v340
    %vm347 = vmor %vm345, %vm346
    %v348 = vsel %vm347, %v340, %v344
    %v349 = vand.u32 2147483647, %v339
    %vm350 = vcmp.eq.f32.partialorder %v349, 8.507059e+37
    %v351 = vand.u32 %v339, 2147483648
    %v352 = vor.u32 1.1754944e-38, %v351
    %v353 = vsel %vm350, %v352, %v348
    %v354 = vmul.f32 1.0, %v353
    %v355 = vmul.f32 %v354, 2.0
    %v356 = vsub.f32 %v355, 1.0
    %v357 = vmul.f32 %v354, %v301
    %359 = vrot.lane.b32.xlu0 %v356, 64
    %v360 = vpop.permute.xlu0 %359
    %v362 = vmul.f32 %v354, %v360
    %364 = vrot.lane.b32.xlu0 %v362, 32
    %v365 = vpop.permute.xlu0 %364
    %v367 = vadd.f32 %v357, %v365
    %v368 = vtanh.pop %v367
    %370 = vrot.lane.b32.xlu0 %v368, 64
    %v371 = vpop.permute.xlu0 %370
    %v373 = vmul.f32 %v354, %v371
    %375 = vrot.lane.b32.xlu0 %v373, 32
    %v376 = vpop.permute.xlu0 %375
    %378 = vst.msk [vmem:[#allocation3 + $0x10] sm:$0xff] %vm179, %v376
    %v379 = vsel %vm179, %v376, 0
    %381 = vmatpush.msra.mxu0 0.0
    %382 = vmatpush.msra.mxu0 0.0
    %383 = vmatpush.msra.mxu0 0.0
    %384 = vmatpush.msra.mxu0 0.0
    %385 = vmatpush.msra.mxu0 0.0
    %386 = vmatpush.msra.mxu0 0.0
    %387 = vmatpush.msra.mxu0 0.0
    %388 = vmatpush.msra.mxu0 0.0
    %389 = vmatpush.msra.mxu0 0.0
    %390 = vmatpush.msra.mxu0 0.0
    %391 = vmatpush.msra.mxu0 0.0
    %392 = vmatpush.msra.mxu0 0.0
    %393 = vmatpush.msra.mxu0 %v103
    %394 = vmatpush.msra.mxu0 %v102
    %395 = vmatpush.msra.mxu0 %v101
    %396 = vmatpush.msra.mxu0 %v100
    %397 = vmatmul.f32.gmra.mxu0 %v379
    %v398 = vpop.f32.mrf.mxu0
    %v399 = vadd.f32 0.0, %v398
    %400 = vdwg.mxu0
    %v401 = vadd.f32 %v165, %v399
    %v402 = vxor.u32 %v401, 2147483648
    %v403 = vmul.f32 %v402, 1.442695
    %v404 = vpow.pop %v403
    %v405 = vadd.f32 %v404, 1.0
    %v406 = vrcp.pop %v405
    %v407 = vmul.f32 %v405, %v406
    %v408 = vsub.f32 1.0, %v407
    %v409 = vmul.f32 %v406, %v408
    %v410 = vadd.f32 %v406, %v409
    %vm411 = vweird.f32 %v405
    %vm412 = vweird.f32 %v406
    %vm413 = vmor %vm411, %vm412
    %v414 = vsel %vm413, %v406, %v410
    %v415 = vand.u32 2147483647, %v405
    %vm416 = vcmp.eq.f32.partialorder %v415, 8.507059e+37
    %v417 = vand.u32 %v405, 2147483648
    %v418 = vor.u32 1.1754944e-38, %v417
    %v419 = vsel %vm416, %v418, %v414
    %v420 = vmul.f32 1.0, %v419
    %v421 = vmul.f32 %v420, 2.0
    %v422 = vsub.f32 %v421, 1.0
    %v423 = vmul.f32 %v420, %v367
    %425 = vrot.lane.b32.xlu0 %v422, 64
    %v426 = vpop.permute.xlu0 %425
    %v428 = vmul.f32 %v420, %v426
    %430 = vrot.lane.b32.xlu0 %v428, 32
    %v431 = vpop.permute.xlu0 %430
    %v433 = vadd.f32 %v423, %v431
    %v434 = vtanh.pop %v433
    %436 = vrot.lane.b32.xlu0 %v434, 64
    %v437 = vpop.permute.xlu0 %436
    %v439 = vmul.f32 %v420, %v437
    %441 = vrot.lane.b32.xlu0 %v439, 32
    %v442 = vpop.permute.xlu0 %441
    %444 = vst.msk [vmem:[#allocation3 + $0x18] sm:$0xff] %vm179, %v442
    %v445 = vsel %vm179, %v442, 0
    %447 = vmatpush.msra.mxu0 0.0
    %448 = vmatpush.msra.mxu0 0.0
    %449 = vmatpush.msra.mxu0 0.0
    %450 = vmatpush.msra.mxu0 0.0
    %451 = vmatpush.msra.mxu0 0.0
    %452 = vmatpush.msra.mxu0 0.0
    %453 = vmatpush.msra.mxu0 0.0
    %454 = vmatpush.msra.mxu0 0.0
    %455 = vmatpush.msra.mxu0 0.0
    %456 = vmatpush.msra.mxu0 0.0
    %457 = vmatpush.msra.mxu0 0.0
    %458 = vmatpush.msra.mxu0 0.0
    %459 = vmatpush.msra.mxu0 %v103
    %460 = vmatpush.msra.mxu0 %v102
    %461 = vmatpush.msra.mxu0 %v101
    %462 = vmatpush.msra.mxu0 %v100
    %463 = vmatmul.f32.gmra.mxu0 %v445
    %v464 = vpop.f32.mrf.mxu0
    %v465 = vadd.f32 0.0, %v464
    %466 = vdwg.mxu0
    %v467 = vadd.f32 %v168, %v465
    %v468 = vxor.u32 %v467, 2147483648
    %v469 = vmul.f32 %v468, 1.442695
    %v470 = vpow.pop %v469
    %v471 = vadd.f32 %v470, 1.0
    %v472 = vrcp.pop %v471
    %v473 = vmul.f32 %v471, %v472
    %v474 = vsub.f32 1.0, %v473
    %v475 = vmul.f32 %v472, %v474
    %v476 = vadd.f32 %v472, %v475
    %vm477 = vweird.f32 %v471
    %vm478 = vweird.f32 %v472
    %vm479 = vmor %vm477, %vm478
    %v480 = vsel %vm479, %v472, %v476
    %v481 = vand.u32 2147483647, %v471
    %vm482 = vcmp.eq.f32.partialorder %v481, 8.507059e+37
    %v483 = vand.u32 %v471, 2147483648
    %v484 = vor.u32 1.1754944e-38, %v483
    %v485 = vsel %vm482, %v484, %v480
    %v486 = vmul.f32 1.0, %v485
    %v487 = vmul.f32 %v486, 2.0
    %v488 = vsub.f32 %v487, 1.0
    %v489 = vmul.f32 %v486, %v433
    %491 = vrot.lane.b32.xlu0 %v488, 64
    %v492 = vpop.permute.xlu0 %491
    %v494 = vmul.f32 %v486, %v492
    %496 = vrot.lane.b32.xlu0 %v494, 32
    %v497 = vpop.permute.xlu0 %496
    %v499 = vadd.f32 %v489, %v497
    %v500 = vtanh.pop %v499
    %502 = vrot.lane.b32.xlu0 %v500, 64
    %v503 = vpop.permute.xlu0 %502
    %v505 = vmul.f32 %v486, %v503
    %507 = vrot.lane.b32.xlu0 %v505, 32
    %v508 = vpop.permute.xlu0 %507
    %510 = vst.msk [vmem:[#allocation3 + $0x20] sm:$0xff] %vm179, %v508
    %v511 = vsel %vm179, %v508, 0
    %513 = vmatpush.msra.mxu0 0.0
    %514 = vmatpush.msra.mxu0 0.0
    %515 = vmatpush.msra.mxu0 0.0
    %516 = vmatpush.msra.mxu0 0.0
    %517 = vmatpush.msra.mxu0 0.0
    %518 = vmatpush.msra.mxu0 0.0
    %519 = vmatpush.msra.mxu0 0.0
    %520 = vmatpush.msra.mxu0 0.0
    %521 = vmatpush.msra.mxu0 0.0
    %522 = vmatpush.msra.mxu0 0.0
    %523 = vmatpush.msra.mxu0 0.0
    %524 = vmatpush.msra.mxu0 0.0
    %525 = vmatpush.msra.mxu0 %v103
    %526 = vmatpush.msra.mxu0 %v102
    %527 = vmatpush.msra.mxu0 %v101
    %528 = vmatpush.msra.mxu0 %v100
    %529 = vmatmul.f32.gmra.mxu0 %v511
    %v530 = vpop.f32.mrf.mxu0
    %v531 = vadd.f32 0.0, %v530
    %532 = vdwg.mxu0
    %v533 = vadd.f32 %v171, %v531
    %v534 = vxor.u32 %v533, 2147483648
    %v535 = vmul.f32 %v534, 1.442695
    %v536 = vpow.pop %v535
    %v537 = vadd.f32 %v536, 1.0
    %v538 = vrcp.pop %v537
    %v539 = vmul.f32 %v537, %v538
    %v540 = vsub.f32 1.0, %v539
    %v541 = vmul.f32 %v538, %v540
    %v542 = vadd.f32 %v538, %v541
    %vm543 = vweird.f32 %v537
    %vm544 = vweird.f32 %v538
    %vm545 = vmor %vm543, %vm544
    %v546 = vsel %vm545, %v538, %v542
    %v547 = vand.u32 2147483647, %v537
    %vm548 = vcmp.eq.f32.partialorder %v547, 8.507059e+37
    %v549 = vand.u32 %v537, 2147483648
    %v550 = vor.u32 1.1754944e-38, %v549
    %v551 = vsel %vm548, %v550, %v546
    %v552 = vmul.f32 1.0, %v551
    %v553 = vmul.f32 %v552, 2.0
    %v554 = vsub.f32 %v553, 1.0
    %v555 = vmul.f32 %v552, %v499
    %557 = vrot.lane.b32.xlu0 %v554, 64
    %v558 = vpop.permute.xlu0 %557
    %v560 = vmul.f32 %v552, %v558
    %562 = vrot.lane.b32.xlu0 %v560, 32
    %v563 = vpop.permute.xlu0 %562
    %v565 = vadd.f32 %v555, %v563
    %v566 = vtanh.pop %v565
    %568 = vrot.lane.b32.xlu0 %v566, 64
    %v569 = vpop.permute.xlu0 %568
    %v571 = vmul.f32 %v552, %v569
    %573 = vrot.lane.b32.xlu0 %v571, 32
    %v574 = vpop.permute.xlu0 %573
    %576 = vst.msk [vmem:[#allocation3 + $0x28] sm:$0xff] %vm179, %v574
    %v577 = vsel %vm179, %v574, 0
    %579 = vmatpush.msra.mxu0 0.0
    %580 = vmatpush.msra.mxu0 0.0
    %581 = vmatpush.msra.mxu0 0.0
    %582 = vmatpush.msra.mxu0 0.0
    %583 = vmatpush.msra.mxu0 0.0
    %584 = vmatpush.msra.mxu0 0.0
    %585 = vmatpush.msra.mxu0 0.0
    %586 = vmatpush.msra.mxu0 0.0
    %587 = vmatpush.msra.mxu0 0.0
    %588 = vmatpush.msra.mxu0 0.0
    %589 = vmatpush.msra.mxu0 0.0
    %590 = vmatpush.msra.mxu0 0.0
    %591 = vmatpush.msra.mxu0 %v103
    %592 = vmatpush.msra.mxu0 %v102
    %593 = vmatpush.msra.mxu0 %v101
    %594 = vmatpush.msra.mxu0 %v100
    %595 = vmatmul.f32.gmra.mxu0 %v577
    %v596 = vpop.f32.mrf.mxu0
    %v597 = vadd.f32 0.0, %v596
    %598 = vdwg.mxu0
    %v599 = vadd.f32 %v174, %v597
    %v600 = vxor.u32 %v599, 2147483648
    %v601 = vmul.f32 %v600, 1.442695
    %v602 = vpow.pop %v601
    %v603 = vadd.f32 %v602, 1.0
    %v604 = vrcp.pop %v603
    %v605 = vmul.f32 %v603, %v604
    %v606 = vsub.f32 1.0, %v605
    %v607 = vmul.f32 %v604, %v606
    %v608 = vadd.f32 %v604, %v607
    %vm609 = vweird.f32 %v603
    %vm610 = vweird.f32 %v604
    %vm611 = vmor %vm609, %vm610
    %v612 = vsel %vm611, %v604, %v608
    %v613 = vand.u32 2147483647, %v603
    %vm614 = vcmp.eq.f32.partialorder %v613, 8.507059e+37
    %v615 = vand.u32 %v603, 2147483648
    %v616 = vor.u32 1.1754944e-38, %v615
    %v617 = vsel %vm614, %v616, %v612
    %v618 = vmul.f32 1.0, %v617
    %v619 = vmul.f32 %v618, 2.0
    %v620 = vsub.f32 %v619, 1.0
    %v621 = vmul.f32 %v618, %v565
    %623 = vrot.lane.b32.xlu0 %v620, 64
    %v624 = vpop.permute.xlu0 %623
    %v626 = vmul.f32 %v618, %v624
    %628 = vrot.lane.b32.xlu0 %v626, 32
    %v629 = vpop.permute.xlu0 %628
    %v631 = vadd.f32 %v621, %v629
    %v632 = vtanh.pop %v631
    %634 = vrot.lane.b32.xlu0 %v632, 64
    %v635 = vpop.permute.xlu0 %634
    %v637 = vmul.f32 %v618, %v635
    %639 = vrot.lane.b32.xlu0 %v637, 32
    %v640 = vpop.permute.xlu0 %639
    %642 = vst.msk [vmem:[#allocation3 + $0x30] sm:$0xff] %vm179, %v640
    %v643 = vsel %vm179, %v640, 0
    %645 = vmatpush.msra.mxu0 0.0
    %646 = vmatpush.msra.mxu0 0.0
    %647 = vmatpush.msra.mxu0 0.0
    %648 = vmatpush.msra.mxu0 0.0
    %649 = vmatpush.msra.mxu0 0.0
    %650 = vmatpush.msra.mxu0 0.0
    %651 = vmatpush.msra.mxu0 0.0
    %652 = vmatpush.msra.mxu0 0.0
    %653 = vmatpush.msra.mxu0 0.0
    %654 = vmatpush.msra.mxu0 0.0
    %655 = vmatpush.msra.mxu0 0.0
    %656 = vmatpush.msra.mxu0 0.0
    %657 = vmatpush.msra.mxu0 %v103
    %658 = vmatpush.msra.mxu0 %v102
    %659 = vmatpush.msra.mxu0 %v101
    %660 = vmatpush.msra.mxu0 %v100
    %661 = vmatmul.f32.gmra.mxu0 %v643
    %v662 = vpop.f32.mrf.mxu0
    %v663 = vadd.f32 0.0, %v662
    %664 = vdwg.mxu0
    %v665 = vadd.f32 %v177, %v663
    %v666 = vxor.u32 %v665, 2147483648
    %v667 = vmul.f32 %v666, 1.442695
    %v668 = vpow.pop %v667
    %v669 = vadd.f32 %v668, 1.0
    %v670 = vrcp.pop %v669
    %v671 = vmul.f32 %v669, %v670
    %v672 = vsub.f32 1.0, %v671
    %v673 = vmul.f32 %v670, %v672
    %v674 = vadd.f32 %v670, %v673
    %vm675 = vweird.f32 %v669
    %vm676 = vweird.f32 %v670
    %vm677 = vmor %vm675, %vm676
    %v678 = vsel %vm677, %v670, %v674
    %v679 = vand.u32 2147483647, %v669
    %vm680 = vcmp.eq.f32.partialorder %v679, 8.507059e+37
    %v681 = vand.u32 %v669, 2147483648
    %v682 = vor.u32 1.1754944e-38, %v681
    %v683 = vsel %vm680, %v682, %v678
    %v684 = vmul.f32 1.0, %v683
    %v685 = vmul.f32 %v684, 2.0
    %v686 = vsub.f32 %v685, 1.0
    %v687 = vmul.f32 %v684, %v631
    %689 = vrot.lane.b32.xlu0 %v686, 64
    %v690 = vpop.permute.xlu0 %689
    %v692 = vmul.f32 %v684, %v690
    %694 = vrot.lane.b32.xlu0 %v692, 32
    %v695 = vpop.permute.xlu0 %694
    %v697 = vadd.f32 %v687, %v695
    %v698 = vtanh.pop %v697
    %700 = vrot.lane.b32.xlu0 %v698, 64
    %v701 = vpop.permute.xlu0 %700
    %v703 = vmul.f32 %v684, %v701
    %705 = vrot.lane.b32.xlu0 %v703, 32
    %v706 = vpop.permute.xlu0 %705
    %708 = vst.msk [vmem:[#allocation3 + $0x38] sm:$0xff] %vm179, %v706
    %v709 = vld [vmem:[#allocation10 + $0x30] sm:$0xff]
    %v710 = vld [vmem:[#allocation10 + $0x38] sm:$0xff]
    %v711 = vld [vmem:[#allocation10 + $0x40] sm:$0xff]
    %v712 = vld [vmem:[#allocation10 + $0x48] sm:$0xff]
    %v713 = vld [vmem:[#allocation10 + $0x50] sm:$0xff]
    %v714 = vld [vmem:[#allocation10 + $0x58] sm:$0xff]
    %v715 = vld [vmem:[#allocation10 + $0x60] sm:$0xff]
    %v716 = vld [vmem:[#allocation10 + $0x68] sm:$0xff]
    %v717 = vld [vmem:[#allocation10 + $0x70] sm:$0x1]
    %v718 = vld [vmem:[#allocation3] sm:$0xff]
    %v719 = vld [vmem:[#allocation3 + $0x8] sm:$0xff]
    %v720 = vld [vmem:[#allocation3 + $0x10] sm:$0xff]
    %v721 = vld [vmem:[#allocation3 + $0x18] sm:$0xff]
    %v722 = vld [vmem:[#allocation3 + $0x20] sm:$0xff]
    %v723 = vld [vmem:[#allocation3 + $0x28] sm:$0xff]
    %v724 = vld [vmem:[#allocation3 + $0x30] sm:$0xff]
    %v725 = vld [vmem:[#allocation3 + $0x38] sm:$0xff]
    %v726 = vperm.slane %v717, 0
    %v728 = vsel %vm179, %v718, 0
    %v731 = vsel %vm179, %v719, 0
    %v734 = vsel %vm179, %v720, 0
    %v737 = vsel %vm179, %v721, 0
    %v740 = vsel %vm179, %v722, 0
    %v743 = vsel %vm179, %v723, 0
    %v746 = vsel %vm179, %v724, 0
    %v749 = vsel %vm179, %v725, 0
    %751 = vmatpush.msra.mxu0 0.0
    %752 = vmatpush.msra.mxu0 0.0
    %753 = vmatpush.msra.mxu0 0.0
    %754 = vmatpush.msra.mxu0 0.0
    %755 = vmatpush.msra.mxu0 0.0
    %756 = vmatpush.msra.mxu0 0.0
    %757 = vmatpush.msra.mxu0 0.0
    %758 = vmatpush.msra.mxu0 0.0
    %759 = vmatpush.msra.mxu0 0.0
    %760 = vmatpush.msra.mxu0 0.0
    %761 = vmatpush.msra.mxu0 0.0
    %762 = vmatpush.msra.mxu0 0.0
    %763 = vmatpush.msra.mxu0 %v712
    %764 = vmatpush.msra.mxu0 %v711
    %765 = vmatpush.msra.mxu0 %v710
    %766 = vmatpush.msra.mxu0 %v709
    %767 = vmatmul.f32.gmra.mxu0 %v728
    %v768 = vpop.f32.mrf.mxu0
    %v769 = vadd.f32 %v726, %v768
    %770 = vmatmul.f32.gmra.mxu0 %v731
    %v771 = vpop.f32.mrf.mxu0
    %v772 = vadd.f32 %v726, %v771
    %773 = vmatmul.f32.gmra.mxu0 %v734
    %v774 = vpop.f32.mrf.mxu0
    %v775 = vadd.f32 %v726, %v774
    %776 = vmatmul.f32.gmra.mxu0 %v737
    %v777 = vpop.f32.mrf.mxu0
    %v778 = vadd.f32 %v726, %v777
    %779 = vmatmul.f32.gmra.mxu0 %v740
    %v780 = vpop.f32.mrf.mxu0
    %v781 = vadd.f32 %v726, %v780
    %782 = vmatmul.f32.gmra.mxu0 %v743
    %v783 = vpop.f32.mrf.mxu0
    %v784 = vadd.f32 %v726, %v783
    %785 = vmatmul.f32.gmra.mxu0 %v746
    %v786 = vpop.f32.mrf.mxu0
    %v787 = vadd.f32 %v726, %v786
    %788 = vmatmul.f32.gmra.mxu0 %v749
    %v789 = vpop.f32.mrf.mxu0
    %v790 = vadd.f32 %v726, %v789
    %791 = vdwg.mxu0
    %792 = vmatpush.msra.mxu0 0.0
    %793 = vmatpush.msra.mxu0 0.0
    %794 = vmatpush.msra.mxu0 0.0
    %795 = vmatpush.msra.mxu0 0.0
    %796 = vmatpush.msra.mxu0 0.0
    %797 = vmatpush.msra.mxu0 0.0
    %798 = vmatpush.msra.mxu0 0.0
    %799 = vmatpush.msra.mxu0 0.0
    %800 = vmatpush.msra.mxu0 0.0
    %801 = vmatpush.msra.mxu0 0.0
    %802 = vmatpush.msra.mxu0 0.0
    %803 = vmatpush.msra.mxu0 0.0
    %804 = vmatpush.msra.mxu0 %v716
    %805 = vmatpush.msra.mxu0 %v715
    %806 = vmatpush.msra.mxu0 %v714
    %807 = vmatpush.msra.mxu0 %v713
    %808 = vmatmul.f32.gmra.mxu0 %v181
    %v809 = vpop.f32.mrf.mxu0
    %v810 = vadd.f32 0.0, %v809
    %811 = vdwg.mxu0
    %v812 = vadd.f32 %v769, %v810
    %v813 = vxor.u32 %v812, 2147483648
    %v814 = vmul.f32 %v813, 1.442695
    %v815 = vpow.pop %v814
    %v816 = vadd.f32 %v815, 1.0
    %v817 = vrcp.pop %v816
    %v818 = vmul.f32 %v816, %v817
    %v819 = vsub.f32 1.0, %v818
    %v820 = vmul.f32 %v817, %v819
    %v821 = vadd.f32 %v817, %v820
    %vm822 = vweird.f32 %v816
    %vm823 = vweird.f32 %v817
    %vm824 = vmor %vm822, %vm823
    %v825 = vsel %vm824, %v817, %v821
    %v826 = vand.u32 2147483647, %v816
    %vm827 = vcmp.eq.f32.partialorder %v826, 8.507059e+37
    %v828 = vand.u32 %v816, 2147483648
    %v829 = vor.u32 1.1754944e-38, %v828
    %v830 = vsel %vm827, %v829, %v825
    %v831 = vmul.f32 1.0, %v830
    %v832 = vmul.f32 %v831, 2.0
    %v833 = vsub.f32 %v832, 1.0
    %v834 = vmul.f32 %v831, 0.0
    %836 = vrot.lane.b32.xlu0 %v833, 64
    %v837 = vpop.permute.xlu0 %836
    %v839 = vmul.f32 %v831, %v837
    %841 = vrot.lane.b32.xlu0 %v839, 32
    %v842 = vpop.permute.xlu0 %841
    %v844 = vadd.f32 %v834, %v842
    %v845 = vtanh.pop %v844
    %847 = vrot.lane.b32.xlu0 %v845, 64
    %v848 = vpop.permute.xlu0 %847
    %v850 = vmul.f32 %v831, %v848
    %852 = vrot.lane.b32.xlu0 %v850, 32
    %v853 = vpop.permute.xlu0 %852
    %855 = vst.msk [vmem:[#allocation4] sm:$0xff] %vm179, %v853
    %v856 = vsel %vm179, %v853, 0
    %858 = vmatpush.msra.mxu0 0.0
    %859 = vmatpush.msra.mxu0 0.0
    %860 = vmatpush.msra.mxu0 0.0
    %861 = vmatpush.msra.mxu0 0.0
    %862 = vmatpush.msra.mxu0 0.0
    %863 = vmatpush.msra.mxu0 0.0
    %864 = vmatpush.msra.mxu0 0.0
    %865 = vmatpush.msra.mxu0 0.0
    %866 = vmatpush.msra.mxu0 0.0
    %867 = vmatpush.msra.mxu0 0.0
    %868 = vmatpush.msra.mxu0 0.0
    %869 = vmatpush.msra.mxu0 0.0
    %870 = vmatpush.msra.mxu0 %v716
    %871 = vmatpush.msra.mxu0 %v715
    %872 = vmatpush.msra.mxu0 %v714
    %873 = vmatpush.msra.mxu0 %v713
    %874 = vmatmul.f32.gmra.mxu0 %v856
    %v875 = vpop.f32.mrf.mxu0
    %v876 = vadd.f32 0.0, %v875
    %877 = vdwg.mxu0
    %v878 = vadd.f32 %v772, %v876
    %v879 = vxor.u32 %v878, 2147483648
    %v880 = vmul.f32 %v879, 1.442695
    %v881 = vpow.pop %v880
    %v882 = vadd.f32 %v881, 1.0
    %v883 = vrcp.pop %v882
    %v884 = vmul.f32 %v882, %v883
    %v885 = vsub.f32 1.0, %v884
    %v886 = vmul.f32 %v883, %v885
    %v887 = vadd.f32 %v883, %v886
    %vm888 = vweird.f32 %v882
    %vm889 = vweird.f32 %v883
    %vm890 = vmor %vm888, %vm889
    %v891 = vsel %vm890, %v883, %v887
    %v892 = vand.u32 2147483647, %v882
    %vm893 = vcmp.eq.f32.partialorder %v892, 8.507059e+37
    %v894 = vand.u32 %v882, 2147483648
    %v895 = vor.u32 1.1754944e-38, %v894
    %v896 = vsel %vm893, %v895, %v891
    %v897 = vmul.f32 1.0, %v896
    %v898 = vmul.f32 %v897, 2.0
    %v899 = vsub.f32 %v898, 1.0
    %v900 = vmul.f32 %v897, %v844
    %902 = vrot.lane.b32.xlu0 %v899, 64
    %v903 = vpop.permute.xlu0 %902
    %v905 = vmul.f32 %v897, %v903
    %907 = vrot.lane.b32.xlu0 %v905, 32
    %v908 = vpop.permute.xlu0 %907
    %v910 = vadd.f32 %v900, %v908
    %v911 = vtanh.pop %v910
    %913 = vrot.lane.b32.xlu0 %v911, 64
    %v914 = vpop.permute.xlu0 %913
    %v916 = vmul.f32 %v897, %v914
    %918 = vrot.lane.b32.xlu0 %v916, 32
    %v919 = vpop.permute.xlu0 %918
    %921 = vst.msk [vmem:[#allocation4 + $0x8] sm:$0xff] %vm179, %v919
    %v922 = vsel %vm179, %v919, 0
    %924 = vmatpush.msra.mxu0 0.0
    %925 = vmatpush.msra.mxu0 0.0
    %926 = vmatpush.msra.mxu0 0.0
    %927 = vmatpush.msra.mxu0 0.0
    %928 = vmatpush.msra.mxu0 0.0
    %929 = vmatpush.msra.mxu0 0.0
    %930 = vmatpush.msra.mxu0 0.0
    %931 = vmatpush.msra.mxu0 0.0
    %932 = vmatpush.msra.mxu0 0.0
    %933 = vmatpush.msra.mxu0 0.0
    %934 = vmatpush.msra.mxu0 0.0
    %935 = vmatpush.msra.mxu0 0.0
    %936 = vmatpush.msra.mxu0 %v716
    %937 = vmatpush.msra.mxu0 %v715
    %938 = vmatpush.msra.mxu0 %v714
    %939 = vmatpush.msra.mxu0 %v713
    %940 = vmatmul.f32.gmra.mxu0 %v922
    %v941 = vpop.f32.mrf.mxu0
    %v942 = vadd.f32 0.0, %v941
    %943 = vdwg.mxu0
    %v944 = vadd.f32 %v775, %v942
    %v945 = vxor.u32 %v944, 2147483648
    %v946 = vmul.f32 %v945, 1.442695
    %v947 = vpow.pop %v946
    %v948 = vadd.f32 %v947, 1.0
    %v949 = vrcp.pop %v948
    %v950 = vmul.f32 %v948, %v949
    %v951 = vsub.f32 1.0, %v950
    %v952 = vmul.f32 %v949, %v951
    %v953 = vadd.f32 %v949, %v952
    %vm954 = vweird.f32 %v948
    %vm955 = vweird.f32 %v949
    %vm956 = vmor %vm954, %vm955
    %v957 = vsel %vm956, %v949, %v953
    %v958 = vand.u32 2147483647, %v948
    %vm959 = vcmp.eq.f32.partialorder %v958, 8.507059e+37
    %v960 = vand.u32 %v948, 2147483648
    %v961 = vor.u32 1.1754944e-38, %v960
    %v962 = vsel %vm959, %v961, %v957
    %v963 = vmul.f32 1.0, %v962
    %v964 = vmul.f32 %v963, 2.0
    %v965 = vsub.f32 %v964, 1.0
    %v966 = vmul.f32 %v963, %v910
    %968 = vrot.lane.b32.xlu0 %v965, 64
    %v969 = vpop.permute.xlu0 %968
    %v971 = vmul.f32 %v963, %v969
    %973 = vrot.lane.b32.xlu0 %v971, 32
    %v974 = vpop.permute.xlu0 %973
    %v976 = vadd.f32 %v966, %v974
    %v977 = vtanh.pop %v976
    %979 = vrot.lane.b32.xlu0 %v977, 64
    %v980 = vpop.permute.xlu0 %979
    %v982 = vmul.f32 %v963, %v980
    %984 = vrot.lane.b32.xlu0 %v982, 32
    %v985 = vpop.permute.xlu0 %984
    %987 = vst.msk [vmem:[#allocation4 + $0x10] sm:$0xff] %vm179, %v985
    %v988 = vsel %vm179, %v985, 0
    %990 = vmatpush.msra.mxu0 0.0
    %991 = vmatpush.msra.mxu0 0.0
    %992 = vmatpush.msra.mxu0 0.0
    %993 = vmatpush.msra.mxu0 0.0
    %994 = vmatpush.msra.mxu0 0.0
    %995 = vmatpush.msra.mxu0 0.0
    %996 = vmatpush.msra.mxu0 0.0
    %997 = vmatpush.msra.mxu0 0.0
    %998 = vmatpush.msra.mxu0 0.0
    %999 = vmatpush.msra.mxu0 0.0
    %1000 = vmatpush.msra.mxu0 0.0
    %1001 = vmatpush.msra.mxu0 0.0
    %1002 = vmatpush.msra.mxu0 %v716
    %1003 = vmatpush.msra.mxu0 %v715
    %1004 = vmatpush.msra.mxu0 %v714
    %1005 = vmatpush.msra.mxu0 %v713
    %1006 = vmatmul.f32.gmra.mxu0 %v988
    %v1007 = vpop.f32.mrf.mxu0
    %v1008 = vadd.f32 0.0, %v1007
    %1009 = vdwg.mxu0
    %v1010 = vadd.f32 %v778, %v1008
    %v1011 = vxor.u32 %v1010, 2147483648
    %v1012 = vmul.f32 %v1011, 1.442695
    %v1013 = vpow.pop %v1012
    %v1014 = vadd.f32 %v1013, 1.0
    %v1015 = vrcp.pop %v1014
    %v1016 = vmul.f32 %v1014, %v1015
    %v1017 = vsub.f32 1.0, %v1016
    %v1018 = vmul.f32 %v1015, %v1017
    %v1019 = vadd.f32 %v1015, %v1018
    %vm1020 = vweird.f32 %v1014
    %vm1021 = vweird.f32 %v1015
    %vm1022 = vmor %vm1020, %vm1021
    %v1023 = vsel %vm1022, %v1015, %v1019
    %v1024 = vand.u32 2147483647, %v1014
    %vm1025 = vcmp.eq.f32.partialorder %v1024, 8.507059e+37
    %v1026 = vand.u32 %v1014, 2147483648
    %v1027 = vor.u32 1.1754944e-38, %v1026
    %v1028 = vsel %vm1025, %v1027, %v1023
    %v1029 = vmul.f32 1.0, %v1028
    %v1030 = vmul.f32 %v1029, 2.0
    %v1031 = vsub.f32 %v1030, 1.0
    %v1032 = vmul.f32 %v1029, %v976
    %1034 = vrot.lane.b32.xlu0 %v1031, 64
    %v1035 = vpop.permute.xlu0 %1034
    %v1037 = vmul.f32 %v1029, %v1035
    %1039 = vrot.lane.b32.xlu0 %v1037, 32
    %v1040 = vpop.permute.xlu0 %1039
    %v1042 = vadd.f32 %v1032, %v1040
    %v1043 = vtanh.pop %v1042
    %1045 = vrot.lane.b32.xlu0 %v1043, 64
    %v1046 = vpop.permute.xlu0 %1045
    %v1048 = vmul.f32 %v1029, %v1046
    %1050 = vrot.lane.b32.xlu0 %v1048, 32
    %v1051 = vpop.permute.xlu0 %1050
    %1053 = vst.msk [vmem:[#allocation4 + $0x18] sm:$0xff] %vm179, %v1051
    %v1054 = vsel %vm179, %v1051, 0
    %1056 = vmatpush.msra.mxu0 0.0
    %1057 = vmatpush.msra.mxu0 0.0
    %1058 = vmatpush.msra.mxu0 0.0
    %1059 = vmatpush.msra.mxu0 0.0
    %1060 = vmatpush.msra.mxu0 0.0
    %1061 = vmatpush.msra.mxu0 0.0
    %1062 = vmatpush.msra.mxu0 0.0
    %1063 = vmatpush.msra.mxu0 0.0
    %1064 = vmatpush.msra.mxu0 0.0
    %1065 = vmatpush.msra.mxu0 0.0
    %1066 = vmatpush.msra.mxu0 0.0
    %1067 = vmatpush.msra.mxu0 0.0
    %1068 = vmatpush.msra.mxu0 %v716
    %1069 = vmatpush.msra.mxu0 %v715
    %1070 = vmatpush.msra.mxu0 %v714
    %1071 = vmatpush.msra.mxu0 %v713
    %1072 = vmatmul.f32.gmra.mxu0 %v1054
    %v1073 = vpop.f32.mrf.mxu0
    %v1074 = vadd.f32 0.0, %v1073
    %1075 = vdwg.mxu0
    %v1076 = vadd.f32 %v781, %v1074
    %v1077 = vxor.u32 %v1076, 2147483648
    %v1078 = vmul.f32 %v1077, 1.442695
    %v1079 = vpow.pop %v1078
    %v1080 = vadd.f32 %v1079, 1.0
    %v1081 = vrcp.pop %v1080
    %v1082 = vmul.f32 %v1080, %v1081
    %v1083 = vsub.f32 1.0, %v1082
    %v1084 = vmul.f32 %v1081, %v1083
    %v1085 = vadd.f32 %v1081, %v1084
    %vm1086 = vweird.f32 %v1080
    %vm1087 = vweird.f32 %v1081
    %vm1088 = vmor %vm1086, %vm1087
    %v1089 = vsel %vm1088, %v1081, %v1085
    %v1090 = vand.u32 2147483647, %v1080
    %vm1091 = vcmp.eq.f32.partialorder %v1090, 8.507059e+37
    %v1092 = vand.u32 %v1080, 2147483648
    %v1093 = vor.u32 1.1754944e-38, %v1092
    %v1094 = vsel %vm1091, %v1093, %v1089
    %v1095 = vmul.f32 1.0, %v1094
    %v1096 = vmul.f32 %v1095, 2.0
    %v1097 = vsub.f32 %v1096, 1.0
    %v1098 = vmul.f32 %v1095, %v1042
    %1100 = vrot.lane.b32.xlu0 %v1097, 64
    %v1101 = vpop.permute.xlu0 %1100
    %v1103 = vmul.f32 %v1095, %v1101
    %1105 = vrot.lane.b32.xlu0 %v1103, 32
    %v1106 = vpop.permute.xlu0 %1105
    %v1108 = vadd.f32 %v1098, %v1106
    %v1109 = vtanh.pop %v1108
    %1111 = vrot.lane.b32.xlu0 %v1109, 64
    %v1112 = vpop.permute.xlu0 %1111
    %v1114 = vmul.f32 %v1095, %v1112
    %1116 = vrot.lane.b32.xlu0 %v1114, 32
    %v1117 = vpop.permute.xlu0 %1116
    %1119 = vst.msk [vmem:[#allocation4 + $0x20] sm:$0xff] %vm179, %v1117
    %v1120 = vsel %vm179, %v1117, 0
    %1122 = vmatpush.msra.mxu0 0.0
    %1123 = vmatpush.msra.mxu0 0.0
    %1124 = vmatpush.msra.mxu0 0.0
    %1125 = vmatpush.msra.mxu0 0.0
    %1126 = vmatpush.msra.mxu0 0.0
    %1127 = vmatpush.msra.mxu0 0.0
    %1128 = vmatpush.msra.mxu0 0.0
    %1129 = vmatpush.msra.mxu0 0.0
    %1130 = vmatpush.msra.mxu0 0.0
    %1131 = vmatpush.msra.mxu0 0.0
    %1132 = vmatpush.msra.mxu0 0.0
    %1133 = vmatpush.msra.mxu0 0.0
    %1134 = vmatpush.msra.mxu0 %v716
    %1135 = vmatpush.msra.mxu0 %v715
    %1136 = vmatpush.msra.mxu0 %v714
    %1137 = vmatpush.msra.mxu0 %v713
    %1138 = vmatmul.f32.gmra.mxu0 %v1120
    %v1139 = vpop.f32.mrf.mxu0
    %v1140 = vadd.f32 0.0, %v1139
    %1141 = vdwg.mxu0
    %v1142 = vadd.f32 %v784, %v1140
    %v1143 = vxor.u32 %v1142, 2147483648
    %v1144 = vmul.f32 %v1143, 1.442695
    %v1145 = vpow.pop %v1144
    %v1146 = vadd.f32 %v1145, 1.0
    %v1147 = vrcp.pop %v1146
    %v1148 = vmul.f32 %v1146, %v1147
    %v1149 = vsub.f32 1.0, %v1148
    %v1150 = vmul.f32 %v1147, %v1149
    %v1151 = vadd.f32 %v1147, %v1150
    %vm1152 = vweird.f32 %v1146
    %vm1153 = vweird.f32 %v1147
    %vm1154 = vmor %vm1152, %vm1153
    %v1155 = vsel %vm1154, %v1147, %v1151
    %v1156 = vand.u32 2147483647, %v1146
    %vm1157 = vcmp.eq.f32.partialorder %v1156, 8.507059e+37
    %v1158 = vand.u32 %v1146, 2147483648
    %v1159 = vor.u32 1.1754944e-38, %v1158
    %v1160 = vsel %vm1157, %v1159, %v1155
    %v1161 = vmul.f32 1.0, %v1160
    %v1162 = vmul.f32 %v1161, 2.0
    %v1163 = vsub.f32 %v1162, 1.0
    %v1164 = vmul.f32 %v1161, %v1108
    %1166 = vrot.lane.b32.xlu0 %v1163, 64
    %v1167 = vpop.permute.xlu0 %1166
    %v1169 = vmul.f32 %v1161, %v1167
    %1171 = vrot.lane.b32.xlu0 %v1169, 32
    %v1172 = vpop.permute.xlu0 %1171
    %v1174 = vadd.f32 %v1164, %v1172
    %v1175 = vtanh.pop %v1174
    %1177 = vrot.lane.b32.xlu0 %v1175, 64
    %v1178 = vpop.permute.xlu0 %1177
    %v1180 = vmul.f32 %v1161, %v1178
    %1182 = vrot.lane.b32.xlu0 %v1180, 32
    %v1183 = vpop.permute.xlu0 %1182
    %1185 = vst.msk [vmem:[#allocation4 + $0x28] sm:$0xff] %vm179, %v1183
    %v1186 = vsel %vm179, %v1183, 0
    %1188 = vmatpush.msra.mxu0 0.0
    %1189 = vmatpush.msra.mxu0 0.0
    %1190 = vmatpush.msra.mxu0 0.0
    %1191 = vmatpush.msra.mxu0 0.0
    %1192 = vmatpush.msra.mxu0 0.0
    %1193 = vmatpush.msra.mxu0 0.0
    %1194 = vmatpush.msra.mxu0 0.0
    %1195 = vmatpush.msra.mxu0 0.0
    %1196 = vmatpush.msra.mxu0 0.0
    %1197 = vmatpush.msra.mxu0 0.0
    %1198 = vmatpush.msra.mxu0 0.0
    %1199 = vmatpush.msra.mxu0 0.0
    %1200 = vmatpush.msra.mxu0 %v716
    %1201 = vmatpush.msra.mxu0 %v715
    %1202 = vmatpush.msra.mxu0 %v714
    %1203 = vmatpush.msra.mxu0 %v713
    %1204 = vmatmul.f32.gmra.mxu0 %v1186
    %v1205 = vpop.f32.mrf.mxu0
    %v1206 = vadd.f32 0.0, %v1205
    %1207 = vdwg.mxu0
    %v1208 = vadd.f32 %v787, %v1206
    %v1209 = vxor.u32 %v1208, 2147483648
    %v1210 = vmul.f32 %v1209, 1.442695
    %v1211 = vpow.pop %v1210
    %v1212 = vadd.f32 %v1211, 1.0
    %v1213 = vrcp.pop %v1212
    %v1214 = vmul.f32 %v1212, %v1213
    %v1215 = vsub.f32 1.0, %v1214
    %v1216 = vmul.f32 %v1213, %v1215
    %v1217 = vadd.f32 %v1213, %v1216
    %vm1218 = vweird.f32 %v1212
    %vm1219 = vweird.f32 %v1213
    %vm1220 = vmor %vm1218, %vm1219
    %v1221 = vsel %vm1220, %v1213, %v1217
    %v1222 = vand.u32 2147483647, %v1212
    %vm1223 = vcmp.eq.f32.partialorder %v1222, 8.507059e+37
    %v1224 = vand.u32 %v1212, 2147483648
    %v1225 = vor.u32 1.1754944e-38, %v1224
    %v1226 = vsel %vm1223, %v1225, %v1221
    %v1227 = vmul.f32 1.0, %v1226
    %v1228 = vmul.f32 %v1227, 2.0
    %v1229 = vsub.f32 %v1228, 1.0
    %v1230 = vmul.f32 %v1227, %v1174
    %1232 = vrot.lane.b32.xlu0 %v1229, 64
    %v1233 = vpop.permute.xlu0 %1232
    %v1235 = vmul.f32 %v1227, %v1233
    %1237 = vrot.lane.b32.xlu0 %v1235, 32
    %v1238 = vpop.permute.xlu0 %1237
    %v1240 = vadd.f32 %v1230, %v1238
    %v1241 = vtanh.pop %v1240
    %1243 = vrot.lane.b32.xlu0 %v1241, 64
    %v1244 = vpop.permute.xlu0 %1243
    %v1246 = vmul.f32 %v1227, %v1244
    %1248 = vrot.lane.b32.xlu0 %v1246, 32
    %v1249 = vpop.permute.xlu0 %1248
    %1251 = vst.msk [vmem:[#allocation4 + $0x30] sm:$0xff] %vm179, %v1249
    %v1252 = vsel %vm179, %v1249, 0
    %1254 = vmatpush.msra.mxu0 0.0
    %1255 = vmatpush.msra.mxu0 0.0
    %1256 = vmatpush.msra.mxu0 0.0
    %1257 = vmatpush.msra.mxu0 0.0
    %1258 = vmatpush.msra.mxu0 0.0
    %1259 = vmatpush.msra.mxu0 0.0
    %1260 = vmatpush.msra.mxu0 0.0
    %1261 = vmatpush.msra.mxu0 0.0
    %1262 = vmatpush.msra.mxu0 0.0
    %1263 = vmatpush.msra.mxu0 0.0
    %1264 = vmatpush.msra.mxu0 0.0
    %1265 = vmatpush.msra.mxu0 0.0
    %1266 = vmatpush.msra.mxu0 %v716
    %1267 = vmatpush.msra.mxu0 %v715
    %1268 = vmatpush.msra.mxu0 %v714
    %1269 = vmatpush.msra.mxu0 %v713
    %1270 = vmatmul.f32.gmra.mxu0 %v1252
    %v1271 = vpop.f32.mrf.mxu0
    %v1272 = vadd.f32 0.0, %v1271
    %1273 = vdwg.mxu0
    %v1274 = vadd.f32 %v790, %v1272
    %v1275 = vxor.u32 %v1274, 2147483648
    %v1276 = vmul.f32 %v1275, 1.442695
    %v1277 = vpow.pop %v1276
    %v1278 = vadd.f32 %v1277, 1.0
    %v1279 = vrcp.pop %v1278
    %v1280 = vmul.f32 %v1278, %v1279
    %v1281 = vsub.f32 1.0, %v1280
    %v1282 = vmul.f32 %v1279, %v1281
    %v1283 = vadd.f32 %v1279, %v1282
    %vm1284 = vweird.f32 %v1278
    %vm1285 = vweird.f32 %v1279
    %vm1286 = vmor %vm1284, %vm1285
    %v1287 = vsel %vm1286, %v1279, %v1283
    %v1288 = vand.u32 2147483647, %v1278
    %vm1289 = vcmp.eq.f32.partialorder %v1288, 8.507059e+37
    %v1290 = vand.u32 %v1278, 2147483648
    %v1291 = vor.u32 1.1754944e-38, %v1290
    %v1292 = vsel %vm1289, %v1291, %v1287
    %v1293 = vmul.f32 1.0, %v1292
    %v1294 = vmul.f32 %v1293, 2.0
    %v1295 = vsub.f32 %v1294, 1.0
    %v1296 = vmul.f32 %v1293, %v1240
    %1298 = vrot.lane.b32.xlu0 %v1295, 64
    %v1299 = vpop.permute.xlu0 %1298
    %v1301 = vmul.f32 %v1293, %v1299
    %1303 = vrot.lane.b32.xlu0 %v1301, 32
    %v1304 = vpop.permute.xlu0 %1303
    %v1306 = vadd.f32 %v1296, %v1304
    %v1307 = vtanh.pop %v1306
    %1309 = vrot.lane.b32.xlu0 %v1307, 64
    %v1310 = vpop.permute.xlu0 %1309
    %v1312 = vmul.f32 %v1293, %v1310
    %1314 = vrot.lane.b32.xlu0 %v1312, 32
    %v1315 = vpop.permute.xlu0 %1314
    %1317 = vst.msk [vmem:[#allocation4 + $0x38] sm:$0xff] %vm179, %v1315
    %v1318 = vld [vmem:[#allocation10 + $0x78] sm:$0xff]
    %v1319 = vld [vmem:[#allocation10 + $0x80] sm:$0xff]
    %v1320 = vld [vmem:[#allocation10 + $0x88] sm:$0xff]
    %v1321 = vld [vmem:[#allocation10 + $0x90] sm:$0xff]
    %v1322 = vld [vmem:[#allocation10 + $0x98] sm:$0xff]
    %v1323 = vld [vmem:[#allocation10 + $0xa0] sm:$0x1]
    %v1324 = vld [vmem:[#allocation4] sm:$0xff]
    %v1325 = vld [vmem:[#allocation4 + $0x8] sm:$0xff]
    %v1326 = vld [vmem:[#allocation4 + $0x10] sm:$0xff]
    %v1327 = vld [vmem:[#allocation4 + $0x18] sm:$0xff]
    %v1328 = vld [vmem:[#allocation4 + $0x20] sm:$0xff]
    %v1329 = vld [vmem:[#allocation4 + $0x28] sm:$0xff]
    %v1330 = vld [vmem:[#allocation4 + $0x30] sm:$0xff]
    %v1331 = vld [vmem:[#allocation4 + $0x38] sm:$0xff]
    %v1332 = vperm.slane %v1323, 0
    %v1334 = vsel %vm179, %v1324, 0
    %v1337 = vsel %vm179, %v1325, 0
    %v1340 = vsel %vm179, %v1326, 0
    %v1343 = vsel %vm179, %v1327, 0
    %v1346 = vsel %vm179, %v1328, 0
    %v1349 = vsel %vm179, %v1329, 0
    %v1352 = vsel %vm179, %v1330, 0
    %v1355 = vsel %vm179, %v1331, 0
    %1357 = vmatpush.msra.mxu0 0.0
    %1358 = vmatpush.msra.mxu0 0.0
    %1359 = vmatpush.msra.mxu0 0.0
    %1360 = vmatpush.msra.mxu0 0.0
    %1361 = vmatpush.msra.mxu0 0.0
    %1362 = vmatpush.msra.mxu0 0.0
    %1363 = vmatpush.msra.mxu0 0.0
    %1364 = vmatpush.msra.mxu0 0.0
    %1365 = vmatpush.msra.mxu0 0.0
    %1366 = vmatpush.msra.mxu0 0.0
    %1367 = vmatpush.msra.mxu0 0.0
    %1368 = vmatpush.msra.mxu0 0.0
    %1369 = vmatpush.msra.mxu0 %v1321
    %1370 = vmatpush.msra.mxu0 %v1320
    %1371 = vmatpush.msra.mxu0 %v1319
    %1372 = vmatpush.msra.mxu0 %v1318
    %1373 = vmatmul.f32.gmra.mxu0 %v1334
    %v1374 = vpop.f32.mrf.mxu0
    %v1375 = vadd.f32 %v1332, %v1374
    %1376 = vmatmul.f32.gmra.mxu0 %v1337
    %v1377 = vpop.f32.mrf.mxu0
    %v1378 = vadd.f32 %v1332, %v1377
    %1379 = vmatmul.f32.gmra.mxu0 %v1340
    %v1380 = vpop.f32.mrf.mxu0
    %v1381 = vadd.f32 %v1332, %v1380
    %1382 = vmatmul.f32.gmra.mxu0 %v1343
    %v1383 = vpop.f32.mrf.mxu0
    %v1384 = vadd.f32 %v1332, %v1383
    %1385 = vmatmul.f32.gmra.mxu0 %v1346
    %v1386 = vpop.f32.mrf.mxu0
    %v1387 = vadd.f32 %v1332, %v1386
    %1388 = vmatmul.f32.gmra.mxu0 %v1349
    %v1389 = vpop.f32.mrf.mxu0
    %v1390 = vadd.f32 %v1332, %v1389
    %1391 = vmatmul.f32.gmra.mxu0 %v1352
    %v1392 = vpop.f32.mrf.mxu0
    %v1393 = vadd.f32 %v1332, %v1392
    %1394 = vmatmul.f32.gmra.mxu0 %v1355
    %v1395 = vpop.f32.mrf.mxu0
    %v1396 = vadd.f32 %v1332, %v1395
    %1397 = vdwg.mxu0
    %v1398 = vsel %vm44, 0.0, 0
    %1400 = vmatpush.msra.mxu0 0.0
    %1401 = vmatpush.msra.mxu0 0.0
    %1402 = vmatpush.msra.mxu0 0.0
    %1403 = vmatpush.msra.mxu0 0.0
    %1404 = vmatpush.msra.mxu0 0.0
    %1405 = vmatpush.msra.mxu0 0.0
    %1406 = vmatpush.msra.mxu0 0.0
    %1407 = vmatpush.msra.mxu0 0.0
    %1408 = vmatpush.msra.mxu0 0.0
    %1409 = vmatpush.msra.mxu0 0.0
    %1410 = vmatpush.msra.mxu0 0.0
    %1411 = vmatpush.msra.mxu0 0.0
    %1412 = vmatpush.msra.mxu0 0.0
    %1413 = vmatpush.msra.mxu0 0.0
    %1414 = vmatpush.msra.mxu0 0.0
    %1415 = vmatpush.msra.mxu0 %v1322
    %1416 = vmatmul.f32.gmra.mxu0 %v1398
    %v1417 = vpop.f32.mrf.mxu0
    %v1418 = vadd.f32 0.0, %v1417
    %1419 = vdwg.mxu0
    %v1420 = vadd.f32 %v1375, %v1418
    %v1421 = vxor.u32 %v1420, 2147483648
    %v1422 = vmul.f32 %v1421, 1.442695
    %v1423 = vpow.pop %v1422
    %v1424 = vadd.f32 %v1423, 1.0
    %v1425 = vrcp.pop %v1424
    %v1426 = vmul.f32 %v1424, %v1425
    %v1427 = vsub.f32 1.0, %v1426
    %v1428 = vmul.f32 %v1425, %v1427
    %v1429 = vadd.f32 %v1425, %v1428
    %vm1430 = vweird.f32 %v1424
    %vm1431 = vweird.f32 %v1425
    %vm1432 = vmor %vm1430, %vm1431
    %v1433 = vsel %vm1432, %v1425, %v1429
    %v1434 = vand.u32 2147483647, %v1424
    %vm1435 = vcmp.eq.f32.partialorder %v1434, 8.507059e+37
    %v1436 = vand.u32 %v1424, 2147483648
    %v1437 = vor.u32 1.1754944e-38, %v1436
    %v1438 = vsel %vm1435, %v1437, %v1433
    %v1439 = vmul.f32 1.0, %v1438
    %v1440 = vmul.f32 %v1439, 2.0
    %v1441 = vsub.f32 %v1440, 1.0
    %v1442 = vmul.f32 %v1439, 0.0
    %1444 = vrot.lane.b32.xlu0 %v1441, 112
    %v1445 = vpop.permute.xlu0 %1444
    %v1447 = vmul.f32 %v1439, %v1445
    %1449 = vrot.lane.b32.xlu0 %v1447, 8
    %v1450 = vpop.permute.xlu0 %1449
    %v1452 = vadd.f32 %v1442, %v1450
    %v1453 = vtanh.pop %v1452
    %1455 = vrot.lane.b32.xlu0 %v1453, 16
    %v1456 = vpop.permute.xlu0 %1455
    %v1458 = vmul.f32 %v1439, %v1456
    %1460 = vrot.lane.b32.xlu0 %v1458, 104
    %v1461 = vpop.permute.xlu0 %1460
    %1463 = vst.msk [vmem:[#allocation5] sm:$0xff] %vm44, %v1461
    %v1464 = vsel %vm44, %v1461, 0
    %1466 = vmatpush.msra.mxu0 0.0
    %1467 = vmatpush.msra.mxu0 0.0
    %1468 = vmatpush.msra.mxu0 0.0
    %1469 = vmatpush.msra.mxu0 0.0
    %1470 = vmatpush.msra.mxu0 0.0
    %1471 = vmatpush.msra.mxu0 0.0
    %1472 = vmatpush.msra.mxu0 0.0
    %1473 = vmatpush.msra.mxu0 0.0
    %1474 = vmatpush.msra.mxu0 0.0
    %1475 = vmatpush.msra.mxu0 0.0
    %1476 = vmatpush.msra.mxu0 0.0
    %1477 = vmatpush.msra.mxu0 0.0
    %1478 = vmatpush.msra.mxu0 0.0
    %1479 = vmatpush.msra.mxu0 0.0
    %1480 = vmatpush.msra.mxu0 0.0
    %1481 = vmatpush.msra.mxu0 %v1322
    %1482 = vmatmul.f32.gmra.mxu0 %v1464
    %v1483 = vpop.f32.mrf.mxu0
    %v1484 = vadd.f32 0.0, %v1483
    %1485 = vdwg.mxu0
    %v1486 = vadd.f32 %v1378, %v1484
    %v1487 = vxor.u32 %v1486, 2147483648
    %v1488 = vmul.f32 %v1487, 1.442695
    %v1489 = vpow.pop %v1488
    %v1490 = vadd.f32 %v1489, 1.0
    %v1491 = vrcp.pop %v1490
    %v1492 = vmul.f32 %v1490, %v1491
    %v1493 = vsub.f32 1.0, %v1492
    %v1494 = vmul.f32 %v1491, %v1493
    %v1495 = vadd.f32 %v1491, %v1494
    %vm1496 = vweird.f32 %v1490
    %vm1497 = vweird.f32 %v1491
    %vm1498 = vmor %vm1496, %vm1497
    %v1499 = vsel %vm1498, %v1491, %v1495
    %v1500 = vand.u32 2147483647, %v1490
    %vm1501 = vcmp.eq.f32.partialorder %v1500, 8.507059e+37
    %v1502 = vand.u32 %v1490, 2147483648
    %v1503 = vor.u32 1.1754944e-38, %v1502
    %v1504 = vsel %vm1501, %v1503, %v1499
    %v1505 = vmul.f32 1.0, %v1504
    %v1506 = vmul.f32 %v1505, 2.0
    %v1507 = vsub.f32 %v1506, 1.0
    %v1508 = vmul.f32 %v1505, %v1452
    %1510 = vrot.lane.b32.xlu0 %v1507, 112
    %v1511 = vpop.permute.xlu0 %1510
    %v1513 = vmul.f32 %v1505, %v1511
    %1515 = vrot.lane.b32.xlu0 %v1513, 8
    %v1516 = vpop.permute.xlu0 %1515
    %v1518 = vadd.f32 %v1508, %v1516
    %v1519 = vtanh.pop %v1518
    %1521 = vrot.lane.b32.xlu0 %v1519, 16
    %v1522 = vpop.permute.xlu0 %1521
    %v1524 = vmul.f32 %v1505, %v1522
    %1526 = vrot.lane.b32.xlu0 %v1524, 104
    %v1527 = vpop.permute.xlu0 %1526
    %1529 = vst.msk [vmem:[#allocation5 + $0x8] sm:$0xff] %vm44, %v1527
    %v1530 = vsel %vm44, %v1527, 0
    %1532 = vmatpush.msra.mxu0 0.0
    %1533 = vmatpush.msra.mxu0 0.0
    %1534 = vmatpush.msra.mxu0 0.0
    %1535 = vmatpush.msra.mxu0 0.0
    %1536 = vmatpush.msra.mxu0 0.0
    %1537 = vmatpush.msra.mxu0 0.0
    %1538 = vmatpush.msra.mxu0 0.0
    %1539 = vmatpush.msra.mxu0 0.0
    %1540 = vmatpush.msra.mxu0 0.0
    %1541 = vmatpush.msra.mxu0 0.0
    %1542 = vmatpush.msra.mxu0 0.0
    %1543 = vmatpush.msra.mxu0 0.0
    %1544 = vmatpush.msra.mxu0 0.0
    %1545 = vmatpush.msra.mxu0 0.0
    %1546 = vmatpush.msra.mxu0 0.0
    %1547 = vmatpush.msra.mxu0 %v1322
    %1548 = vmatmul.f32.gmra.mxu0 %v1530
    %v1549 = vpop.f32.mrf.mxu0
    %v1550 = vadd.f32 0.0, %v1549
    %1551 = vdwg.mxu0
    %v1552 = vadd.f32 %v1381, %v1550
    %v1553 = vxor.u32 %v1552, 2147483648
    %v1554 = vmul.f32 %v1553, 1.442695
    %v1555 = vpow.pop %v1554
    %v1556 = vadd.f32 %v1555, 1.0
    %v1557 = vrcp.pop %v1556
    %v1558 = vmul.f32 %v1556, %v1557
    %v1559 = vsub.f32 1.0, %v1558
    %v1560 = vmul.f32 %v1557, %v1559
    %v1561 = vadd.f32 %v1557, %v1560
    %vm1562 = vweird.f32 %v1556
    %vm1563 = vweird.f32 %v1557
    %vm1564 = vmor %vm1562, %vm1563
    %v1565 = vsel %vm1564, %v1557, %v1561
    %v1566 = vand.u32 2147483647, %v1556
    %vm1567 = vcmp.eq.f32.partialorder %v1566, 8.507059e+37
    %v1568 = vand.u32 %v1556, 2147483648
    %v1569 = vor.u32 1.1754944e-38, %v1568
    %v1570 = vsel %vm1567, %v1569, %v1565
    %v1571 = vmul.f32 1.0, %v1570
    %v1572 = vmul.f32 %v1571, 2.0
    %v1573 = vsub.f32 %v1572, 1.0
    %v1574 = vmul.f32 %v1571, %v1518
    %1576 = vrot.lane.b32.xlu0 %v1573, 112
    %v1577 = vpop.permute.xlu0 %1576
    %v1579 = vmul.f32 %v1571, %v1577
    %1581 = vrot.lane.b32.xlu0 %v1579, 8
    %v1582 = vpop.permute.xlu0 %1581
    %v1584 = vadd.f32 %v1574, %v1582
    %v1585 = vtanh.pop %v1584
    %1587 = vrot.lane.b32.xlu0 %v1585, 16
    %v1588 = vpop.permute.xlu0 %1587
    %v1590 = vmul.f32 %v1571, %v1588
    %1592 = vrot.lane.b32.xlu0 %v1590, 104
    %v1593 = vpop.permute.xlu0 %1592
    %1595 = vst.msk [vmem:[#allocation5 + $0x10] sm:$0xff] %vm44, %v1593
    %v1596 = vsel %vm44, %v1593, 0
    %1598 = vmatpush.msra.mxu0 0.0
    %1599 = vmatpush.msra.mxu0 0.0
    %1600 = vmatpush.msra.mxu0 0.0
    %1601 = vmatpush.msra.mxu0 0.0
    %1602 = vmatpush.msra.mxu0 0.0
    %1603 = vmatpush.msra.mxu0 0.0
    %1604 = vmatpush.msra.mxu0 0.0
    %1605 = vmatpush.msra.mxu0 0.0
    %1606 = vmatpush.msra.mxu0 0.0
    %1607 = vmatpush.msra.mxu0 0.0
    %1608 = vmatpush.msra.mxu0 0.0
    %1609 = vmatpush.msra.mxu0 0.0
    %1610 = vmatpush.msra.mxu0 0.0
    %1611 = vmatpush.msra.mxu0 0.0
    %1612 = vmatpush.msra.mxu0 0.0
    %1613 = vmatpush.msra.mxu0 %v1322
    %1614 = vmatmul.f32.gmra.mxu0 %v1596
    %v1615 = vpop.f32.mrf.mxu0
    %v1616 = vadd.f32 0.0, %v1615
    %1617 = vdwg.mxu0
    %v1618 = vadd.f32 %v1384, %v1616
    %v1619 = vxor.u32 %v1618, 2147483648
    %v1620 = vmul.f32 %v1619, 1.442695
    %v1621 = vpow.pop %v1620
    %v1622 = vadd.f32 %v1621, 1.0
    %v1623 = vrcp.pop %v1622
    %v1624 = vmul.f32 %v1622, %v1623
    %v1625 = vsub.f32 1.0, %v1624
    %v1626 = vmul.f32 %v1623, %v1625
    %v1627 = vadd.f32 %v1623, %v1626
    %vm1628 = vweird.f32 %v1622
    %vm1629 = vweird.f32 %v1623
    %vm1630 = vmor %vm1628, %vm1629
    %v1631 = vsel %vm1630, %v1623, %v1627
    %v1632 = vand.u32 2147483647, %v1622
    %vm1633 = vcmp.eq.f32.partialorder %v1632, 8.507059e+37
    %v1634 = vand.u32 %v1622, 2147483648
    %v1635 = vor.u32 1.1754944e-38, %v1634
    %v1636 = vsel %vm1633, %v1635, %v1631
    %v1637 = vmul.f32 1.0, %v1636
    %v1638 = vmul.f32 %v1637, 2.0
    %v1639 = vsub.f32 %v1638, 1.0
    %v1640 = vmul.f32 %v1637, %v1584
    %1642 = vrot.lane.b32.xlu0 %v1639, 112
    %v1643 = vpop.permute.xlu0 %1642
    %v1645 = vmul.f32 %v1637, %v1643
    %1647 = vrot.lane.b32.xlu0 %v1645, 8
    %v1648 = vpop.permute.xlu0 %1647
    %v1650 = vadd.f32 %v1640, %v1648
    %v1651 = vtanh.pop %v1650
    %1653 = vrot.lane.b32.xlu0 %v1651, 16
    %v1654 = vpop.permute.xlu0 %1653
    %v1656 = vmul.f32 %v1637, %v1654
    %1658 = vrot.lane.b32.xlu0 %v1656, 104
    %v1659 = vpop.permute.xlu0 %1658
    %1661 = vst.msk [vmem:[#allocation5 + $0x18] sm:$0xff] %vm44, %v1659
    %v1662 = vsel %vm44, %v1659, 0
    %1664 = vmatpush.msra.mxu0 0.0
    %1665 = vmatpush.msra.mxu0 0.0
    %1666 = vmatpush.msra.mxu0 0.0
    %1667 = vmatpush.msra.mxu0 0.0
    %1668 = vmatpush.msra.mxu0 0.0
    %1669 = vmatpush.msra.mxu0 0.0
    %1670 = vmatpush.msra.mxu0 0.0
    %1671 = vmatpush.msra.mxu0 0.0
    %1672 = vmatpush.msra.mxu0 0.0
    %1673 = vmatpush.msra.mxu0 0.0
    %1674 = vmatpush.msra.mxu0 0.0
    %1675 = vmatpush.msra.mxu0 0.0
    %1676 = vmatpush.msra.mxu0 0.0
    %1677 = vmatpush.msra.mxu0 0.0
    %1678 = vmatpush.msra.mxu0 0.0
    %1679 = vmatpush.msra.mxu0 %v1322
    %1680 = vmatmul.f32.gmra.mxu0 %v1662
    %v1681 = vpop.f32.mrf.mxu0
    %v1682 = vadd.f32 0.0, %v1681
    %1683 = vdwg.mxu0
    %v1684 = vadd.f32 %v1387, %v1682
    %v1685 = vxor.u32 %v1684, 2147483648
    %v1686 = vmul.f32 %v1685, 1.442695
    %v1687 = vpow.pop %v1686
    %v1688 = vadd.f32 %v1687, 1.0
    %v1689 = vrcp.pop %v1688
    %v1690 = vmul.f32 %v1688, %v1689
    %v1691 = vsub.f32 1.0, %v1690
    %v1692 = vmul.f32 %v1689, %v1691
    %v1693 = vadd.f32 %v1689, %v1692
    %vm1694 = vweird.f32 %v1688
    %vm1695 = vweird.f32 %v1689
    %vm1696 = vmor %vm1694, %vm1695
    %v1697 = vsel %vm1696, %v1689, %v1693
    %v1698 = vand.u32 2147483647, %v1688
    %vm1699 = vcmp.eq.f32.partialorder %v1698, 8.507059e+37
    %v1700 = vand.u32 %v1688, 2147483648
    %v1701 = vor.u32 1.1754944e-38, %v1700
    %v1702 = vsel %vm1699, %v1701, %v1697
    %v1703 = vmul.f32 1.0, %v1702
    %v1704 = vmul.f32 %v1703, 2.0
    %v1705 = vsub.f32 %v1704, 1.0
    %v1706 = vmul.f32 %v1703, %v1650
    %1708 = vrot.lane.b32.xlu0 %v1705, 112
    %v1709 = vpop.permute.xlu0 %1708
    %v1711 = vmul.f32 %v1703, %v1709
    %1713 = vrot.lane.b32.xlu0 %v1711, 8
    %v1714 = vpop.permute.xlu0 %1713
    %v1716 = vadd.f32 %v1706, %v1714
    %v1717 = vtanh.pop %v1716
    %1719 = vrot.lane.b32.xlu0 %v1717, 16
    %v1720 = vpop.permute.xlu0 %1719
    %v1722 = vmul.f32 %v1703, %v1720
    %1724 = vrot.lane.b32.xlu0 %v1722, 104
    %v1725 = vpop.permute.xlu0 %1724
    %1727 = vst.msk [vmem:[#allocation5 + $0x20] sm:$0xff] %vm44, %v1725
    %v1728 = vsel %vm44, %v1725, 0
    %1730 = vmatpush.msra.mxu0 0.0
    %1731 = vmatpush.msra.mxu0 0.0
    %1732 = vmatpush.msra.mxu0 0.0
    %1733 = vmatpush.msra.mxu0 0.0
    %1734 = vmatpush.msra.mxu0 0.0
    %1735 = vmatpush.msra.mxu0 0.0
    %1736 = vmatpush.msra.mxu0 0.0
    %1737 = vmatpush.msra.mxu0 0.0
    %1738 = vmatpush.msra.mxu0 0.0
    %1739 = vmatpush.msra.mxu0 0.0
    %1740 = vmatpush.msra.mxu0 0.0
    %1741 = vmatpush.msra.mxu0 0.0
    %1742 = vmatpush.msra.mxu0 0.0
    %1743 = vmatpush.msra.mxu0 0.0
    %1744 = vmatpush.msra.mxu0 0.0
    %1745 = vmatpush.msra.mxu0 %v1322
    %1746 = vmatmul.f32.gmra.mxu0 %v1728
    %v1747 = vpop.f32.mrf.mxu0
    %v1748 = vadd.f32 0.0, %v1747
    %1749 = vdwg.mxu0
    %v1750 = vadd.f32 %v1390, %v1748
    %v1751 = vxor.u32 %v1750, 2147483648
    %v1752 = vmul.f32 %v1751, 1.442695
    %v1753 = vpow.pop %v1752
    %v1754 = vadd.f32 %v1753, 1.0
    %v1755 = vrcp.pop %v1754
    %v1756 = vmul.f32 %v1754, %v1755
    %v1757 = vsub.f32 1.0, %v1756
    %v1758 = vmul.f32 %v1755, %v1757
    %v1759 = vadd.f32 %v1755, %v1758
    %vm1760 = vweird.f32 %v1754
    %vm1761 = vweird.f32 %v1755
    %vm1762 = vmor %vm1760, %vm1761
    %v1763 = vsel %vm1762, %v1755, %v1759
    %v1764 = vand.u32 2147483647, %v1754
    %vm1765 = vcmp.eq.f32.partialorder %v1764, 8.507059e+37
    %v1766 = vand.u32 %v1754, 2147483648
    %v1767 = vor.u32 1.1754944e-38, %v1766
    %v1768 = vsel %vm1765, %v1767, %v1763
    %v1769 = vmul.f32 1.0, %v1768
    %v1770 = vmul.f32 %v1769, 2.0
    %v1771 = vsub.f32 %v1770, 1.0
    %v1772 = vmul.f32 %v1769, %v1716
    %1774 = vrot.lane.b32.xlu0 %v1771, 112
    %v1775 = vpop.permute.xlu0 %1774
    %v1777 = vmul.f32 %v1769, %v1775
    %1779 = vrot.lane.b32.xlu0 %v1777, 8
    %v1780 = vpop.permute.xlu0 %1779
    %v1782 = vadd.f32 %v1772, %v1780
    %v1783 = vtanh.pop %v1782
    %1785 = vrot.lane.b32.xlu0 %v1783, 16
    %v1786 = vpop.permute.xlu0 %1785
    %v1788 = vmul.f32 %v1769, %v1786
    %1790 = vrot.lane.b32.xlu0 %v1788, 104
    %v1791 = vpop.permute.xlu0 %1790
    %1793 = vst.msk [vmem:[#allocation5 + $0x28] sm:$0xff] %vm44, %v1791
    %v1794 = vsel %vm44, %v1791, 0
    %1796 = vmatpush.msra.mxu0 0.0
    %1797 = vmatpush.msra.mxu0 0.0
    %1798 = vmatpush.msra.mxu0 0.0
    %1799 = vmatpush.msra.mxu0 0.0
    %1800 = vmatpush.msra.mxu0 0.0
    %1801 = vmatpush.msra.mxu0 0.0
    %1802 = vmatpush.msra.mxu0 0.0
    %1803 = vmatpush.msra.mxu0 0.0
    %1804 = vmatpush.msra.mxu0 0.0
    %1805 = vmatpush.msra.mxu0 0.0
    %1806 = vmatpush.msra.mxu0 0.0
    %1807 = vmatpush.msra.mxu0 0.0
    %1808 = vmatpush.msra.mxu0 0.0
    %1809 = vmatpush.msra.mxu0 0.0
    %1810 = vmatpush.msra.mxu0 0.0
    %1811 = vmatpush.msra.mxu0 %v1322
    %1812 = vmatmul.f32.gmra.mxu0 %v1794
    %v1813 = vpop.f32.mrf.mxu0
    %v1814 = vadd.f32 0.0, %v1813
    %1815 = vdwg.mxu0
    %v1816 = vadd.f32 %v1393, %v1814
    %v1817 = vxor.u32 %v1816, 2147483648
    %v1818 = vmul.f32 %v1817, 1.442695
    %v1819 = vpow.pop %v1818
    %v1820 = vadd.f32 %v1819, 1.0
    %v1821 = vrcp.pop %v1820
    %v1822 = vmul.f32 %v1820, %v1821
    %v1823 = vsub.f32 1.0, %v1822
    %v1824 = vmul.f32 %v1821, %v1823
    %v1825 = vadd.f32 %v1821, %v1824
    %vm1826 = vweird.f32 %v1820
    %vm1827 = vweird.f32 %v1821
    %vm1828 = vmor %vm1826, %vm1827
    %v1829 = vsel %vm1828, %v1821, %v1825
    %v1830 = vand.u32 2147483647, %v1820
    %vm1831 = vcmp.eq.f32.partialorder %v1830, 8.507059e+37
    %v1832 = vand.u32 %v1820, 2147483648
    %v1833 = vor.u32 1.1754944e-38, %v1832
    %v1834 = vsel %vm1831, %v1833, %v1829
    %v1835 = vmul.f32 1.0, %v1834
    %v1836 = vmul.f32 %v1835, 2.0
    %v1837 = vsub.f32 %v1836, 1.0
    %v1838 = vmul.f32 %v1835, %v1782
    %1840 = vrot.lane.b32.xlu0 %v1837, 112
    %v1841 = vpop.permute.xlu0 %1840
    %v1843 = vmul.f32 %v1835, %v1841
    %1845 = vrot.lane.b32.xlu0 %v1843, 8
    %v1846 = vpop.permute.xlu0 %1845
    %v1848 = vadd.f32 %v1838, %v1846
    %v1849 = vtanh.pop %v1848
    %1851 = vrot.lane.b32.xlu0 %v1849, 16
    %v1852 = vpop.permute.xlu0 %1851
    %v1854 = vmul.f32 %v1835, %v1852
    %1856 = vrot.lane.b32.xlu0 %v1854, 104
    %v1857 = vpop.permute.xlu0 %1856
    %1859 = vst.msk [vmem:[#allocation5 + $0x30] sm:$0xff] %vm44, %v1857
    %v1860 = vsel %vm44, %v1857, 0
    %1862 = vmatpush.msra.mxu0 0.0
    %1863 = vmatpush.msra.mxu0 0.0
    %1864 = vmatpush.msra.mxu0 0.0
    %1865 = vmatpush.msra.mxu0 0.0
    %1866 = vmatpush.msra.mxu0 0.0
    %1867 = vmatpush.msra.mxu0 0.0
    %1868 = vmatpush.msra.mxu0 0.0
    %1869 = vmatpush.msra.mxu0 0.0
    %1870 = vmatpush.msra.mxu0 0.0
    %1871 = vmatpush.msra.mxu0 0.0
    %1872 = vmatpush.msra.mxu0 0.0
    %1873 = vmatpush.msra.mxu0 0.0
    %1874 = vmatpush.msra.mxu0 0.0
    %1875 = vmatpush.msra.mxu0 0.0
    %1876 = vmatpush.msra.mxu0 0.0
    %1877 = vmatpush.msra.mxu0 %v1322
    %1878 = vmatmul.f32.gmra.mxu0 %v1860
    %v1879 = vpop.f32.mrf.mxu0
    %v1880 = vadd.f32 0.0, %v1879
    %1881 = vdwg.mxu0
    %v1882 = vadd.f32 %v1396, %v1880
    %v1883 = vxor.u32 %v1882, 2147483648
    %v1884 = vmul.f32 %v1883, 1.442695
    %v1885 = vpow.pop %v1884
    %v1886 = vadd.f32 %v1885, 1.0
    %v1887 = vrcp.pop %v1886
    %v1888 = vmul.f32 %v1886, %v1887
    %v1889 = vsub.f32 1.0, %v1888
    %v1890 = vmul.f32 %v1887, %v1889
    %v1891 = vadd.f32 %v1887, %v1890
    %vm1892 = vweird.f32 %v1886
    %vm1893 = vweird.f32 %v1887
    %vm1894 = vmor %vm1892, %vm1893
    %v1895 = vsel %vm1894, %v1887, %v1891
    %v1896 = vand.u32 2147483647, %v1886
    %vm1897 = vcmp.eq.f32.partialorder %v1896, 8.507059e+37
    %v1898 = vand.u32 %v1886, 2147483648
    %v1899 = vor.u32 1.1754944e-38, %v1898
    %v1900 = vsel %vm1897, %v1899, %v1895
    %v1901 = vmul.f32 1.0, %v1900
    %v1902 = vmul.f32 %v1901, 2.0
    %v1903 = vsub.f32 %v1902, 1.0
    %v1904 = vmul.f32 %v1901, %v1848
    %1906 = vrot.lane.b32.xlu0 %v1903, 112
    %v1907 = vpop.permute.xlu0 %1906
    %v1909 = vmul.f32 %v1901, %v1907
    %1911 = vrot.lane.b32.xlu0 %v1909, 8
    %v1912 = vpop.permute.xlu0 %1911
    %v1914 = vadd.f32 %v1904, %v1912
    %v1915 = vtanh.pop %v1914
    %1917 = vrot.lane.b32.xlu0 %v1915, 16
    %v1918 = vpop.permute.xlu0 %1917
    %v1920 = vmul.f32 %v1901, %v1918
    %1922 = vrot.lane.b32.xlu0 %v1920, 104
    %v1923 = vpop.permute.xlu0 %1922
    %1925 = vst.msk [vmem:[#allocation5 + $0x38] sm:$0xff] %vm44, %v1923
    %v1926 = vld [vmem:[#allocation10 + $0xa8] sm:$0xff]
    %v1927 = vld [vmem:[#allocation10 + $0xb0] sm:$0xff]
    %v1928 = vld [vmem:[#allocation10 + $0xb8] sm:$0x1]
    %v1929 = vld [vmem:[#allocation5] sm:$0xff]
    %v1930 = vld [vmem:[#allocation5 + $0x8] sm:$0xff]
    %v1931 = vld [vmem:[#allocation5 + $0x10] sm:$0xff]
    %v1932 = vld [vmem:[#allocation5 + $0x18] sm:$0xff]
    %v1933 = vld [vmem:[#allocation5 + $0x20] sm:$0xff]
    %v1934 = vld [vmem:[#allocation5 + $0x28] sm:$0xff]
    %v1935 = vld [vmem:[#allocation5 + $0x30] sm:$0xff]
    %v1936 = vld [vmem:[#allocation5 + $0x38] sm:$0xff]
    %v1937 = vperm.slane %v1928, 0
    %v1939 = vsel %vm44, %v1929, 0
    %v1942 = vsel %vm44, %v1930, 0
    %v1945 = vsel %vm44, %v1931, 0
    %v1948 = vsel %vm44, %v1932, 0
    %v1951 = vsel %vm44, %v1933, 0
    %v1954 = vsel %vm44, %v1934, 0
    %v1957 = vsel %vm44, %v1935, 0
    %v1960 = vsel %vm44, %v1936, 0
    %1962 = vmatpush.msra.mxu0 0.0
    %1963 = vmatpush.msra.mxu0 0.0
    %1964 = vmatpush.msra.mxu0 0.0
    %1965 = vmatpush.msra.mxu0 0.0
    %1966 = vmatpush.msra.mxu0 0.0
    %1967 = vmatpush.msra.mxu0 0.0
    %1968 = vmatpush.msra.mxu0 0.0
    %1969 = vmatpush.msra.mxu0 0.0
    %1970 = vmatpush.msra.mxu0 0.0
    %1971 = vmatpush.msra.mxu0 0.0
    %1972 = vmatpush.msra.mxu0 0.0
    %1973 = vmatpush.msra.mxu0 0.0
    %1974 = vmatpush.msra.mxu0 0.0
    %1975 = vmatpush.msra.mxu0 0.0
    %1976 = vmatpush.msra.mxu0 0.0
    %1977 = vmatpush.msra.mxu0 %v1926
    %1978 = vmatmul.f32.gmra.mxu0 %v1939
    %v1979 = vpop.f32.mrf.mxu0
    %v1980 = vadd.f32 %v1937, %v1979
    %1981 = vmatmul.f32.gmra.mxu0 %v1942
    %v1982 = vpop.f32.mrf.mxu0
    %v1983 = vadd.f32 %v1937, %v1982
    %1984 = vmatmul.f32.gmra.mxu0 %v1945
    %v1985 = vpop.f32.mrf.mxu0
    %v1986 = vadd.f32 %v1937, %v1985
    %1987 = vmatmul.f32.gmra.mxu0 %v1948
    %v1988 = vpop.f32.mrf.mxu0
    %v1989 = vadd.f32 %v1937, %v1988
    %1990 = vmatmul.f32.gmra.mxu0 %v1951
    %v1991 = vpop.f32.mrf.mxu0
    %v1992 = vadd.f32 %v1937, %v1991
    %1993 = vmatmul.f32.gmra.mxu0 %v1954
    %v1994 = vpop.f32.mrf.mxu0
    %v1995 = vadd.f32 %v1937, %v1994
    %1996 = vmatmul.f32.gmra.mxu0 %v1957
    %v1997 = vpop.f32.mrf.mxu0
    %v1998 = vadd.f32 %v1937, %v1997
    %1999 = vmatmul.f32.gmra.mxu0 %v1960
    %v2000 = vpop.f32.mrf.mxu0
    %v2001 = vadd.f32 %v1937, %v2000
    %2002 = vdwg.mxu0
    %2003 = vmatpush.msra.mxu0 0.0
    %2004 = vmatpush.msra.mxu0 0.0
    %2005 = vmatpush.msra.mxu0 0.0
    %2006 = vmatpush.msra.mxu0 0.0
    %2007 = vmatpush.msra.mxu0 0.0
    %2008 = vmatpush.msra.mxu0 0.0
    %2009 = vmatpush.msra.mxu0 0.0
    %2010 = vmatpush.msra.mxu0 0.0
    %2011 = vmatpush.msra.mxu0 0.0
    %2012 = vmatpush.msra.mxu0 0.0
    %2013 = vmatpush.msra.mxu0 0.0
    %2014 = vmatpush.msra.mxu0 0.0
    %2015 = vmatpush.msra.mxu0 0.0
    %2016 = vmatpush.msra.mxu0 0.0
    %2017 = vmatpush.msra.mxu0 0.0
    %2018 = vmatpush.msra.mxu0 %v1927
    %2019 = vmatmul.f32.gmra.mxu0 %v1398
    %v2020 = vpop.f32.mrf.mxu0
    %v2021 = vadd.f32 0.0, %v2020
    %2022 = vdwg.mxu0
    %v2023 = vadd.f32 %v1980, %v2021
    %v2024 = vxor.u32 %v2023, 2147483648
    %v2025 = vmul.f32 %v2024, 1.442695
    %v2026 = vpow.pop %v2025
    %v2027 = vadd.f32 %v2026, 1.0
    %v2028 = vrcp.pop %v2027
    %v2029 = vmul.f32 %v2027, %v2028
    %v2030 = vsub.f32 1.0, %v2029
    %v2031 = vmul.f32 %v2028, %v2030
    %v2032 = vadd.f32 %v2028, %v2031
    %vm2033 = vweird.f32 %v2027
    %vm2034 = vweird.f32 %v2028
    %vm2035 = vmor %vm2033, %vm2034
    %v2036 = vsel %vm2035, %v2028, %v2032
    %v2037 = vand.u32 2147483647, %v2027
    %vm2038 = vcmp.eq.f32.partialorder %v2037, 8.507059e+37
    %v2039 = vand.u32 %v2027, 2147483648
    %v2040 = vor.u32 1.1754944e-38, %v2039
    %v2041 = vsel %vm2038, %v2040, %v2036
    %v2042 = vmul.f32 1.0, %v2041
    %v2043 = vmul.f32 %v2042, 2.0
    %v2044 = vsub.f32 %v2043, 1.0
    %v2045 = vmul.f32 %v2042, 0.0
    %2047 = vrot.lane.b32.xlu0 %v2044, 112
    %v2048 = vpop.permute.xlu0 %2047
    %v2050 = vmul.f32 %v2042, %v2048
    %2052 = vrot.lane.b32.xlu0 %v2050, 8
    %v2053 = vpop.permute.xlu0 %2052
    %v2055 = vadd.f32 %v2045, %v2053
    %v2056 = vtanh.pop %v2055
    %2058 = vrot.lane.b32.xlu0 %v2056, 16
    %v2059 = vpop.permute.xlu0 %2058
    %v2061 = vmul.f32 %v2042, %v2059
    %2063 = vrot.lane.b32.xlu0 %v2061, 104
    %v2064 = vpop.permute.xlu0 %2063
    %2066 = vst.msk [vmem:[#allocation6] sm:$0xff] %vm44, %v2064
    %v2067 = vsel %vm44, %v2064, 0
    %2069 = vmatpush.msra.mxu0 0.0
    %2070 = vmatpush.msra.mxu0 0.0
    %2071 = vmatpush.msra.mxu0 0.0
    %2072 = vmatpush.msra.mxu0 0.0
    %2073 = vmatpush.msra.mxu0 0.0
    %2074 = vmatpush.msra.mxu0 0.0
    %2075 = vmatpush.msra.mxu0 0.0
    %2076 = vmatpush.msra.mxu0 0.0
    %2077 = vmatpush.msra.mxu0 0.0
    %2078 = vmatpush.msra.mxu0 0.0
    %2079 = vmatpush.msra.mxu0 0.0
    %2080 = vmatpush.msra.mxu0 0.0
    %2081 = vmatpush.msra.mxu0 0.0
    %2082 = vmatpush.msra.mxu0 0.0
    %2083 = vmatpush.msra.mxu0 0.0
    %2084 = vmatpush.msra.mxu0 %v1927
    %2085 = vmatmul.f32.gmra.mxu0 %v2067
    %v2086 = vpop.f32.mrf.mxu0
    %v2087 = vadd.f32 0.0, %v2086
    %2088 = vdwg.mxu0
    %v2089 = vadd.f32 %v1983, %v2087
    %v2090 = vxor.u32 %v2089, 2147483648
    %v2091 = vmul.f32 %v2090, 1.442695
    %v2092 = vpow.pop %v2091
    %v2093 = vadd.f32 %v2092, 1.0
    %v2094 = vrcp.pop %v2093
    %v2095 = vmul.f32 %v2093, %v2094
    %v2096 = vsub.f32 1.0, %v2095
    %v2097 = vmul.f32 %v2094, %v2096
    %v2098 = vadd.f32 %v2094, %v2097
    %vm2099 = vweird.f32 %v2093
    %vm2100 = vweird.f32 %v2094
    %vm2101 = vmor %vm2099, %vm2100
    %v2102 = vsel %vm2101, %v2094, %v2098
    %v2103 = vand.u32 2147483647, %v2093
    %vm2104 = vcmp.eq.f32.partialorder %v2103, 8.507059e+37
    %v2105 = vand.u32 %v2093, 2147483648
    %v2106 = vor.u32 1.1754944e-38, %v2105
    %v2107 = vsel %vm2104, %v2106, %v2102
    %v2108 = vmul.f32 1.0, %v2107
    %v2109 = vmul.f32 %v2108, 2.0
    %v2110 = vsub.f32 %v2109, 1.0
    %v2111 = vmul.f32 %v2108, %v2055
    %2113 = vrot.lane.b32.xlu0 %v2110, 112
    %v2114 = vpop.permute.xlu0 %2113
    %v2116 = vmul.f32 %v2108, %v2114
    %2118 = vrot.lane.b32.xlu0 %v2116, 8
    %v2119 = vpop.permute.xlu0 %2118
    %v2121 = vadd.f32 %v2111, %v2119
    %v2122 = vtanh.pop %v2121
    %2124 = vrot.lane.b32.xlu0 %v2122, 16
    %v2125 = vpop.permute.xlu0 %2124
    %v2127 = vmul.f32 %v2108, %v2125
    %2129 = vrot.lane.b32.xlu0 %v2127, 104
    %v2130 = vpop.permute.xlu0 %2129
    %2132 = vst.msk [vmem:[#allocation6 + $0x8] sm:$0xff] %vm44, %v2130
    %v2133 = vsel %vm44, %v2130, 0
    %2135 = vmatpush.msra.mxu0 0.0
    %2136 = vmatpush.msra.mxu0 0.0
    %2137 = vmatpush.msra.mxu0 0.0
    %2138 = vmatpush.msra.mxu0 0.0
    %2139 = vmatpush.msra.mxu0 0.0
    %2140 = vmatpush.msra.mxu0 0.0
    %2141 = vmatpush.msra.mxu0 0.0
    %2142 = vmatpush.msra.mxu0 0.0
    %2143 = vmatpush.msra.mxu0 0.0
    %2144 = vmatpush.msra.mxu0 0.0
    %2145 = vmatpush.msra.mxu0 0.0
    %2146 = vmatpush.msra.mxu0 0.0
    %2147 = vmatpush.msra.mxu0 0.0
    %2148 = vmatpush.msra.mxu0 0.0
    %2149 = vmatpush.msra.mxu0 0.0
    %2150 = vmatpush.msra.mxu0 %v1927
    %2151 = vmatmul.f32.gmra.mxu0 %v2133
    %v2152 = vpop.f32.mrf.mxu0
    %v2153 = vadd.f32 0.0, %v2152
    %2154 = vdwg.mxu0
    %v2155 = vadd.f32 %v1986, %v2153
    %v2156 = vxor.u32 %v2155, 2147483648
    %v2157 = vmul.f32 %v2156, 1.442695
    %v2158 = vpow.pop %v2157
    %v2159 = vadd.f32 %v2158, 1.0
    %v2160 = vrcp.pop %v2159
    %v2161 = vmul.f32 %v2159, %v2160
    %v2162 = vsub.f32 1.0, %v2161
    %v2163 = vmul.f32 %v2160, %v2162
    %v2164 = vadd.f32 %v2160, %v2163
    %vm2165 = vweird.f32 %v2159
    %vm2166 = vweird.f32 %v2160
    %vm2167 = vmor %vm2165, %vm2166
    %v2168 = vsel %vm2167, %v2160, %v2164
    %v2169 = vand.u32 2147483647, %v2159
    %vm2170 = vcmp.eq.f32.partialorder %v2169, 8.507059e+37
    %v2171 = vand.u32 %v2159, 2147483648
    %v2172 = vor.u32 1.1754944e-38, %v2171
    %v2173 = vsel %vm2170, %v2172, %v2168
    %v2174 = vmul.f32 1.0, %v2173
    %v2175 = vmul.f32 %v2174, 2.0
    %v2176 = vsub.f32 %v2175, 1.0
    %v2177 = vmul.f32 %v2174, %v2121
    %2179 = vrot.lane.b32.xlu0 %v2176, 112
    %v2180 = vpop.permute.xlu0 %2179
    %v2182 = vmul.f32 %v2174, %v2180
    %2184 = vrot.lane.b32.xlu0 %v2182, 8
    %v2185 = vpop.permute.xlu0 %2184
    %v2187 = vadd.f32 %v2177, %v2185
    %v2188 = vtanh.pop %v2187
    %2190 = vrot.lane.b32.xlu0 %v2188, 16
    %v2191 = vpop.permute.xlu0 %2190
    %v2193 = vmul.f32 %v2174, %v2191
    %2195 = vrot.lane.b32.xlu0 %v2193, 104
    %v2196 = vpop.permute.xlu0 %2195
    %2198 = vst.msk [vmem:[#allocation6 + $0x10] sm:$0xff] %vm44, %v2196
    %v2199 = vsel %vm44, %v2196, 0
    %2201 = vmatpush.msra.mxu0 0.0
    %2202 = vmatpush.msra.mxu0 0.0
    %2203 = vmatpush.msra.mxu0 0.0
    %2204 = vmatpush.msra.mxu0 0.0
    %2205 = vmatpush.msra.mxu0 0.0
    %2206 = vmatpush.msra.mxu0 0.0
    %2207 = vmatpush.msra.mxu0 0.0
    %2208 = vmatpush.msra.mxu0 0.0
    %2209 = vmatpush.msra.mxu0 0.0
    %2210 = vmatpush.msra.mxu0 0.0
    %2211 = vmatpush.msra.mxu0 0.0
    %2212 = vmatpush.msra.mxu0 0.0
    %2213 = vmatpush.msra.mxu0 0.0
    %2214 = vmatpush.msra.mxu0 0.0
    %2215 = vmatpush.msra.mxu0 0.0
    %2216 = vmatpush.msra.mxu0 %v1927
    %2217 = vmatmul.f32.gmra.mxu0 %v2199
    %v2218 = vpop.f32.mrf.mxu0
    %v2219 = vadd.f32 0.0, %v2218
    %2220 = vdwg.mxu0
    %v2221 = vadd.f32 %v1989, %v2219
    %v2222 = vxor.u32 %v2221, 2147483648
    %v2223 = vmul.f32 %v2222, 1.442695
    %v2224 = vpow.pop %v2223
    %v2225 = vadd.f32 %v2224, 1.0
    %v2226 = vrcp.pop %v2225
    %v2227 = vmul.f32 %v2225, %v2226
    %v2228 = vsub.f32 1.0, %v2227
    %v2229 = vmul.f32 %v2226, %v2228
    %v2230 = vadd.f32 %v2226, %v2229
    %vm2231 = vweird.f32 %v2225
    %vm2232 = vweird.f32 %v2226
    %vm2233 = vmor %vm2231, %vm2232
    %v2234 = vsel %vm2233, %v2226, %v2230
    %v2235 = vand.u32 2147483647, %v2225
    %vm2236 = vcmp.eq.f32.partialorder %v2235, 8.507059e+37
    %v2237 = vand.u32 %v2225, 2147483648
    %v2238 = vor.u32 1.1754944e-38, %v2237
    %v2239 = vsel %vm2236, %v2238, %v2234
    %v2240 = vmul.f32 1.0, %v2239
    %v2241 = vmul.f32 %v2240, 2.0
    %v2242 = vsub.f32 %v2241, 1.0
    %v2243 = vmul.f32 %v2240, %v2187
    %2245 = vrot.lane.b32.xlu0 %v2242, 112
    %v2246 = vpop.permute.xlu0 %2245
    %v2248 = vmul.f32 %v2240, %v2246
    %2250 = vrot.lane.b32.xlu0 %v2248, 8
    %v2251 = vpop.permute.xlu0 %2250
    %v2253 = vadd.f32 %v2243, %v2251
    %v2254 = vtanh.pop %v2253
    %2256 = vrot.lane.b32.xlu0 %v2254, 16
    %v2257 = vpop.permute.xlu0 %2256
    %v2259 = vmul.f32 %v2240, %v2257
    %2261 = vrot.lane.b32.xlu0 %v2259, 104
    %v2262 = vpop.permute.xlu0 %2261
    %2264 = vst.msk [vmem:[#allocation6 + $0x18] sm:$0xff] %vm44, %v2262
    %v2265 = vsel %vm44, %v2262, 0
    %2267 = vmatpush.msra.mxu0 0.0
    %2268 = vmatpush.msra.mxu0 0.0
    %2269 = vmatpush.msra.mxu0 0.0
    %2270 = vmatpush.msra.mxu0 0.0
    %2271 = vmatpush.msra.mxu0 0.0
    %2272 = vmatpush.msra.mxu0 0.0
    %2273 = vmatpush.msra.mxu0 0.0
    %2274 = vmatpush.msra.mxu0 0.0
    %2275 = vmatpush.msra.mxu0 0.0
    %2276 = vmatpush.msra.mxu0 0.0
    %2277 = vmatpush.msra.mxu0 0.0
    %2278 = vmatpush.msra.mxu0 0.0
    %2279 = vmatpush.msra.mxu0 0.0
    %2280 = vmatpush.msra.mxu0 0.0
    %2281 = vmatpush.msra.mxu0 0.0
    %2282 = vmatpush.msra.mxu0 %v1927
    %2283 = vmatmul.f32.gmra.mxu0 %v2265
    %v2284 = vpop.f32.mrf.mxu0
    %v2285 = vadd.f32 0.0, %v2284
    %2286 = vdwg.mxu0
    %v2287 = vadd.f32 %v1992, %v2285
    %v2288 = vxor.u32 %v2287, 2147483648
    %v2289 = vmul.f32 %v2288, 1.442695
    %v2290 = vpow.pop %v2289
    %v2291 = vadd.f32 %v2290, 1.0
    %v2292 = vrcp.pop %v2291
    %v2293 = vmul.f32 %v2291, %v2292
    %v2294 = vsub.f32 1.0, %v2293
    %v2295 = vmul.f32 %v2292, %v2294
    %v2296 = vadd.f32 %v2292, %v2295
    %vm2297 = vweird.f32 %v2291
    %vm2298 = vweird.f32 %v2292
    %vm2299 = vmor %vm2297, %vm2298
    %v2300 = vsel %vm2299, %v2292, %v2296
    %v2301 = vand.u32 2147483647, %v2291
    %vm2302 = vcmp.eq.f32.partialorder %v2301, 8.507059e+37
    %v2303 = vand.u32 %v2291, 2147483648
    %v2304 = vor.u32 1.1754944e-38, %v2303
    %v2305 = vsel %vm2302, %v2304, %v2300
    %v2306 = vmul.f32 1.0, %v2305
    %v2307 = vmul.f32 %v2306, 2.0
    %v2308 = vsub.f32 %v2307, 1.0
    %v2309 = vmul.f32 %v2306, %v2253
    %2311 = vrot.lane.b32.xlu0 %v2308, 112
    %v2312 = vpop.permute.xlu0 %2311
    %v2314 = vmul.f32 %v2306, %v2312
    %2316 = vrot.lane.b32.xlu0 %v2314, 8
    %v2317 = vpop.permute.xlu0 %2316
    %v2319 = vadd.f32 %v2309, %v2317
    %v2320 = vtanh.pop %v2319
    %2322 = vrot.lane.b32.xlu0 %v2320, 16
    %v2323 = vpop.permute.xlu0 %2322
    %v2325 = vmul.f32 %v2306, %v2323
    %2327 = vrot.lane.b32.xlu0 %v2325, 104
    %v2328 = vpop.permute.xlu0 %2327
    %2330 = vst.msk [vmem:[#allocation6 + $0x20] sm:$0xff] %vm44, %v2328
    %v2331 = vsel %vm44, %v2328, 0
    %2333 = vmatpush.msra.mxu0 0.0
    %2334 = vmatpush.msra.mxu0 0.0
    %2335 = vmatpush.msra.mxu0 0.0
    %2336 = vmatpush.msra.mxu0 0.0
    %2337 = vmatpush.msra.mxu0 0.0
    %2338 = vmatpush.msra.mxu0 0.0
    %2339 = vmatpush.msra.mxu0 0.0
    %2340 = vmatpush.msra.mxu0 0.0
    %2341 = vmatpush.msra.mxu0 0.0
    %2342 = vmatpush.msra.mxu0 0.0
    %2343 = vmatpush.msra.mxu0 0.0
    %2344 = vmatpush.msra.mxu0 0.0
    %2345 = vmatpush.msra.mxu0 0.0
    %2346 = vmatpush.msra.mxu0 0.0
    %2347 = vmatpush.msra.mxu0 0.0
    %2348 = vmatpush.msra.mxu0 %v1927
    %2349 = vmatmul.f32.gmra.mxu0 %v2331
    %v2350 = vpop.f32.mrf.mxu0
    %v2351 = vadd.f32 0.0, %v2350
    %2352 = vdwg.mxu0
    %v2353 = vadd.f32 %v1995, %v2351
    %v2354 = vxor.u32 %v2353, 2147483648
    %v2355 = vmul.f32 %v2354, 1.442695
    %v2356 = vpow.pop %v2355
    %v2357 = vadd.f32 %v2356, 1.0
    %v2358 = vrcp.pop %v2357
    %v2359 = vmul.f32 %v2357, %v2358
    %v2360 = vsub.f32 1.0, %v2359
    %v2361 = vmul.f32 %v2358, %v2360
    %v2362 = vadd.f32 %v2358, %v2361
    %vm2363 = vweird.f32 %v2357
    %vm2364 = vweird.f32 %v2358
    %vm2365 = vmor %vm2363, %vm2364
    %v2366 = vsel %vm2365, %v2358, %v2362
    %v2367 = vand.u32 2147483647, %v2357
    %vm2368 = vcmp.eq.f32.partialorder %v2367, 8.507059e+37
    %v2369 = vand.u32 %v2357, 2147483648
    %v2370 = vor.u32 1.1754944e-38, %v2369
    %v2371 = vsel %vm2368, %v2370, %v2366
    %v2372 = vmul.f32 1.0, %v2371
    %v2373 = vmul.f32 %v2372, 2.0
    %v2374 = vsub.f32 %v2373, 1.0
    %v2375 = vmul.f32 %v2372, %v2319
    %2377 = vrot.lane.b32.xlu0 %v2374, 112
    %v2378 = vpop.permute.xlu0 %2377
    %v2380 = vmul.f32 %v2372, %v2378
    %2382 = vrot.lane.b32.xlu0 %v2380, 8
    %v2383 = vpop.permute.xlu0 %2382
    %v2385 = vadd.f32 %v2375, %v2383
    %v2386 = vtanh.pop %v2385
    %2388 = vrot.lane.b32.xlu0 %v2386, 16
    %v2389 = vpop.permute.xlu0 %2388
    %v2391 = vmul.f32 %v2372, %v2389
    %2393 = vrot.lane.b32.xlu0 %v2391, 104
    %v2394 = vpop.permute.xlu0 %2393
    %2396 = vst.msk [vmem:[#allocation6 + $0x28] sm:$0xff] %vm44, %v2394
    %v2397 = vsel %vm44, %v2394, 0
    %2399 = vmatpush.msra.mxu0 0.0
    %2400 = vmatpush.msra.mxu0 0.0
    %2401 = vmatpush.msra.mxu0 0.0
    %2402 = vmatpush.msra.mxu0 0.0
    %2403 = vmatpush.msra.mxu0 0.0
    %2404 = vmatpush.msra.mxu0 0.0
    %2405 = vmatpush.msra.mxu0 0.0
    %2406 = vmatpush.msra.mxu0 0.0
    %2407 = vmatpush.msra.mxu0 0.0
    %2408 = vmatpush.msra.mxu0 0.0
    %2409 = vmatpush.msra.mxu0 0.0
    %2410 = vmatpush.msra.mxu0 0.0
    %2411 = vmatpush.msra.mxu0 0.0
    %2412 = vmatpush.msra.mxu0 0.0
    %2413 = vmatpush.msra.mxu0 0.0
    %2414 = vmatpush.msra.mxu0 %v1927
    %2415 = vmatmul.f32.gmra.mxu0 %v2397
    %v2416 = vpop.f32.mrf.mxu0
    %v2417 = vadd.f32 0.0, %v2416
    %2418 = vdwg.mxu0
    %v2419 = vadd.f32 %v1998, %v2417
    %v2420 = vxor.u32 %v2419, 2147483648
    %v2421 = vmul.f32 %v2420, 1.442695
    %v2422 = vpow.pop %v2421
    %v2423 = vadd.f32 %v2422, 1.0
    %v2424 = vrcp.pop %v2423
    %v2425 = vmul.f32 %v2423, %v2424
    %v2426 = vsub.f32 1.0, %v2425
    %v2427 = vmul.f32 %v2424, %v2426
    %v2428 = vadd.f32 %v2424, %v2427
    %vm2429 = vweird.f32 %v2423
    %vm2430 = vweird.f32 %v2424
    %vm2431 = vmor %vm2429, %vm2430
    %v2432 = vsel %vm2431, %v2424, %v2428
    %v2433 = vand.u32 2147483647, %v2423
    %vm2434 = vcmp.eq.f32.partialorder %v2433, 8.507059e+37
    %v2435 = vand.u32 %v2423, 2147483648
    %v2436 = vor.u32 1.1754944e-38, %v2435
    %v2437 = vsel %vm2434, %v2436, %v2432
    %v2438 = vmul.f32 1.0, %v2437
    %v2439 = vmul.f32 %v2438, 2.0
    %v2440 = vsub.f32 %v2439, 1.0
    %v2441 = vmul.f32 %v2438, %v2385
    %2443 = vrot.lane.b32.xlu0 %v2440, 112
    %v2444 = vpop.permute.xlu0 %2443
    %v2446 = vmul.f32 %v2438, %v2444
    %2448 = vrot.lane.b32.xlu0 %v2446, 8
    %v2449 = vpop.permute.xlu0 %2448
    %v2451 = vadd.f32 %v2441, %v2449
    %v2452 = vtanh.pop %v2451
    %2454 = vrot.lane.b32.xlu0 %v2452, 16
    %v2455 = vpop.permute.xlu0 %2454
    %v2457 = vmul.f32 %v2438, %v2455
    %2459 = vrot.lane.b32.xlu0 %v2457, 104
    %v2460 = vpop.permute.xlu0 %2459
    %2462 = vst.msk [vmem:[#allocation6 + $0x30] sm:$0xff] %vm44, %v2460
    %v2463 = vsel %vm44, %v2460, 0
    %2465 = vmatpush.msra.mxu0 0.0
    %2466 = vmatpush.msra.mxu0 0.0
    %2467 = vmatpush.msra.mxu0 0.0
    %2468 = vmatpush.msra.mxu0 0.0
    %2469 = vmatpush.msra.mxu0 0.0
    %2470 = vmatpush.msra.mxu0 0.0
    %2471 = vmatpush.msra.mxu0 0.0
    %2472 = vmatpush.msra.mxu0 0.0
    %2473 = vmatpush.msra.mxu0 0.0
    %2474 = vmatpush.msra.mxu0 0.0
    %2475 = vmatpush.msra.mxu0 0.0
    %2476 = vmatpush.msra.mxu0 0.0
    %2477 = vmatpush.msra.mxu0 0.0
    %2478 = vmatpush.msra.mxu0 0.0
    %2479 = vmatpush.msra.mxu0 0.0
    %2480 = vmatpush.msra.mxu0 %v1927
    %2481 = vmatmul.f32.gmra.mxu0 %v2463
    %v2482 = vpop.f32.mrf.mxu0
    %v2483 = vadd.f32 0.0, %v2482
    %2484 = vdwg.mxu0
    %v2485 = vadd.f32 %v2001, %v2483
    %v2486 = vxor.u32 %v2485, 2147483648
    %v2487 = vmul.f32 %v2486, 1.442695
    %v2488 = vpow.pop %v2487
    %v2489 = vadd.f32 %v2488, 1.0
    %v2490 = vrcp.pop %v2489
    %v2491 = vmul.f32 %v2489, %v2490
    %v2492 = vsub.f32 1.0, %v2491
    %v2493 = vmul.f32 %v2490, %v2492
    %v2494 = vadd.f32 %v2490, %v2493
    %vm2495 = vweird.f32 %v2489
    %vm2496 = vweird.f32 %v2490
    %vm2497 = vmor %vm2495, %vm2496
    %v2498 = vsel %vm2497, %v2490, %v2494
    %v2499 = vand.u32 2147483647, %v2489
    %vm2500 = vcmp.eq.f32.partialorder %v2499, 8.507059e+37
    %v2501 = vand.u32 %v2489, 2147483648
    %v2502 = vor.u32 1.1754944e-38, %v2501
    %v2503 = vsel %vm2500, %v2502, %v2498
    %v2504 = vmul.f32 1.0, %v2503
    %v2505 = vmul.f32 %v2504, 2.0
    %v2506 = vsub.f32 %v2505, 1.0
    %v2507 = vmul.f32 %v2504, %v2451
    %2509 = vrot.lane.b32.xlu0 %v2506, 112
    %v2510 = vpop.permute.xlu0 %2509
    %v2512 = vmul.f32 %v2504, %v2510
    %2514 = vrot.lane.b32.xlu0 %v2512, 8
    %v2515 = vpop.permute.xlu0 %2514
    %v2517 = vadd.f32 %v2507, %v2515
    %v2518 = vtanh.pop %v2517
    %2520 = vrot.lane.b32.xlu0 %v2518, 16
    %v2521 = vpop.permute.xlu0 %2520
    %v2523 = vmul.f32 %v2504, %v2521
    %2525 = vrot.lane.b32.xlu0 %v2523, 104
    %v2526 = vpop.permute.xlu0 %2525
    %2528 = vst.msk [vmem:[#allocation6 + $0x38] sm:$0xff] %vm44, %v2526
    %v2529 = vld [vmem:[#allocation10 + $0xc0] sm:$0xff]
    %v2530 = vld [vmem:[#allocation10 + $0xc8] sm:$0x1]
    %v2531 = vld [vmem:[#allocation6] sm:$0xff]
    %v2532 = vld [vmem:[#allocation6 + $0x8] sm:$0xff]
    %v2533 = vld [vmem:[#allocation6 + $0x10] sm:$0xff]
    %v2534 = vld [vmem:[#allocation6 + $0x18] sm:$0xff]
    %v2535 = vld [vmem:[#allocation6 + $0x20] sm:$0xff]
    %v2536 = vld [vmem:[#allocation6 + $0x28] sm:$0xff]
    %v2537 = vld [vmem:[#allocation6 + $0x30] sm:$0xff]
    %v2538 = vld [vmem:[#allocation6 + $0x38] sm:$0xff]
    %v2539 = vperm.slane %v2530, 0
    %v2541 = vsel %vm44, %v2531, 0
    %v2544 = vsel %vm44, %v2532, 0
    %v2547 = vsel %vm44, %v2533, 0
    %v2550 = vsel %vm44, %v2534, 0
    %v2553 = vsel %vm44, %v2535, 0
    %v2556 = vsel %vm44, %v2536, 0
    %v2559 = vsel %vm44, %v2537, 0
    %v2562 = vsel %vm44, %v2538, 0
    %2564 = vmatpush.msra.mxu0 0.0
    %2565 = vmatpush.msra.mxu0 0.0
    %2566 = vmatpush.msra.mxu0 0.0
    %2567 = vmatpush.msra.mxu0 0.0
    %2568 = vmatpush.msra.mxu0 0.0
    %2569 = vmatpush.msra.mxu0 0.0
    %2570 = vmatpush.msra.mxu0 0.0
    %2571 = vmatpush.msra.mxu0 0.0
    %2572 = vmatpush.msra.mxu0 0.0
    %2573 = vmatpush.msra.mxu0 0.0
    %2574 = vmatpush.msra.mxu0 0.0
    %2575 = vmatpush.msra.mxu0 0.0
    %2576 = vmatpush.msra.mxu0 0.0
    %2577 = vmatpush.msra.mxu0 0.0
    %2578 = vmatpush.msra.mxu0 0.0
    %2579 = vmatpush.msra.mxu0 %v2529
    %2580 = vmatmul.f32.gmra.mxu0 %v2541
    %v2581 = vpop.f32.mrf.mxu0
    %v2582 = vadd.f32 %v2539, %v2581
    %2583 = vmatmul.f32.gmra.mxu0 %v2544
    %v2584 = vpop.f32.mrf.mxu0
    %v2585 = vadd.f32 %v2539, %v2584
    %2586 = vmatmul.f32.gmra.mxu0 %v2547
    %v2587 = vpop.f32.mrf.mxu0
    %v2588 = vadd.f32 %v2539, %v2587
    %2589 = vmatmul.f32.gmra.mxu0 %v2550
    %v2590 = vpop.f32.mrf.mxu0
    %v2591 = vadd.f32 %v2539, %v2590
    %2592 = vmatmul.f32.gmra.mxu0 %v2553
    %v2593 = vpop.f32.mrf.mxu0
    %v2594 = vadd.f32 %v2539, %v2593
    %2595 = vmatmul.f32.gmra.mxu0 %v2556
    %v2596 = vpop.f32.mrf.mxu0
    %v2597 = vadd.f32 %v2539, %v2596
    %2598 = vmatmul.f32.gmra.mxu0 %v2559
    %v2599 = vpop.f32.mrf.mxu0
    %v2600 = vadd.f32 %v2539, %v2599
    %2601 = vmatmul.f32.gmra.mxu0 %v2562
    %v2602 = vpop.f32.mrf.mxu0
    %v2603 = vadd.f32 %v2539, %v2602
    %2604 = vdwg.mxu0
    %v2606 = vrot.slane %v2582, 1
    %2608 = vst.msk [vmem:[#allocation12] sm:$0x1] %vm97, %v2582
    %2609 = vst.msk [vmem:[#allocation12 + $0x8] sm:$0x1] %vm97, %v2606
    %v2611 = vrot.slane %v2585, 1
    %2613 = vst.msk [vmem:[#allocation12 + $0x1] sm:$0x1] %vm97, %v2585
    %2614 = vst.msk [vmem:[#allocation12 + $0x9] sm:$0x1] %vm97, %v2611
    %v2616 = vrot.slane %v2588, 1
    %2618 = vst.msk [vmem:[#allocation12 + $0x2] sm:$0x1] %vm97, %v2588
    %2619 = vst.msk [vmem:[#allocation12 + $0xa] sm:$0x1] %vm97, %v2616
    %v2621 = vrot.slane %v2591, 1
    %2623 = vst.msk [vmem:[#allocation12 + $0x3] sm:$0x1] %vm97, %v2591
    %2624 = vst.msk [vmem:[#allocation12 + $0xb] sm:$0x1] %vm97, %v2621
    %v2626 = vrot.slane %v2594, 1
    %2628 = vst.msk [vmem:[#allocation12 + $0x4] sm:$0x1] %vm97, %v2594
    %2629 = vst.msk [vmem:[#allocation12 + $0xc] sm:$0x1] %vm97, %v2626
    %v2631 = vrot.slane %v2597, 1
    %2633 = vst.msk [vmem:[#allocation12 + $0x5] sm:$0x1] %vm97, %v2597
    %2634 = vst.msk [vmem:[#allocation12 + $0xd] sm:$0x1] %vm97, %v2631
    %v2636 = vrot.slane %v2600, 1
    %2638 = vst.msk [vmem:[#allocation12 + $0x6] sm:$0x1] %vm97, %v2600
    %2639 = vst.msk [vmem:[#allocation12 + $0xe] sm:$0x1] %vm97, %v2636
    %v2641 = vrot.slane %v2603, 1
    %2643 = vst.msk [vmem:[#allocation12 + $0x7] sm:$0x1] %vm97, %v2603
    %2644 = vst.msk [vmem:[#allocation12 + $0xf] sm:$0x1] %vm97, %v2641
    // Predicated region
    $region18: #{lstm_autoencoder_forward.1} parent=1 // pred_check
      _
    $region19: #{lstm_autoencoder_forward.1} parent=1 // pred_check_branch
      %2646 = sbr.rel (0) target = $region21
    $region20: #{lstm_autoencoder_forward.1} parent=1 // pred_region
      %2648 = vsyncadd [#allocation9], 0
      %s2649 = sshll.u32 [#allocation12], 4
      %s2650 = int_to_ptr.vmem [resolvable:$true] %s2649
      %s2651 = sshll.u32 %s2, 4
      %s2652 = int_to_ptr.hbm [resolvable:$true] %s2651
      %2657 = dma.vmem_to_hbm [thread:$0]  %s2650, 256, %s2652, [#allocation9], 128, 128, 8
    $region21: #{lstm_autoencoder_forward.1} parent=1 // pred_fallthru
      _
    // Predicated region
    $region22: #{lstm_autoencoder_forward.1} parent=1 // pred_check
      _
    $region23: #{lstm_autoencoder_forward.1} parent=1 // pred_check_branch
      %2659 = sbr.rel (0) target = $region25
    $region24: #{lstm_autoencoder_forward.1} parent=1 // pred_region
      %2661 = dma.done [#allocation9], 256
    $region25: #{lstm_autoencoder_forward.1} parent=1 // pred_fallthru
      _
    %2662 = vsyncpa [#allocation8], 1
    %2663 = vsyncpa [#allocation11], 1
    %2664 = vsyncpa [#allocation9], 1

</llo_original>
